<compile_context>
chip_gen: v7x
topology: tpu7x:2x2x1
jax: 0.10.0
libtpu: 0.0.40
codegen_flags: <defaults>
</compile_context>

<pallas_src>
import functools

import jax
import jax.numpy as jnp
from jax.experimental import pallas as pl
from jax.experimental.pallas import tpu as pltpu


# ---------------------------------------------------------------------------
# Fused kernel: conv1(1x1+BN+SiLU) -> 3x maxpool(5x5, s=1, SAME) -> conv2.
# One grid step == one image.  Spatial dims flattened to the sublane axis.
# ---------------------------------------------------------------------------
def _sppf_fused_kernel(x_ref, w1_ref, b1_ref, w2a_ref, w2b_ref, w2c_ref,
                       w2d_ref, b2_ref, o_ref, *, H, W, K, compute_dtype):
    M = H * W
    hidden = w1_ref.shape[1]
    p = K // 2
    f32 = jnp.float32
    neg_inf = f32(-jnp.inf)

    def mm(a, w_ref):
        # MXU matmul: bf16 (or f32) operands, f32 accumulation.
        return jnp.dot(a.astype(compute_dtype), w_ref[...],
                       preferred_element_type=f32)

    # ---- conv1: (M, Cin) @ (Cin, hidden) + folded-BN bias, SiLU ------------
    z1 = mm(x_ref[0], w1_ref) + b1_ref[...]
    x1 = z1 * jax.nn.sigmoid(z1)                        # (M, hidden), f32

    # ---- masked-shift helpers over the flattened H*W (sublane) axis --------
    fidx = jax.lax.broadcasted_iota(jnp.int32, (M, hidden), 0)
    if (W & (W - 1)) == 0 and (H & (H - 1)) == 0:       # power-of-two sizes
        col = jnp.bitwise_and(fidx, W - 1)
        row = jnp.right_shift(fidx, W.bit_length() - 1)
    else:
        # TODO(synk): relies on i32 vector div/rem lowering; demo and typical
        # YOLO feature maps use power-of-two spatial sizes (fast path above).
        col = fidx % W
        row = fidx // W

    wmask, hmask = {}, {}
    for d in range(1, p + 1):
        wmask[d], wmask[-d] = col < W - d, col >= d     # neighbor at col +/- d
        hmask[d], hmask[-d] = row < H - d, row >= d     # neighbor at row +/- d

    def shifted(t, off):
        # t[f + off] with wraparound; callers mask the wrapped entries.
        return pltpu.roll(t, shift=(-off) % M, axis=0)

    def pool(t):
        # Separable 5x5 max pool, stride 1, SAME (-inf outside the image):
        # 4 masked maxes along W, then 4 along H (rolls go to the XLU slot).
        r = t
        for d in range(1, p + 1):                       # within a row
            r = jnp.maximum(r, jnp.where(wmask[d], shifted(t, d), neg_inf))
            r = jnp.maximum(r, jnp.where(wmask[-d], shifted(t, -d), neg_inf))
        out = r
        for d in range(1, p + 1):                       # across rows (+- d*W)
            out = jnp.maximum(out, jnp.where(hmask[d], shifted(r, d * W), neg_inf))
            out = jnp.maximum(out, jnp.where(hmask[-d], shifted(r, -d * W), neg_inf))
        return out

    y1 = pool(x1)
    y2 = pool(y1)
    y3 = pool(y2)

    # ---- conv2 on the implicit concat([x1,y1,y2,y3]) via split weights ----
    z2 = (mm(x1, w2a_ref) + mm(y1, w2b_ref) + mm(y2, w2c_ref) +
          mm(y3, w2d_ref) + b2_ref[...])
    o_ref[0] = (z2 * jax.nn.sigmoid(z2)).astype(o_ref.dtype)


# ---------------------------------------------------------------------------
# Wrappers
# ---------------------------------------------------------------------------
def sppf_apply_nhwc(x_nhwc, params, *, k=5, compute_dtype=jnp.bfloat16,
                    vmem_limit_bytes=48 * 1024 * 1024):
    """Fused SPPF on an NHWC input; returns NHWC (no layout transposes)."""
    N, H, W, Cin = x_nhwc.shape
    hidden = params["w1"].shape[1]
    Cout = params["w2"].shape[1]
    M = H * W

    # Channels-last + flattened spatial: C -> lanes, H*W -> sublanes.
    x = x_nhwc.reshape(N, M, Cin)
    w1 = params["w1"].astype(compute_dtype)             # weights resident bf16
    w2 = params["w2"].astype(compute_dtype)
    w2a, w2b, w2c, w2d = (w2[i * hidden:(i + 1) * hidden] for i in range(4))
    b1 = params["b1"].astype(jnp.float32)
    b2 = params["b2"].astype(jnp.float32)

    kern = functools.partial(_sppf_fused_kernel, H=H, W=W, K=k,
                             compute_dtype=compute_dtype)

    itemsize = jnp.dtype(x_nhwc.dtype).itemsize
    wbytes = jnp.dtype(compute_dtype).itemsize
    cost = pl.CostEstimate(
        flops=int(N * M * (2 * Cin * hidden + 8 * hidden * Cout + 24 * hidden)),
        transcendentals=int(N * M * (hidden + Cout)),
        bytes_accessed=int(N * M * (Cin + Cout) * itemsize
                           + (w1.size + w2.size) * wbytes
                           + (b1.size + b2.size) * 4))

    # TODO(synk): for large feature maps (e.g. 80x80x256) tile H into row
    # blocks with a 3*(k//2)-row halo via manual DMA (pl.ANY +
    # pltpu.make_async_copy) so the fused chain stays within v7x's 64 MiB
    # VMEM and gives the 2 TensorCores more parallel grid steps.
    wspec = pl.BlockSpec((hidden, Cout), lambda n: (0, 0))
    out = pl.pallas_call(
        kern,
        out_shape=jax.ShapeDtypeStruct((N, M, Cout), x_nhwc.dtype),
        grid=(N,),
        in_specs=[
            pl.BlockSpec((1, M, Cin), lambda n: (n, 0, 0)),
            pl.BlockSpec((Cin, hidden), lambda n: (0, 0)),
            pl.BlockSpec((1, hidden), lambda n: (0, 0)),
            wspec, wspec, wspec, wspec,
            pl.BlockSpec((1, Cout), lambda n: (0, 0)),
        ],
        out_specs=pl.BlockSpec((1, M, Cout), lambda n: (n, 0, 0)),
        compiler_params=pltpu.CompilerParams(
            dimension_semantics=("parallel",),
            vmem_limit_bytes=vmem_limit_bytes),
        cost_estimate=cost,
    )(x, w1, b1, w2a, w2b, w2c, w2d, b2)
    return out.reshape(N, H, W, Cout)


def sppf_forward(x_nchw, params, *, k=5, compute_dtype=jnp.bfloat16):
    """PyTorch-compatible entry point: NCHW in / NCHW out."""
    # TODO(synk): callers that can supply NHWC should call sppf_apply_nhwc
    # directly and skip these two full-tensor boundary transposes.
    x = jnp.transpose(x_nchw, (0, 2, 3, 1))
    out = sppf_apply_nhwc(x, params, k=k, compute_dtype=compute_dtype)
    return jnp.transpose(out, (0, 3, 1, 2))


# ---------------------------------------------------------------------------
# Parameter construction (deterministic, BN folded into the 1x1 convs).
# ---------------------------------------------------------------------------
def make_sppf_params(key, in_channels, out_channels):
    hidden = in_channels // 2

    def conv_bn(k, cin, cout):
        k1, k2, k3, k4, k5 = jax.random.split(k, 5)
        w = jax.random.normal(k1, (cout, cin), jnp.float32) / jnp.sqrt(float(cin))
        gamma = 1.0 + 0.1 * jax.random.normal(k2, (cout,), jnp.float32)
        beta = 0.1 * jax.random.normal(k3, (cout,), jnp.float32)
        mean = 0.1 * jax.random.normal(k4, (cout,), jnp.float32)
        var = jnp.abs(jax.random.normal(k5, (cout,), jnp.float32)) + 0.5
        eps = 1e-5
        scale = gamma / jnp.sqrt(var + eps)              # fold BN into conv
        w_eff = (w * scale[:, None]).T                   # (cin, cout) for x @ w
        b_eff = (beta - mean * scale)[None, :]           # (1, cout)
        return w_eff, b_eff

    k1, k2 = jax.random.split(key)
    w1, b1 = conv_bn(k1, in_channels, hidden)
    w2, b2 = conv_bn(k2, 4 * hidden, out_channels)
    return {"w1": w1, "b1": b1, "w2": w2, "b2": b2}


# ---------------------------------------------------------------------------
# Pure-JAX reference (correctness check).  compute_dtype mirrors the kernel's
# MXU operand dtype so the bf16 perf path can be checked tightly too.
# ---------------------------------------------------------------------------
def sppf_reference(x_nchw, params, *, k=5, compute_dtype=jnp.float32):
    x = jnp.transpose(x_nchw, (0, 2, 3, 1))

    def pw(t, w, b):
        z = jnp.einsum("nhwc,cd->nhwd", t.astype(compute_dtype),
                       w.astype(compute_dtype),
                       preferred_element_type=jnp.float32) + b[0]
        return z * jax.nn.sigmoid(z)

    def pool(t):
        p = k // 2
        return jax.lax.reduce_window(t, -jnp.inf, jax.lax.max,
                                     (1, k, k, 1), (1, 1, 1, 1),
                                     ((0, 0), (p, p), (p, p), (0, 0)))

    x1 = pw(x, params["w1"], params["b1"])
    y1 = pool(x1)
    y2 = pool(y1)
    y3 = pool(y2)
    out = pw(jnp.concatenate([x1, y1, y2, y3], -1), params["w2"], params["b2"])
    return jnp.transpose(out, (0, 3, 1, 2))


if __name__ == "__main__":
    key = jax.random.PRNGKey(0)
    kx, kp = jax.random.split(key)

    N, Cin, H, W = 2, 8, 16, 16
    Cout = 8
    x = jax.random.normal(kx, (N, Cin, H, W), jnp.float32)
    params = make_sppf_params(kp, Cin, Cout)

    # Exact (f32 MXU operands) path vs f32 reference.
    out_f32 = jax.block_until_ready(
        sppf_forward(x, params, compute_dtype=jnp.float32))
    assert out_f32.shape == (N, Cout, H, W) and out_f32.dtype == jnp.float32
    ref_f32 = sppf_reference(x, params, compute_dtype=jnp.float32)
    err_f32 = float(jnp.max(jnp.abs(out_f32 - ref_f32)))
    assert jnp.allclose(out_f32, ref_f32, atol=2e-2, rtol=2e-2), err_f32

    # Default perf path (bf16 MXU operands, f32 accumulation) vs bf16-operand
    # reference.
    out_bf16 = jax.block_until_ready(sppf_forward(x, params))
    ref_bf16 = sppf_reference(x, params, compute_dtype=jnp.bfloat16)
    err_bf16 = float(jnp.max(jnp.abs(out_bf16 - ref_bf16)))
    assert jnp.allclose(out_bf16, ref_bf16, atol=2e-2, rtol=2e-2), err_bf16

    print("KERNEL_OK")
</pallas_src>

<mosaic_0001>
module attributes {stable_mosaic.version = 11 : i64} {
  func.func @_sppf_fused_kernel(%arg0: i32, %arg1: memref<1x256x8xf32, #tpu.memory_space<vmem>>, %arg2: memref<8x4xf32, #tpu.memory_space<vmem>>, %arg3: memref<1x4xf32, #tpu.memory_space<vmem>>, %arg4: memref<4x8xf32, #tpu.memory_space<vmem>>, %arg5: memref<4x8xf32, #tpu.memory_space<vmem>>, %arg6: memref<4x8xf32, #tpu.memory_space<vmem>>, %arg7: memref<4x8xf32, #tpu.memory_space<vmem>>, %arg8: memref<1x8xf32, #tpu.memory_space<vmem>>, %arg9: memref<1x256x8xf32, #tpu.memory_space<vmem>>) attributes {dimension_semantics = [#tpu.dimension_semantics<parallel>], iteration_bounds = array<i64: 2>, scalar_prefetch = 0 : i64, scratch_operands = 0 : i64, tpu.core_type = #tpu.core_type<tc>, window_params = [{transform_indices = @transform_0, window_bounds = array<i64: 1, 256, 8>}, {pipeline_mode = #tpu.pipeline_mode<synchronous>, transform_indices = @transform_1, window_bounds = array<i64: 8, 4>}, {pipeline_mode = #tpu.pipeline_mode<synchronous>, transform_indices = @transform_2, window_bounds = array<i64: 1, 4>}, {pipeline_mode = #tpu.pipeline_mode<synchronous>, transform_indices = @transform_3, window_bounds = array<i64: 4, 8>}, {pipeline_mode = #tpu.pipeline_mode<synchronous>, transform_indices = @transform_4, window_bounds = array<i64: 4, 8>}, {pipeline_mode = #tpu.pipeline_mode<synchronous>, transform_indices = @transform_5, window_bounds = array<i64: 4, 8>}, {pipeline_mode = #tpu.pipeline_mode<synchronous>, transform_indices = @transform_6, window_bounds = array<i64: 4, 8>}, {pipeline_mode = #tpu.pipeline_mode<synchronous>, transform_indices = @transform_7, window_bounds = array<i64: 1, 8>}, {transform_indices = @transform_8, window_bounds = array<i64: 1, 256, 8>}]} {
    %c0 = arith.constant 0 : index
    %c0_0 = arith.constant 0 : index
    %c0_1 = arith.constant 0 : index
    %0 = vector.load %arg1[%c0, %c0_0, %c0_1] : memref<1x256x8xf32, #tpu.memory_space<vmem>>, vector<1x256x8xf32>
    %1 = vector.shape_cast %0 : vector<1x256x8xf32> to vector<256x8xf32>
    %c0_2 = arith.constant 0 : index
    %c0_3 = arith.constant 0 : index
    %2 = vector.load %arg2[%c0_2, %c0_3] : memref<8x4xf32, #tpu.memory_space<vmem>>, vector<8x4xf32>
    %cst = arith.constant dense<0.000000e+00> : vector<256x4xf32>
    %3 = tpu.matmul %1, %2, %cst {dimension_numbers = #tpu.dot_dimension_numbers<[1], [0], [0], [1], [0, 0, 1, 1], [], []>} : vector<256x8xf32>, vector<8x4xf32>, vector<256x4xf32> -> vector<256x4xf32>
    %c0_4 = arith.constant 0 : index
    %c0_5 = arith.constant 0 : index
    %4 = vector.load %arg3[%c0_4, %c0_5] : memref<1x4xf32, #tpu.memory_space<vmem>>, vector<1x4xf32>
    %5 = vector.broadcast %4 : vector<1x4xf32> to vector<256x4xf32>
    %6 = arith.addf %3, %5 : vector<256x4xf32>
    %7 = arith.negf %6 : vector<256x4xf32>
    %8 = math.exp %7 : vector<256x4xf32>
    %cst_6 = arith.constant 1.000000e+00 : f32
    %9 = vector.broadcast %cst_6 : f32 to vector<256x4xf32>
    %10 = arith.addf %9, %8 : vector<256x4xf32>
    %11 = arith.divf %9, %10 : vector<256x4xf32>
    %12 = arith.mulf %6, %11 : vector<256x4xf32>
    %13 = tpu.iota {dimensions = array<i32: 0>} : vector<256x4xi32>
    %c15_i32 = arith.constant 15 : i32
    %14 = vector.broadcast %c15_i32 : i32 to vector<256x4xi32>
    %15 = arith.andi %13, %14 : vector<256x4xi32>
    %c4_i32 = arith.constant 4 : i32
    %16 = vector.broadcast %c4_i32 : i32 to vector<256x4xi32>
    %17 = arith.shrsi %13, %16 : vector<256x4xi32>
    %c15_i32_7 = arith.constant 15 : i32
    %18 = vector.broadcast %c15_i32_7 : i32 to vector<256x4xi32>
    %19 = arith.cmpi slt, %15, %18 : vector<256x4xi32>
    %c1_i32 = arith.constant 1 : i32
    %20 = vector.broadcast %c1_i32 : i32 to vector<256x4xi32>
    %21 = arith.cmpi sge, %15, %20 : vector<256x4xi32>
    %c15_i32_8 = arith.constant 15 : i32
    %22 = vector.broadcast %c15_i32_8 : i32 to vector<256x4xi32>
    %23 = arith.cmpi slt, %17, %22 : vector<256x4xi32>
    %c1_i32_9 = arith.constant 1 : i32
    %24 = vector.broadcast %c1_i32_9 : i32 to vector<256x4xi32>
    %25 = arith.cmpi sge, %17, %24 : vector<256x4xi32>
    %c14_i32 = arith.constant 14 : i32
    %26 = vector.broadcast %c14_i32 : i32 to vector<256x4xi32>
    %27 = arith.cmpi slt, %15, %26 : vector<256x4xi32>
    %c2_i32 = arith.constant 2 : i32
    %28 = vector.broadcast %c2_i32 : i32 to vector<256x4xi32>
    %29 = arith.cmpi sge, %15, %28 : vector<256x4xi32>
    %c14_i32_10 = arith.constant 14 : i32
    %30 = vector.broadcast %c14_i32_10 : i32 to vector<256x4xi32>
    %31 = arith.cmpi slt, %17, %30 : vector<256x4xi32>
    %c2_i32_11 = arith.constant 2 : i32
    %32 = vector.broadcast %c2_i32_11 : i32 to vector<256x4xi32>
    %33 = arith.cmpi sge, %17, %32 : vector<256x4xi32>
    %c255_i32 = arith.constant 255 : i32
    %34 = tpu.dynamic_rotate %12 by %c255_i32 dim 0 : vector<256x4xf32>, i32 -> vector<256x4xf32>
    %cst_12 = arith.constant 0xFF800000 : f32
    %35 = vector.broadcast %cst_12 : f32 to vector<256x4xf32>
    %36 = arith.select %19, %34, %35 : vector<256x4xi1>, vector<256x4xf32>
    %37 = arith.maximumf %12, %36 : vector<256x4xf32>
    %c1_i32_13 = arith.constant 1 : i32
    %38 = tpu.dynamic_rotate %12 by %c1_i32_13 dim 0 : vector<256x4xf32>, i32 -> vector<256x4xf32>
    %cst_14 = arith.constant 0xFF800000 : f32
    %39 = vector.broadcast %cst_14 : f32 to vector<256x4xf32>
    %40 = arith.select %21, %38, %39 : vector<256x4xi1>, vector<256x4xf32>
    %41 = arith.maximumf %37, %40 : vector<256x4xf32>
    %c254_i32 = arith.constant 254 : i32
    %42 = tpu.dynamic_rotate %12 by %c254_i32 dim 0 : vector<256x4xf32>, i32 -> vector<256x4xf32>
    %cst_15 = arith.constant 0xFF800000 : f32
    %43 = vector.broadcast %cst_15 : f32 to vector<256x4xf32>
    %44 = arith.select %27, %42, %43 : vector<256x4xi1>, vector<256x4xf32>
    %45 = arith.maximumf %41, %44 : vector<256x4xf32>
    %c2_i32_16 = arith.constant 2 : i32
    %46 = tpu.dynamic_rotate %12 by %c2_i32_16 dim 0 : vector<256x4xf32>, i32 -> vector<256x4xf32>
    %cst_17 = arith.constant 0xFF800000 : f32
    %47 = vector.broadcast %cst_17 : f32 to vector<256x4xf32>
    %48 = arith.select %29, %46, %47 : vector<256x4xi1>, vector<256x4xf32>
    %49 = arith.maximumf %45, %48 : vector<256x4xf32>
    %c240_i32 = arith.constant 240 : i32
    %50 = tpu.dynamic_rotate %49 by %c240_i32 dim 0 : vector<256x4xf32>, i32 -> vector<256x4xf32>
    %cst_18 = arith.constant 0xFF800000 : f32
    %51 = vector.broadcast %cst_18 : f32 to vector<256x4xf32>
    %52 = arith.select %23, %50, %51 : vector<256x4xi1>, vector<256x4xf32>
    %53 = arith.maximumf %49, %52 : vector<256x4xf32>
    %c16_i32 = arith.constant 16 : i32
    %54 = tpu.dynamic_rotate %49 by %c16_i32 dim 0 : vector<256x4xf32>, i32 -> vector<256x4xf32>
    %cst_19 = arith.constant 0xFF800000 : f32
    %55 = vector.broadcast %cst_19 : f32 to vector<256x4xf32>
    %56 = arith.select %25, %54, %55 : vector<256x4xi1>, vector<256x4xf32>
    %57 = arith.maximumf %53, %56 : vector<256x4xf32>
    %c224_i32 = arith.constant 224 : i32
    %58 = tpu.dynamic_rotate %49 by %c224_i32 dim 0 : vector<256x4xf32>, i32 -> vector<256x4xf32>
    %cst_20 = arith.constant 0xFF800000 : f32
    %59 = vector.broadcast %cst_20 : f32 to vector<256x4xf32>
    %60 = arith.select %31, %58, %59 : vector<256x4xi1>, vector<256x4xf32>
    %61 = arith.maximumf %57, %60 : vector<256x4xf32>
    %c32_i32 = arith.constant 32 : i32
    %62 = tpu.dynamic_rotate %49 by %c32_i32 dim 0 : vector<256x4xf32>, i32 -> vector<256x4xf32>
    %cst_21 = arith.constant 0xFF800000 : f32
    %63 = vector.broadcast %cst_21 : f32 to vector<256x4xf32>
    %64 = arith.select %33, %62, %63 : vector<256x4xi1>, vector<256x4xf32>
    %65 = arith.maximumf %61, %64 : vector<256x4xf32>
    %c255_i32_22 = arith.constant 255 : i32
    %66 = tpu.dynamic_rotate %65 by %c255_i32_22 dim 0 : vector<256x4xf32>, i32 -> vector<256x4xf32>
    %cst_23 = arith.constant 0xFF800000 : f32
    %67 = vector.broadcast %cst_23 : f32 to vector<256x4xf32>
    %68 = arith.select %19, %66, %67 : vector<256x4xi1>, vector<256x4xf32>
    %69 = arith.maximumf %65, %68 : vector<256x4xf32>
    %c1_i32_24 = arith.constant 1 : i32
    %70 = tpu.dynamic_rotate %65 by %c1_i32_24 dim 0 : vector<256x4xf32>, i32 -> vector<256x4xf32>
    %cst_25 = arith.constant 0xFF800000 : f32
    %71 = vector.broadcast %cst_25 : f32 to vector<256x4xf32>
    %72 = arith.select %21, %70, %71 : vector<256x4xi1>, vector<256x4xf32>
    %73 = arith.maximumf %69, %72 : vector<256x4xf32>
    %c254_i32_26 = arith.constant 254 : i32
    %74 = tpu.dynamic_rotate %65 by %c254_i32_26 dim 0 : vector<256x4xf32>, i32 -> vector<256x4xf32>
    %cst_27 = arith.constant 0xFF800000 : f32
    %75 = vector.broadcast %cst_27 : f32 to vector<256x4xf32>
    %76 = arith.select %27, %74, %75 : vector<256x4xi1>, vector<256x4xf32>
    %77 = arith.maximumf %73, %76 : vector<256x4xf32>
    %c2_i32_28 = arith.constant 2 : i32
    %78 = tpu.dynamic_rotate %65 by %c2_i32_28 dim 0 : vector<256x4xf32>, i32 -> vector<256x4xf32>
    %cst_29 = arith.constant 0xFF800000 : f32
    %79 = vector.broadcast %cst_29 : f32 to vector<256x4xf32>
    %80 = arith.select %29, %78, %79 : vector<256x4xi1>, vector<256x4xf32>
    %81 = arith.maximumf %77, %80 : vector<256x4xf32>
    %c240_i32_30 = arith.constant 240 : i32
    %82 = tpu.dynamic_rotate %81 by %c240_i32_30 dim 0 : vector<256x4xf32>, i32 -> vector<256x4xf32>
    %cst_31 = arith.constant 0xFF800000 : f32
    %83 = vector.broadcast %cst_31 : f32 to vector<256x4xf32>
    %84 = arith.select %23, %82, %83 : vector<256x4xi1>, vector<256x4xf32>
    %85 = arith.maximumf %81, %84 : vector<256x4xf32>
    %c16_i32_32 = arith.constant 16 : i32
    %86 = tpu.dynamic_rotate %81 by %c16_i32_32 dim 0 : vector<256x4xf32>, i32 -> vector<256x4xf32>
    %cst_33 = arith.constant 0xFF800000 : f32
    %87 = vector.broadcast %cst_33 : f32 to vector<256x4xf32>
    %88 = arith.select %25, %86, %87 : vector<256x4xi1>, vector<256x4xf32>
    %89 = arith.maximumf %85, %88 : vector<256x4xf32>
    %c224_i32_34 = arith.constant 224 : i32
    %90 = tpu.dynamic_rotate %81 by %c224_i32_34 dim 0 : vector<256x4xf32>, i32 -> vector<256x4xf32>
    %cst_35 = arith.constant 0xFF800000 : f32
    %91 = vector.broadcast %cst_35 : f32 to vector<256x4xf32>
    %92 = arith.select %31, %90, %91 : vector<256x4xi1>, vector<256x4xf32>
    %93 = arith.maximumf %89, %92 : vector<256x4xf32>
    %c32_i32_36 = arith.constant 32 : i32
    %94 = tpu.dynamic_rotate %81 by %c32_i32_36 dim 0 : vector<256x4xf32>, i32 -> vector<256x4xf32>
    %cst_37 = arith.constant 0xFF800000 : f32
    %95 = vector.broadcast %cst_37 : f32 to vector<256x4xf32>
    %96 = arith.select %33, %94, %95 : vector<256x4xi1>, vector<256x4xf32>
    %97 = arith.maximumf %93, %96 : vector<256x4xf32>
    %c255_i32_38 = arith.constant 255 : i32
    %98 = tpu.dynamic_rotate %97 by %c255_i32_38 dim 0 : vector<256x4xf32>, i32 -> vector<256x4xf32>
    %cst_39 = arith.constant 0xFF800000 : f32
    %99 = vector.broadcast %cst_39 : f32 to vector<256x4xf32>
    %100 = arith.select %19, %98, %99 : vector<256x4xi1>, vector<256x4xf32>
    %101 = arith.maximumf %97, %100 : vector<256x4xf32>
    %c1_i32_40 = arith.constant 1 : i32
    %102 = tpu.dynamic_rotate %97 by %c1_i32_40 dim 0 : vector<256x4xf32>, i32 -> vector<256x4xf32>
    %cst_41 = arith.constant 0xFF800000 : f32
    %103 = vector.broadcast %cst_41 : f32 to vector<256x4xf32>
    %104 = arith.select %21, %102, %103 : vector<256x4xi1>, vector<256x4xf32>
    %105 = arith.maximumf %101, %104 : vector<256x4xf32>
    %c254_i32_42 = arith.constant 254 : i32
    %106 = tpu.dynamic_rotate %97 by %c254_i32_42 dim 0 : vector<256x4xf32>, i32 -> vector<256x4xf32>
    %cst_43 = arith.constant 0xFF800000 : f32
    %107 = vector.broadcast %cst_43 : f32 to vector<256x4xf32>
    %108 = arith.select %27, %106, %107 : vector<256x4xi1>, vector<256x4xf32>
    %109 = arith.maximumf %105, %108 : vector<256x4xf32>
    %c2_i32_44 = arith.constant 2 : i32
    %110 = tpu.dynamic_rotate %97 by %c2_i32_44 dim 0 : vector<256x4xf32>, i32 -> vector<256x4xf32>
    %cst_45 = arith.constant 0xFF800000 : f32
    %111 = vector.broadcast %cst_45 : f32 to vector<256x4xf32>
    %112 = arith.select %29, %110, %111 : vector<256x4xi1>, vector<256x4xf32>
    %113 = arith.maximumf %109, %112 : vector<256x4xf32>
    %c240_i32_46 = arith.constant 240 : i32
    %114 = tpu.dynamic_rotate %113 by %c240_i32_46 dim 0 : vector<256x4xf32>, i32 -> vector<256x4xf32>
    %cst_47 = arith.constant 0xFF800000 : f32
    %115 = vector.broadcast %cst_47 : f32 to vector<256x4xf32>
    %116 = arith.select %23, %114, %115 : vector<256x4xi1>, vector<256x4xf32>
    %117 = arith.maximumf %113, %116 : vector<256x4xf32>
    %c16_i32_48 = arith.constant 16 : i32
    %118 = tpu.dynamic_rotate %113 by %c16_i32_48 dim 0 : vector<256x4xf32>, i32 -> vector<256x4xf32>
    %cst_49 = arith.constant 0xFF800000 : f32
    %119 = vector.broadcast %cst_49 : f32 to vector<256x4xf32>
    %120 = arith.select %25, %118, %119 : vector<256x4xi1>, vector<256x4xf32>
    %121 = arith.maximumf %117, %120 : vector<256x4xf32>
    %c224_i32_50 = arith.constant 224 : i32
    %122 = tpu.dynamic_rotate %113 by %c224_i32_50 dim 0 : vector<256x4xf32>, i32 -> vector<256x4xf32>
    %cst_51 = arith.constant 0xFF800000 : f32
    %123 = vector.broadcast %cst_51 : f32 to vector<256x4xf32>
    %124 = arith.select %31, %122, %123 : vector<256x4xi1>, vector<256x4xf32>
    %125 = arith.maximumf %121, %124 : vector<256x4xf32>
    %c32_i32_52 = arith.constant 32 : i32
    %126 = tpu.dynamic_rotate %113 by %c32_i32_52 dim 0 : vector<256x4xf32>, i32 -> vector<256x4xf32>
    %cst_53 = arith.constant 0xFF800000 : f32
    %127 = vector.broadcast %cst_53 : f32 to vector<256x4xf32>
    %128 = arith.select %33, %126, %127 : vector<256x4xi1>, vector<256x4xf32>
    %129 = arith.maximumf %125, %128 : vector<256x4xf32>
    %c0_54 = arith.constant 0 : index
    %c0_55 = arith.constant 0 : index
    %130 = vector.load %arg4[%c0_54, %c0_55] : memref<4x8xf32, #tpu.memory_space<vmem>>, vector<4x8xf32>
    %cst_56 = arith.constant dense<0.000000e+00> : vector<256x8xf32>
    %131 = tpu.matmul %12, %130, %cst_56 {dimension_numbers = #tpu.dot_dimension_numbers<[1], [0], [0], [1], [0, 0, 1, 1], [], []>} : vector<256x4xf32>, vector<4x8xf32>, vector<256x8xf32> -> vector<256x8xf32>
    %c0_57 = arith.constant 0 : index
    %c0_58 = arith.constant 0 : index
    %132 = vector.load %arg5[%c0_57, %c0_58] : memref<4x8xf32, #tpu.memory_space<vmem>>, vector<4x8xf32>
    %cst_59 = arith.constant dense<0.000000e+00> : vector<256x8xf32>
    %133 = tpu.matmul %65, %132, %cst_59 {dimension_numbers = #tpu.dot_dimension_numbers<[1], [0], [0], [1], [0, 0, 1, 1], [], []>} : vector<256x4xf32>, vector<4x8xf32>, vector<256x8xf32> -> vector<256x8xf32>
    %134 = arith.addf %131, %133 : vector<256x8xf32>
    %c0_60 = arith.constant 0 : index
    %c0_61 = arith.constant 0 : index
    %135 = vector.load %arg6[%c0_60, %c0_61] : memref<4x8xf32, #tpu.memory_space<vmem>>, vector<4x8xf32>
    %cst_62 = arith.constant dense<0.000000e+00> : vector<256x8xf32>
    %136 = tpu.matmul %97, %135, %cst_62 {dimension_numbers = #tpu.dot_dimension_numbers<[1], [0], [0], [1], [0, 0, 1, 1], [], []>} : vector<256x4xf32>, vector<4x8xf32>, vector<256x8xf32> -> vector<256x8xf32>
    %137 = arith.addf %134, %136 : vector<256x8xf32>
    %c0_63 = arith.constant 0 : index
    %c0_64 = arith.constant 0 : index
    %138 = vector.load %arg7[%c0_63, %c0_64] : memref<4x8xf32, #tpu.memory_space<vmem>>, vector<4x8xf32>
    %cst_65 = arith.constant dense<0.000000e+00> : vector<256x8xf32>
    %139 = tpu.matmul %129, %138, %cst_65 {dimension_numbers = #tpu.dot_dimension_numbers<[1], [0], [0], [1], [0, 0, 1, 1], [], []>} : vector<256x4xf32>, vector<4x8xf32>, vector<256x8xf32> -> vector<256x8xf32>
    %140 = arith.addf %137, %139 : vector<256x8xf32>
    %c0_66 = arith.constant 0 : index
    %c0_67 = arith.constant 0 : index
    %141 = vector.load %arg8[%c0_66, %c0_67] : memref<1x8xf32, #tpu.memory_space<vmem>>, vector<1x8xf32>
    %142 = vector.broadcast %141 : vector<1x8xf32> to vector<256x8xf32>
    %143 = arith.addf %140, %142 : vector<256x8xf32>
    %144 = arith.negf %143 : vector<256x8xf32>
    %145 = math.exp %144 : vector<256x8xf32>
    %cst_68 = arith.constant 1.000000e+00 : f32
    %146 = vector.broadcast %cst_68 : f32 to vector<256x8xf32>
    %147 = arith.addf %146, %145 : vector<256x8xf32>
    %148 = arith.divf %146, %147 : vector<256x8xf32>
    %149 = arith.mulf %143, %148 : vector<256x8xf32>
    %c0_69 = arith.constant 0 : index
    %c0_70 = arith.constant 0 : index
    %c0_71 = arith.constant 0 : index
    %150 = vector.load %arg9[%c0_69, %c0_70, %c0_71] : memref<1x256x8xf32, #tpu.memory_space<vmem>>, vector<1x256x8xf32>
    %151 = vector.shape_cast %150 : vector<1x256x8xf32> to vector<256x8xf32>
    %152 = vector.shape_cast %149 : vector<256x8xf32> to vector<1x256x8xf32>
    tpu.vector_store %arg9[%c0_69, %c0_70, %c0_71], %152 {strides = array<i32>} : memref<1x256x8xf32, #tpu.memory_space<vmem>>, vector<1x256x8xf32>,
    return
  }
  func.func @transform_0(%arg0: i32) -> (i32, i32, i32) {
    %c0_i32 = arith.constant 0 : i32
    %c0_i32_0 = arith.constant 0 : i32
    %c0_i32_1 = arith.constant 0 : i32
    return %arg0, %c0_i32, %c0_i32_0 : i32, i32, i32
  }
  func.func @transform_1(%arg0: i32) -> (i32, i32) {
    %c0_i32 = arith.constant 0 : i32
    %c0_i32_0 = arith.constant 0 : i32
    %c0_i32_1 = arith.constant 0 : i32
    return %c0_i32, %c0_i32_0 : i32, i32
  }
  func.func @transform_2(%arg0: i32) -> (i32, i32) {
    %c0_i32 = arith.constant 0 : i32
    %c0_i32_0 = arith.constant 0 : i32
    %c0_i32_1 = arith.constant 0 : i32
    return %c0_i32, %c0_i32_0 : i32, i32
  }
  func.func @transform_3(%arg0: i32) -> (i32, i32) {
    %c0_i32 = arith.constant 0 : i32
    %c0_i32_0 = arith.constant 0 : i32
    %c0_i32_1 = arith.constant 0 : i32
    return %c0_i32, %c0_i32_0 : i32, i32
  }
  func.func @transform_4(%arg0: i32) -> (i32, i32) {
    %c0_i32 = arith.constant 0 : i32
    %c0_i32_0 = arith.constant 0 : i32
    %c0_i32_1 = arith.constant 0 : i32
    return %c0_i32, %c0_i32_0 : i32, i32
  }
  func.func @transform_5(%arg0: i32) -> (i32, i32) {
    %c0_i32 = arith.constant 0 : i32
    %c0_i32_0 = arith.constant 0 : i32
    %c0_i32_1 = arith.constant 0 : i32
    return %c0_i32, %c0_i32_0 : i32, i32
  }
  func.func @transform_6(%arg0: i32) -> (i32, i32) {
    %c0_i32 = arith.constant 0 : i32
    %c0_i32_0 = arith.constant 0 : i32
    %c0_i32_1 = arith.constant 0 : i32
    return %c0_i32, %c0_i32_0 : i32, i32
  }
  func.func @transform_7(%arg0: i32) -> (i32, i32) {
    %c0_i32 = arith.constant 0 : i32
    %c0_i32_0 = arith.constant 0 : i32
    %c0_i32_1 = arith.constant 0 : i32
    return %c0_i32, %c0_i32_0 : i32, i32
  }
  func.func @transform_8(%arg0: i32) -> (i32, i32, i32) {
    %c0_i32 = arith.constant 0 : i32
    %c0_i32_0 = arith.constant 0 : i32
    %c0_i32_1 = arith.constant 0 : i32
    return %arg0, %c0_i32, %c0_i32_0 : i32, i32, i32
  }
}

</mosaic_0001>

<llo_original>
// kernel: tpu_custom_call.1
$region0: #{tpu_custom_call.1}
  #allocation0 [shape = 'u32[]', space=smem, size = 0x4, offset = 0x4, fixed_abs, tag = 'smem constant byte address 0x4 - core index']
  #allocation1 [shape = 'u32[144,128]{1,0:T(1,128)}', space=vmem, size = 0x12000, scoped, tag = 'internal scratch']
  %s0 = inlined_call_operand.vmem [shape: f32[2,256,8], index: 0, kind: input, shape index: {}]
  %s1 = inlined_call_operand.vmem [shape: f32[8,4], index: 1, kind: input, shape index: {}]
  %s2 = inlined_call_operand.vmem [shape: f32[1,4], index: 2, kind: input, shape index: {}]
  %s3 = inlined_call_operand.vmem [shape: f32[4,8], index: 3, kind: input, shape index: {}]
  %s4 = inlined_call_operand.vmem [shape: f32[4,8], index: 4, kind: input, shape index: {}]
  %s5 = inlined_call_operand.vmem [shape: f32[4,8], index: 5, kind: input, shape index: {}]
  %s6 = inlined_call_operand.vmem [shape: f32[4,8], index: 6, kind: input, shape index: {}]
  %s7 = inlined_call_operand.vmem [shape: f32[1,8], index: 7, kind: input, shape index: {}]
  %s8 = inlined_call_operand.vmem [shape: f32[2,256,8], index: 8, kind: output, shape index: {}]
  %s9 = sld [smem:[#allocation0]]
  $region65: #{tpu_custom_call.1} parent=0
    _
  %s11 = ssub.s32 1, %s9
  %s12 = scalar_select 0, %s11, %s9
  loop: start=0, step=1, limit=4
  $region2: #{tpu_custom_call.1} parent=0 // loop_pre_header
    _
  $region3: #{tpu_custom_call.1} parent=0 // loop_header
    %s14 = sphi 0, %s18
    %p15 = scmp.ge.s32.totalorder %s14, 4
    %s24 = sphi 0, %s26
    %s27 = sphi 0, %s24
    %s28 = sphi 0, %s27
    %s44 = sphi 0, %s28
    %s48 = sphi 0, %s48
    %s50 = sphi 0, %s48
    %s51 = sphi 0, %s50
    %s65 = sphi 0, %s51
    %s69 = sphi 0, %s69
    %s71 = sphi 0, %s69
    %s72 = sphi 0, %s71
    %s86 = sphi 0, %s72
    %s90 = sphi 0, %s90
    %s92 = sphi 0, %s90
    %s93 = sphi 0, %s92
    %s107 = sphi 0, %s93
    %s111 = sphi 0, %s111
    %s113 = sphi 0, %s111
    %s114 = sphi 0, %s113
    %s128 = sphi 0, %s114
    %s132 = sphi 0, %s132
    %s134 = sphi 0, %s132
    %s135 = sphi 0, %s134
    %s149 = sphi 0, %s135
    %s153 = sphi 0, %s153
    %s155 = sphi 0, %s153
    %s156 = sphi 0, %s155
    %s170 = sphi 0, %s156
    %s174 = sphi 0, %s174
    %s176 = sphi 0, %s174
    %s177 = sphi 0, %s176
    %s191 = sphi 0, %s177
    %s197 = sphi 0, %s199
    %s200 = sphi 0, %s197
    %s201 = sphi 0, %s200
    %s217 = sphi 0, %s201
  $region4: #{tpu_custom_call.1} parent=0 // loop_header_branch
    %17 = sbr.rel (%p15) target = $region8
  $region5: #{tpu_custom_call.1} parent=0 // loop_body
    %s19 = ssub.s32 %s14, 1
    %s20 = ssub.s32 %s14, 2
    %s21 = sadd.s32 %s14, 1
    %s22 = ssub.s32 %s14, %s21
    %p23 = scmp.eq.s32.totalorder %s22, 0
    %s25 = sadd.s32 %s24, 1
    %s26 = scalar_select %p23, %s24, %s25
    %p29 = pneg %p23
    %p30 = scmp.eq.s32.totalorder %s14, 1
    %p31 = por %p29, %p30
    %p32 = scmp.ne.s32.totalorder %s24, %s27
    %p33 = scmp.eq.s32.totalorder %s14, 0
    %p34 = por %p32, %p33
    %p35 = scmp.ne.s32.totalorder %s24, %s27
    %p36 = scmp.eq.s32.totalorder %s19, 1
    %p37 = por %p35, %p36
    %p38 = scmp.ne.s32.totalorder %s27, %s28
    %p39 = scmp.eq.s32.totalorder %s19, 0
    %p40 = por %p38, %p39
    %p41 = scmp.ne.s32.totalorder %s27, %s28
    %p42 = scmp.eq.s32.totalorder %s20, 1
    %p43 = por %p41, %p42
    %p45 = scmp.ne.s32.totalorder %s28, %s44
    %p46 = scmp.eq.s32.totalorder %s20, 0
    %p47 = por %p45, %p46
    %s49 = sadd.s32 %s48, 1
    %p52 = scmp.eq.s32.totalorder %s14, 1
    %p53 = scmp.ne.s32.totalorder %s48, %s50
    %p54 = scmp.eq.s32.totalorder %s14, 0
    %p55 = por %p53, %p54
    %p56 = scmp.ne.s32.totalorder %s48, %s50
    %p57 = scmp.eq.s32.totalorder %s19, 1
    %p58 = por %p56, %p57
    %p59 = scmp.ne.s32.totalorder %s50, %s51
    %p60 = scmp.eq.s32.totalorder %s19, 0
    %p61 = por %p59, %p60
    %p62 = scmp.ne.s32.totalorder %s50, %s51
    %p63 = scmp.eq.s32.totalorder %s20, 1
    %p64 = por %p62, %p63
    %p66 = scmp.ne.s32.totalorder %s51, %s65
    %p67 = scmp.eq.s32.totalorder %s20, 0
    %p68 = por %p66, %p67
    %s70 = sadd.s32 %s69, 1
    %p73 = scmp.eq.s32.totalorder %s14, 1
    %p74 = scmp.ne.s32.totalorder %s69, %s71
    %p75 = scmp.eq.s32.totalorder %s14, 0
    %p76 = por %p74, %p75
    %p77 = scmp.ne.s32.totalorder %s69, %s71
    %p78 = scmp.eq.s32.totalorder %s19, 1
    %p79 = por %p77, %p78
    %p80 = scmp.ne.s32.totalorder %s71, %s72
    %p81 = scmp.eq.s32.totalorder %s19, 0
    %p82 = por %p80, %p81
    %p83 = scmp.ne.s32.totalorder %s71, %s72
    %p84 = scmp.eq.s32.totalorder %s20, 1
    %p85 = por %p83, %p84
    %p87 = scmp.ne.s32.totalorder %s72, %s86
    %p88 = scmp.eq.s32.totalorder %s20, 0
    %p89 = por %p87, %p88
    %s91 = sadd.s32 %s90, 1
    %p94 = scmp.eq.s32.totalorder %s14, 1
    %p95 = scmp.ne.s32.totalorder %s90, %s92
    %p96 = scmp.eq.s32.totalorder %s14, 0
    %p97 = por %p95, %p96
    %p98 = scmp.ne.s32.totalorder %s90, %s92
    %p99 = scmp.eq.s32.totalorder %s19, 1
    %p100 = por %p98, %p99
    %p101 = scmp.ne.s32.totalorder %s92, %s93
    %p102 = scmp.eq.s32.totalorder %s19, 0
    %p103 = por %p101, %p102
    %p104 = scmp.ne.s32.totalorder %s92, %s93
    %p105 = scmp.eq.s32.totalorder %s20, 1
    %p106 = por %p104, %p105
    %p108 = scmp.ne.s32.totalorder %s93, %s107
    %p109 = scmp.eq.s32.totalorder %s20, 0
    %p110 = por %p108, %p109
    %s112 = sadd.s32 %s111, 1
    %p115 = scmp.eq.s32.totalorder %s14, 1
    %p116 = scmp.ne.s32.totalorder %s111, %s113
    %p117 = scmp.eq.s32.totalorder %s14, 0
    %p118 = por %p116, %p117
    %p119 = scmp.ne.s32.totalorder %s111, %s113
    %p120 = scmp.eq.s32.totalorder %s19, 1
    %p121 = por %p119, %p120
    %p122 = scmp.ne.s32.totalorder %s113, %s114
    %p123 = scmp.eq.s32.totalorder %s19, 0
    %p124 = por %p122, %p123
    %p125 = scmp.ne.s32.totalorder %s113, %s114
    %p126 = scmp.eq.s32.totalorder %s20, 1
    %p127 = por %p125, %p126
    %p129 = scmp.ne.s32.totalorder %s114, %s128
    %p130 = scmp.eq.s32.totalorder %s20, 0
    %p131 = por %p129, %p130
    %s133 = sadd.s32 %s132, 1
    %p136 = scmp.eq.s32.totalorder %s14, 1
    %p137 = scmp.ne.s32.totalorder %s132, %s134
    %p138 = scmp.eq.s32.totalorder %s14, 0
    %p139 = por %p137, %p138
    %p140 = scmp.ne.s32.totalorder %s132, %s134
    %p141 = scmp.eq.s32.totalorder %s19, 1
    %p142 = por %p140, %p141
    %p143 = scmp.ne.s32.totalorder %s134, %s135
    %p144 = scmp.eq.s32.totalorder %s19, 0
    %p145 = por %p143, %p144
    %p146 = scmp.ne.s32.totalorder %s134, %s135
    %p147 = scmp.eq.s32.totalorder %s20, 1
    %p148 = por %p146, %p147
    %p150 = scmp.ne.s32.totalorder %s135, %s149
    %p151 = scmp.eq.s32.totalorder %s20, 0
    %p152 = por %p150, %p151
    %s154 = sadd.s32 %s153, 1
    %p157 = scmp.eq.s32.totalorder %s14, 1
    %p158 = scmp.ne.s32.totalorder %s153, %s155
    %p159 = scmp.eq.s32.totalorder %s14, 0
    %p160 = por %p158, %p159
    %p161 = scmp.ne.s32.totalorder %s153, %s155
    %p162 = scmp.eq.s32.totalorder %s19, 1
    %p163 = por %p161, %p162
    %p164 = scmp.ne.s32.totalorder %s155, %s156
    %p165 = scmp.eq.s32.totalorder %s19, 0
    %p166 = por %p164, %p165
    %p167 = scmp.ne.s32.totalorder %s155, %s156
    %p168 = scmp.eq.s32.totalorder %s20, 1
    %p169 = por %p167, %p168
    %p171 = scmp.ne.s32.totalorder %s156, %s170
    %p172 = scmp.eq.s32.totalorder %s20, 0
    %p173 = por %p171, %p172
    %s175 = sadd.s32 %s174, 1
    %p178 = scmp.eq.s32.totalorder %s14, 1
    %p179 = scmp.ne.s32.totalorder %s174, %s176
    %p180 = scmp.eq.s32.totalorder %s14, 0
    %p181 = por %p179, %p180
    %p182 = scmp.ne.s32.totalorder %s174, %s176
    %p183 = scmp.eq.s32.totalorder %s19, 1
    %p184 = por %p182, %p183
    %p185 = scmp.ne.s32.totalorder %s176, %s177
    %p186 = scmp.eq.s32.totalorder %s19, 0
    %p187 = por %p185, %p186
    %p188 = scmp.ne.s32.totalorder %s176, %s177
    %p189 = scmp.eq.s32.totalorder %s20, 1
    %p190 = por %p188, %p189
    %p192 = scmp.ne.s32.totalorder %s177, %s191
    %p193 = scmp.eq.s32.totalorder %s20, 0
    %p194 = por %p192, %p193
    %s195 = ssub.s32 %s14, %s21
    %p196 = scmp.eq.s32.totalorder %s195, 0
    %s198 = sadd.s32 %s197, 1
    %s199 = scalar_select %p196, %s197, %s198
    %p202 = pneg %p196
    %p203 = scmp.eq.s32.totalorder %s14, 1
    %p204 = por %p202, %p203
    %p205 = scmp.ne.s32.totalorder %s197, %s200
    %p206 = scmp.eq.s32.totalorder %s14, 0
    %p207 = por %p205, %p206
    %p208 = scmp.ne.s32.totalorder %s197, %s200
    %p209 = scmp.eq.s32.totalorder %s19, 1
    %p210 = por %p208, %p209
    %p211 = scmp.ne.s32.totalorder %s200, %s201
    %p212 = scmp.eq.s32.totalorder %s19, 0
    %p213 = por %p211, %p212
    %p214 = scmp.ne.s32.totalorder %s200, %s201
    %p215 = scmp.eq.s32.totalorder %s20, 1
    %p216 = por %p214, %p215
    %p218 = scmp.ne.s32.totalorder %s201, %s217
    %p219 = scmp.eq.s32.totalorder %s20, 0
    %p220 = por %p218, %p219
    %p221 = scmp.le.s32.totalorder 1, %s14
    %p222 = scmp.lt.s32.totalorder %s14, 3
    %p223 = pnand %p221, %p222
    %p224 = pneg %p223
    // Predicated region
    $region9: #{tpu_custom_call.1} parent=5 // pred_check
      _
    $region10: #{tpu_custom_call.1} parent=5 // pred_check_branch
      %226 = sbr.rel (%p223) target = $region12
    $region11: #{tpu_custom_call.1} parent=5 // pred_region
      %s227 = ssub.s32 %s14, 1
      // Predicated region
      $region13: #{tpu_custom_call.1} parent=11 // pred_check
        %p228 = pneg %p61
      $region14: #{tpu_custom_call.1} parent=11 // pred_check_branch
        %230 = sbr.rel (%p228) target = $region16
      $region15: #{tpu_custom_call.1} parent=11 // pred_region
        _
      $region16: #{tpu_custom_call.1} parent=11 // pred_fallthru
        _
      // Predicated region
      $region17: #{tpu_custom_call.1} parent=11 // pred_check
        %p231 = pneg %p82
      $region18: #{tpu_custom_call.1} parent=11 // pred_check_branch
        %233 = sbr.rel (%p231) target = $region20
      $region19: #{tpu_custom_call.1} parent=11 // pred_region
        _
      $region20: #{tpu_custom_call.1} parent=11 // pred_fallthru
        _
      // Predicated region
      $region21: #{tpu_custom_call.1} parent=11 // pred_check
        %p234 = pneg %p103
      $region22: #{tpu_custom_call.1} parent=11 // pred_check_branch
        %236 = sbr.rel (%p234) target = $region24
      $region23: #{tpu_custom_call.1} parent=11 // pred_region
        _
      $region24: #{tpu_custom_call.1} parent=11 // pred_fallthru
        _
      // Predicated region
      $region25: #{tpu_custom_call.1} parent=11 // pred_check
        %p237 = pneg %p124
      $region26: #{tpu_custom_call.1} parent=11 // pred_check_branch
        %239 = sbr.rel (%p237) target = $region28
      $region27: #{tpu_custom_call.1} parent=11 // pred_region
        _
      $region28: #{tpu_custom_call.1} parent=11 // pred_fallthru
        _
      // Predicated region
      $region29: #{tpu_custom_call.1} parent=11 // pred_check
        %p240 = pneg %p145
      $region30: #{tpu_custom_call.1} parent=11 // pred_check_branch
        %242 = sbr.rel (%p240) target = $region32
      $region31: #{tpu_custom_call.1} parent=11 // pred_region
        _
      $region32: #{tpu_custom_call.1} parent=11 // pred_fallthru
        _
      // Predicated region
      $region33: #{tpu_custom_call.1} parent=11 // pred_check
        %p243 = pneg %p166
      $region34: #{tpu_custom_call.1} parent=11 // pred_check_branch
        %245 = sbr.rel (%p243) target = $region36
      $region35: #{tpu_custom_call.1} parent=11 // pred_region
        _
      $region36: #{tpu_custom_call.1} parent=11 // pred_fallthru
        _
      // Predicated region
      $region37: #{tpu_custom_call.1} parent=11 // pred_check
        %p246 = pneg %p187
      $region38: #{tpu_custom_call.1} parent=11 // pred_check_branch
        %248 = sbr.rel (%p246) target = $region40
      $region39: #{tpu_custom_call.1} parent=11 // pred_region
        _
      $region40: #{tpu_custom_call.1} parent=11 // pred_fallthru
        _
    $region12: #{tpu_custom_call.1} parent=5 // pred_fallthru
      _
    %p249 = scmp.lt.s32.totalorder %s14, 2
    // Predicated region
    $region41: #{tpu_custom_call.1} parent=5 // pred_check
      %p250 = pneg %p249
    $region42: #{tpu_custom_call.1} parent=5 // pred_check_branch
      %252 = sbr.rel (%p250) target = $region44
    $region43: #{tpu_custom_call.1} parent=5 // pred_region
      // Predicated region
      $region45: #{tpu_custom_call.1} parent=43 // pred_check
        %p253 = pneg %p34
      $region46: #{tpu_custom_call.1} parent=43 // pred_check_branch
        %255 = sbr.rel (%p253) target = $region48
      $region47: #{tpu_custom_call.1} parent=43 // pred_region
        %p256 = scmp.lt.s32.totalorder %s14, 1
        %s257 = scalar_select %p256, %s14, 1
        %s258 = smul.addr %s257, 32
        %s259 = smul.addr %s258, 8
        %s260 = scalar_lea.vmem %s0, %s259
      $region48: #{tpu_custom_call.1} parent=43 // pred_fallthru
        _
    $region44: #{tpu_custom_call.1} parent=5 // pred_fallthru
      _
    %p261 = scmp.le.s32.totalorder 1, %s14
    %p262 = scmp.lt.s32.totalorder %s14, 3
    %p263 = pnand %p261, %p262
    %p264 = pneg %p263
    // Predicated region
    $region49: #{tpu_custom_call.1} parent=5 // pred_check
      _
    $region50: #{tpu_custom_call.1} parent=5 // pred_check_branch
      %266 = sbr.rel (%p263) target = $region52
    $region51: #{tpu_custom_call.1} parent=5 // pred_region
      %s267 = ssub.s32 %s14, 1
      %p268 = scmp.lt.s32.totalorder %s19, 1
      %s269 = scalar_select %p268, %s19, 1
      %s270 = smul.addr %s269, 32
      %s271 = smul.addr %s270, 8
      %s272 = scalar_lea.vmem %s0, %s271
      %p273 = pneg %p40
      %p274 = pneg %p37
      %p275 = pneg %p61
      %p276 = pneg %p58
      %p277 = pneg %p82
      %p278 = pneg %p79
      %p279 = pneg %p103
      %p280 = pneg %p100
      %p281 = pneg %p124
      %p282 = pneg %p121
      %p283 = pneg %p145
      %p284 = pneg %p142
      %p285 = pneg %p166
      %p286 = pneg %p163
      %p287 = pneg %p187
      %p288 = pneg %p184
      %p289 = pneg %p213
      %p290 = pneg %p210
      %p291 = scmp.lt.s32.totalorder %s19, 1
      %s292 = scalar_select %p291, %s19, 1
      %s293 = smul.addr %s292, 32
      %s294 = smul.addr %s293, 8
      %s295 = scalar_lea.vmem %s8, %s294
      %p296 = scmp.lt.s32.totalorder %s19, 1
      %s297 = scalar_select %p296, %s19, 1
      %s298 = smul.addr %s297, 32
      %s299 = smul.addr %s298, 8
      %s300 = scalar_lea.vmem %s0, %s299
      %p301 = scmp.lt.s32.totalorder %s19, 1
      %s302 = scalar_select %p301, %s19, 1
      %s303 = smul.addr %s302, 32
      %s304 = smul.addr %s303, 8
      %s305 = scalar_lea.vmem %s8, %s304
      %v306 = vld [vmem:[%s300] sm:$0xff]
      %v307 = vld [vmem:[%s300 + $0x8] sm:$0xff]
      %v308 = vld [vmem:[%s300 + $0x10] sm:$0xff]
      %v309 = vld [vmem:[%s300 + $0x18] sm:$0xff]
      %v310 = vld [vmem:[%s300 + $0x20] sm:$0xff]
      %v311 = vld [vmem:[%s300 + $0x28] sm:$0xff]
      %v312 = vld [vmem:[%s300 + $0x30] sm:$0xff]
      %v313 = vld [vmem:[%s300 + $0x38] sm:$0xff]
      %v314 = vld [vmem:[%s300 + $0x40] sm:$0xff]
      %v315 = vld [vmem:[%s300 + $0x48] sm:$0xff]
      %v316 = vld [vmem:[%s300 + $0x50] sm:$0xff]
      %v317 = vld [vmem:[%s300 + $0x58] sm:$0xff]
      %v318 = vld [vmem:[%s300 + $0x60] sm:$0xff]
      %v319 = vld [vmem:[%s300 + $0x68] sm:$0xff]
      %v320 = vld [vmem:[%s300 + $0x70] sm:$0xff]
      %v321 = vld [vmem:[%s300 + $0x78] sm:$0xff]
      %v322 = vld [vmem:[%s300 + $0x80] sm:$0xff]
      %v323 = vld [vmem:[%s300 + $0x88] sm:$0xff]
      %v324 = vld [vmem:[%s300 + $0x90] sm:$0xff]
      %v325 = vld [vmem:[%s300 + $0x98] sm:$0xff]
      %v326 = vld [vmem:[%s300 + $0xa0] sm:$0xff]
      %v327 = vld [vmem:[%s300 + $0xa8] sm:$0xff]
      %v328 = vld [vmem:[%s300 + $0xb0] sm:$0xff]
      %v329 = vld [vmem:[%s300 + $0xb8] sm:$0xff]
      %v330 = vld [vmem:[%s300 + $0xc0] sm:$0xff]
      %v331 = vld [vmem:[%s300 + $0xc8] sm:$0xff]
      %v332 = vld [vmem:[%s300 + $0xd0] sm:$0xff]
      %v333 = vld [vmem:[%s300 + $0xd8] sm:$0xff]
      %v334 = vld [vmem:[%s300 + $0xe0] sm:$0xff]
      %v335 = vld [vmem:[%s300 + $0xe8] sm:$0xff]
      %v336 = vld [vmem:[%s300 + $0xf0] sm:$0xff]
      %v337 = vld [vmem:[%s300 + $0xf8] sm:$0xff]
      %v338 = vld [vmem:[%s1] sm:$0xff]
      %v339 = vld [vmem:[%s2] sm:$0x1]
      %v341 = vlaneseq
      %v342 = vshrl.u32 %v341, 7
      %v343 = vsub.s32 0, %v342
      %v344 = vrot.slane %v339, %v343
      %vm346 = vcmask 64512
      %v348 = vsel %vm346, %v306, 0
      %v351 = vsel %vm346, %v307, 0
      %v354 = vsel %vm346, %v308, 0
      %v357 = vsel %vm346, %v309, 0
      %v360 = vsel %vm346, %v310, 0
      %v363 = vsel %vm346, %v311, 0
      %v366 = vsel %vm346, %v312, 0
      %v369 = vsel %vm346, %v313, 0
      %v372 = vsel %vm346, %v314, 0
      %v375 = vsel %vm346, %v315, 0
      %v378 = vsel %vm346, %v316, 0
      %v381 = vsel %vm346, %v317, 0
      %v384 = vsel %vm346, %v318, 0
      %v387 = vsel %vm346, %v319, 0
      %v390 = vsel %vm346, %v320, 0
      %v393 = vsel %vm346, %v321, 0
      %v396 = vsel %vm346, %v322, 0
      %v399 = vsel %vm346, %v323, 0
      %v402 = vsel %vm346, %v324, 0
      %v405 = vsel %vm346, %v325, 0
      %v408 = vsel %vm346, %v326, 0
      %v411 = vsel %vm346, %v327, 0
      %v414 = vsel %vm346, %v328, 0
      %v417 = vsel %vm346, %v329, 0
      %v420 = vsel %vm346, %v330, 0
      %v423 = vsel %vm346, %v331, 0
      %v426 = vsel %vm346, %v332, 0
      %v429 = vsel %vm346, %v333, 0
      %v432 = vsel %vm346, %v334, 0
      %v435 = vsel %vm346, %v335, 0
      %v438 = vsel %vm346, %v336, 0
      %v441 = vsel %vm346, %v337, 0
      %443 = vmatprep.subr.mxu0 0.0
      %444 = vmatpush1.msra.mxu0 %v338
      %445 = vmatprep.subr.mxu0 0.0
      %446 = vmatpush1.msra.mxu0 0.0
      %447 = vmatprep.subr.mxu0 0.0
      %448 = vmatpush1.msra.mxu0 0.0
      %449 = vmatprep.subr.mxu0 0.0
      %450 = vmatpush1.msra.mxu0 0.0
      %451 = vmatprep.subr.mxu0 0.0
      %452 = vmatpush1.msra.mxu0 0.0
      %453 = vmatprep.subr.mxu0 0.0
      %454 = vmatpush1.msra.mxu0 0.0
      %455 = vmatprep.subr.mxu0 0.0
      %456 = vmatpush1.msra.mxu0 0.0
      %457 = vmatprep.subr.mxu0 0.0
      %458 = vmatpush1.msra.mxu0 0.0
      %459 = vmatprep.subr.mxu0 0.0
      %460 = vmatpush1.msra.mxu0 0.0
      %461 = vmatprep.subr.mxu0 0.0
      %462 = vmatpush1.msra.mxu0 0.0
      %463 = vmatprep.subr.mxu0 0.0
      %464 = vmatpush1.msra.mxu0 0.0
      %465 = vmatprep.subr.mxu0 0.0
      %466 = vmatpush1.msra.mxu0 0.0
      %467 = vmatprep.subr.mxu0 0.0
      %468 = vmatpush1.msra.mxu0 0.0
      %469 = vmatprep.subr.mxu0 0.0
      %470 = vmatpush1.msra.mxu0 0.0
      %471 = vmatprep.subr.mxu0 0.0
      %472 = vmatpush1.msra.mxu0 0.0
      %473 = vmatprep.subr.mxu0 0.0
      %474 = vmatpush1.msra.mxu0 0.0
      %475 = vmatprep.subr.mxu0 0.0
      %476 = vmatpush1.msra.mxu0 0.0
      %477 = vmatprep.subr.mxu0 0.0
      %478 = vmatpush1.msra.mxu0 0.0
      %479 = vmatprep.subr.mxu0 0.0
      %480 = vmatpush1.msra.mxu0 0.0
      %481 = vmatprep.subr.mxu0 0.0
      %482 = vmatpush1.msra.mxu0 0.0
      %483 = vmatprep.subr.mxu0 0.0
      %484 = vmatpush1.msra.mxu0 0.0
      %485 = vmatprep.subr.mxu0 0.0
      %486 = vmatpush1.msra.mxu0 0.0
      %487 = vmatprep.subr.mxu0 0.0
      %488 = vmatpush1.msra.mxu0 0.0
      %489 = vmatprep.subr.mxu0 0.0
      %490 = vmatpush1.msra.mxu0 0.0
      %491 = vmatprep.subr.mxu0 0.0
      %492 = vmatpush1.msra.mxu0 0.0
      %493 = vmatprep.subr.mxu0 0.0
      %494 = vmatpush1.msra.mxu0 0.0
      %495 = vmatprep.subr.mxu0 0.0
      %496 = vmatpush1.msra.mxu0 0.0
      %497 = vmatprep.subr.mxu0 0.0
      %498 = vmatpush1.msra.mxu0 0.0
      %499 = vmatprep.subr.mxu0 0.0
      %500 = vmatpush1.msra.mxu0 0.0
      %501 = vmatprep.subr.mxu0 0.0
      %502 = vmatpush1.msra.mxu0 0.0
      %503 = vmatprep.subr.mxu0 0.0
      %504 = vmatpush1.msra.mxu0 0.0
      %505 = vmatprep.subr.mxu0 0.0
      %506 = vmatpush1.msra.mxu0 0.0
      %507 = vmatprep.mubr.f32.mxu0 0.0
      %508 = vmatmul.mubr.f32.gmra.mrb[0].mxu0 %v348
      %v509 = vpop.f32.mrb[0].mxu0
      %v510 = vadd.f32 %v344, %v509
      %v511 = vpop.f32.mrb[0].mxu0
      %512 = vmatprep.mubr.f32.mxu0 0.0
      %513 = vmatmul.mubr.f32.gmra.mrb[0].mxu0 %v351
      %v514 = vpop.f32.mrb[0].mxu0
      %v515 = vadd.f32 %v344, %v514
      %v516 = vpop.f32.mrb[0].mxu0
      %517 = vmatprep.mubr.f32.mxu0 0.0
      %518 = vmatmul.mubr.f32.gmra.mrb[0].mxu0 %v354
      %v519 = vpop.f32.mrb[0].mxu0
      %v520 = vadd.f32 %v344, %v519
      %v521 = vpop.f32.mrb[0].mxu0
      %522 = vmatprep.mubr.f32.mxu0 0.0
      %523 = vmatmul.mubr.f32.gmra.mrb[0].mxu0 %v357
      %v524 = vpop.f32.mrb[0].mxu0
      %v525 = vadd.f32 %v344, %v524
      %v526 = vpop.f32.mrb[0].mxu0
      %527 = vmatprep.mubr.f32.mxu0 0.0
      %528 = vmatmul.mubr.f32.gmra.mrb[0].mxu0 %v360
      %v529 = vpop.f32.mrb[0].mxu0
      %v530 = vadd.f32 %v344, %v529
      %v531 = vpop.f32.mrb[0].mxu0
      %532 = vmatprep.mubr.f32.mxu0 0.0
      %533 = vmatmul.mubr.f32.gmra.mrb[0].mxu0 %v363
      %v534 = vpop.f32.mrb[0].mxu0
      %v535 = vadd.f32 %v344, %v534
      %v536 = vpop.f32.mrb[0].mxu0
      %537 = vmatprep.mubr.f32.mxu0 0.0
      %538 = vmatmul.mubr.f32.gmra.mrb[0].mxu0 %v366
      %v539 = vpop.f32.mrb[0].mxu0
      %v540 = vadd.f32 %v344, %v539
      %v541 = vpop.f32.mrb[0].mxu0
      %542 = vmatprep.mubr.f32.mxu0 0.0
      %543 = vmatmul.mubr.f32.gmra.mrb[0].mxu0 %v369
      %v544 = vpop.f32.mrb[0].mxu0
      %v545 = vadd.f32 %v344, %v544
      %v546 = vpop.f32.mrb[0].mxu0
      %547 = vmatprep.mubr.f32.mxu0 0.0
      %548 = vmatmul.mubr.f32.gmra.mrb[0].mxu0 %v372
      %v549 = vpop.f32.mrb[0].mxu0
      %v550 = vadd.f32 %v344, %v549
      %v551 = vpop.f32.mrb[0].mxu0
      %552 = vmatprep.mubr.f32.mxu0 0.0
      %553 = vmatmul.mubr.f32.gmra.mrb[0].mxu0 %v375
      %v554 = vpop.f32.mrb[0].mxu0
      %v555 = vadd.f32 %v344, %v554
      %v556 = vpop.f32.mrb[0].mxu0
      %557 = vmatprep.mubr.f32.mxu0 0.0
      %558 = vmatmul.mubr.f32.gmra.mrb[0].mxu0 %v378
      %v559 = vpop.f32.mrb[0].mxu0
      %v560 = vadd.f32 %v344, %v559
      %v561 = vpop.f32.mrb[0].mxu0
      %562 = vmatprep.mubr.f32.mxu0 0.0
      %563 = vmatmul.mubr.f32.gmra.mrb[0].mxu0 %v381
      %v564 = vpop.f32.mrb[0].mxu0
      %v565 = vadd.f32 %v344, %v564
      %v566 = vpop.f32.mrb[0].mxu0
      %567 = vmatprep.mubr.f32.mxu0 0.0
      %568 = vmatmul.mubr.f32.gmra.mrb[0].mxu0 %v384
      %v569 = vpop.f32.mrb[0].mxu0
      %v570 = vadd.f32 %v344, %v569
      %v571 = vpop.f32.mrb[0].mxu0
      %572 = vmatprep.mubr.f32.mxu0 0.0
      %573 = vmatmul.mubr.f32.gmra.mrb[0].mxu0 %v387
      %v574 = vpop.f32.mrb[0].mxu0
      %v575 = vadd.f32 %v344, %v574
      %v576 = vpop.f32.mrb[0].mxu0
      %577 = vmatprep.mubr.f32.mxu0 0.0
      %578 = vmatmul.mubr.f32.gmra.mrb[0].mxu0 %v390
      %v579 = vpop.f32.mrb[0].mxu0
      %v580 = vadd.f32 %v344, %v579
      %v581 = vpop.f32.mrb[0].mxu0
      %582 = vmatprep.mubr.f32.mxu0 0.0
      %583 = vmatmul.mubr.f32.gmra.mrb[0].mxu0 %v393
      %v584 = vpop.f32.mrb[0].mxu0
      %v585 = vadd.f32 %v344, %v584
      %v586 = vpop.f32.mrb[0].mxu0
      %587 = vmatprep.mubr.f32.mxu0 0.0
      %588 = vmatmul.mubr.f32.gmra.mrb[0].mxu0 %v396
      %v589 = vpop.f32.mrb[0].mxu0
      %v590 = vadd.f32 %v344, %v589
      %v591 = vpop.f32.mrb[0].mxu0
      %592 = vmatprep.mubr.f32.mxu0 0.0
      %593 = vmatmul.mubr.f32.gmra.mrb[0].mxu0 %v399
      %v594 = vpop.f32.mrb[0].mxu0
      %v595 = vadd.f32 %v344, %v594
      %v596 = vpop.f32.mrb[0].mxu0
      %597 = vmatprep.mubr.f32.mxu0 0.0
      %598 = vmatmul.mubr.f32.gmra.mrb[0].mxu0 %v402
      %v599 = vpop.f32.mrb[0].mxu0
      %v600 = vadd.f32 %v344, %v599
      %v601 = vpop.f32.mrb[0].mxu0
      %602 = vmatprep.mubr.f32.mxu0 0.0
      %603 = vmatmul.mubr.f32.gmra.mrb[0].mxu0 %v405
      %v604 = vpop.f32.mrb[0].mxu0
      %v605 = vadd.f32 %v344, %v604
      %v606 = vpop.f32.mrb[0].mxu0
      %607 = vmatprep.mubr.f32.mxu0 0.0
      %608 = vmatmul.mubr.f32.gmra.mrb[0].mxu0 %v408
      %v609 = vpop.f32.mrb[0].mxu0
      %v610 = vadd.f32 %v344, %v609
      %v611 = vpop.f32.mrb[0].mxu0
      %612 = vmatprep.mubr.f32.mxu0 0.0
      %613 = vmatmul.mubr.f32.gmra.mrb[0].mxu0 %v411
      %v614 = vpop.f32.mrb[0].mxu0
      %v615 = vadd.f32 %v344, %v614
      %v616 = vpop.f32.mrb[0].mxu0
      %617 = vmatprep.mubr.f32.mxu0 0.0
      %618 = vmatmul.mubr.f32.gmra.mrb[0].mxu0 %v414
      %v619 = vpop.f32.mrb[0].mxu0
      %v620 = vadd.f32 %v344, %v619
      %v621 = vpop.f32.mrb[0].mxu0
      %622 = vmatprep.mubr.f32.mxu0 0.0
      %623 = vmatmul.mubr.f32.gmra.mrb[0].mxu0 %v417
      %v624 = vpop.f32.mrb[0].mxu0
      %v625 = vadd.f32 %v344, %v624
      %v626 = vpop.f32.mrb[0].mxu0
      %627 = vmatprep.mubr.f32.mxu0 0.0
      %628 = vmatmul.mubr.f32.gmra.mrb[0].mxu0 %v420
      %v629 = vpop.f32.mrb[0].mxu0
      %v630 = vadd.f32 %v344, %v629
      %v631 = vpop.f32.mrb[0].mxu0
      %632 = vmatprep.mubr.f32.mxu0 0.0
      %633 = vmatmul.mubr.f32.gmra.mrb[0].mxu0 %v423
      %v634 = vpop.f32.mrb[0].mxu0
      %v635 = vadd.f32 %v344, %v634
      %v636 = vpop.f32.mrb[0].mxu0
      %637 = vmatprep.mubr.f32.mxu0 0.0
      %638 = vmatmul.mubr.f32.gmra.mrb[0].mxu0 %v426
      %v639 = vpop.f32.mrb[0].mxu0
      %v640 = vadd.f32 %v344, %v639
      %v641 = vpop.f32.mrb[0].mxu0
      %642 = vmatprep.mubr.f32.mxu0 0.0
      %643 = vmatmul.mubr.f32.gmra.mrb[0].mxu0 %v429
      %v644 = vpop.f32.mrb[0].mxu0
      %v645 = vadd.f32 %v344, %v644
      %v646 = vpop.f32.mrb[0].mxu0
      %647 = vmatprep.mubr.f32.mxu0 0.0
      %648 = vmatmul.mubr.f32.gmra.mrb[0].mxu0 %v432
      %v649 = vpop.f32.mrb[0].mxu0
      %v650 = vadd.f32 %v344, %v649
      %v651 = vpop.f32.mrb[0].mxu0
      %652 = vmatprep.mubr.f32.mxu0 0.0
      %653 = vmatmul.mubr.f32.gmra.mrb[0].mxu0 %v435
      %v654 = vpop.f32.mrb[0].mxu0
      %v655 = vadd.f32 %v344, %v654
      %v656 = vpop.f32.mrb[0].mxu0
      %657 = vmatprep.mubr.f32.mxu0 0.0
      %658 = vmatmul.mubr.f32.gmra.mrb[0].mxu0 %v438
      %v659 = vpop.f32.mrb[0].mxu0
      %v660 = vadd.f32 %v344, %v659
      %v661 = vpop.f32.mrb[0].mxu0
      %662 = vmatprep.mubr.f32.mxu0 0.0
      %663 = vmatmul.mubr.f32.gmra.mrb[0].mxu0 %v441
      %v664 = vpop.f32.mrb[0].mxu0
      %v665 = vadd.f32 %v344, %v664
      %v666 = vpop.f32.mrb[0].mxu0
      %667 = vdwg.mxu0
      %v668 = vxor.u32 %v510, 2147483648
      %v669 = vxor.u32 %v515, 2147483648
      %v670 = vxor.u32 %v520, 2147483648
      %v671 = vxor.u32 %v525, 2147483648
      %v672 = vxor.u32 %v530, 2147483648
      %v673 = vxor.u32 %v535, 2147483648
      %v674 = vxor.u32 %v540, 2147483648
      %v675 = vxor.u32 %v545, 2147483648
      %v676 = vxor.u32 %v550, 2147483648
      %v677 = vxor.u32 %v555, 2147483648
      %v678 = vxor.u32 %v560, 2147483648
      %v679 = vxor.u32 %v565, 2147483648
      %v680 = vxor.u32 %v570, 2147483648
      %v681 = vxor.u32 %v575, 2147483648
      %v682 = vxor.u32 %v580, 2147483648
      %v683 = vxor.u32 %v585, 2147483648
      %v684 = vxor.u32 %v590, 2147483648
      %v685 = vxor.u32 %v595, 2147483648
      %v686 = vxor.u32 %v600, 2147483648
      %v687 = vxor.u32 %v605, 2147483648
      %v688 = vxor.u32 %v610, 2147483648
      %v689 = vxor.u32 %v615, 2147483648
      %v690 = vxor.u32 %v620, 2147483648
      %v691 = vxor.u32 %v625, 2147483648
      %v692 = vxor.u32 %v630, 2147483648
      %v693 = vxor.u32 %v635, 2147483648
      %v694 = vxor.u32 %v640, 2147483648
      %v695 = vxor.u32 %v645, 2147483648
      %v696 = vxor.u32 %v650, 2147483648
      %v697 = vxor.u32 %v655, 2147483648
      %v698 = vxor.u32 %v660, 2147483648
      %v699 = vxor.u32 %v665, 2147483648
      %v700 = vmul.f32 %v668, 1.442695
      %v701 = vpow.pop %v700
      %v702 = vmul.f32 %v669, 1.442695
      %v703 = vpow.pop %v702
      %v704 = vmul.f32 %v670, 1.442695
      %v705 = vpow.pop %v704
      %v706 = vmul.f32 %v671, 1.442695
      %v707 = vpow.pop %v706
      %v708 = vmul.f32 %v672, 1.442695
      %v709 = vpow.pop %v708
      %v710 = vmul.f32 %v673, 1.442695
      %v711 = vpow.pop %v710
      %v712 = vmul.f32 %v674, 1.442695
      %v713 = vpow.pop %v712
      %v714 = vmul.f32 %v675, 1.442695
      %v715 = vpow.pop %v714
      %v716 = vmul.f32 %v676, 1.442695
      %v717 = vpow.pop %v716
      %v718 = vmul.f32 %v677, 1.442695
      %v719 = vpow.pop %v718
      %v720 = vmul.f32 %v678, 1.442695
      %v721 = vpow.pop %v720
      %v722 = vmul.f32 %v679, 1.442695
      %v723 = vpow.pop %v722
      %v724 = vmul.f32 %v680, 1.442695
      %v725 = vpow.pop %v724
      %v726 = vmul.f32 %v681, 1.442695
      %v727 = vpow.pop %v726
      %v728 = vmul.f32 %v682, 1.442695
      %v729 = vpow.pop %v728
      %v730 = vmul.f32 %v683, 1.442695
      %v731 = vpow.pop %v730
      %v732 = vmul.f32 %v684, 1.442695
      %v733 = vpow.pop %v732
      %v734 = vmul.f32 %v685, 1.442695
      %v735 = vpow.pop %v734
      %v736 = vmul.f32 %v686, 1.442695
      %v737 = vpow.pop %v736
      %v738 = vmul.f32 %v687, 1.442695
      %v739 = vpow.pop %v738
      %v740 = vmul.f32 %v688, 1.442695
      %v741 = vpow.pop %v740
      %v742 = vmul.f32 %v689, 1.442695
      %v743 = vpow.pop %v742
      %v744 = vmul.f32 %v690, 1.442695
      %v745 = vpow.pop %v744
      %v746 = vmul.f32 %v691, 1.442695
      %v747 = vpow.pop %v746
      %v748 = vmul.f32 %v692, 1.442695
      %v749 = vpow.pop %v748
      %v750 = vmul.f32 %v693, 1.442695
      %v751 = vpow.pop %v750
      %v752 = vmul.f32 %v694, 1.442695
      %v753 = vpow.pop %v752
      %v754 = vmul.f32 %v695, 1.442695
      %v755 = vpow.pop %v754
      %v756 = vmul.f32 %v696, 1.442695
      %v757 = vpow.pop %v756
      %v758 = vmul.f32 %v697, 1.442695
      %v759 = vpow.pop %v758
      %v760 = vmul.f32 %v698, 1.442695
      %v761 = vpow.pop %v760
      %v762 = vmul.f32 %v699, 1.442695
      %v763 = vpow.pop %v762
      %v764 = vadd.f32 %v701, 1.0
      %v765 = vadd.f32 %v703, 1.0
      %v766 = vadd.f32 %v705, 1.0
      %v767 = vadd.f32 %v707, 1.0
      %v768 = vadd.f32 %v709, 1.0
      %v769 = vadd.f32 %v711, 1.0
      %v770 = vadd.f32 %v713, 1.0
      %v771 = vadd.f32 %v715, 1.0
      %v772 = vadd.f32 %v717, 1.0
      %v773 = vadd.f32 %v719, 1.0
      %v774 = vadd.f32 %v721, 1.0
      %v775 = vadd.f32 %v723, 1.0
      %v776 = vadd.f32 %v725, 1.0
      %v777 = vadd.f32 %v727, 1.0
      %v778 = vadd.f32 %v729, 1.0
      %v779 = vadd.f32 %v731, 1.0
      %v780 = vadd.f32 %v733, 1.0
      %v781 = vadd.f32 %v735, 1.0
      %v782 = vadd.f32 %v737, 1.0
      %v783 = vadd.f32 %v739, 1.0
      %v784 = vadd.f32 %v741, 1.0
      %v785 = vadd.f32 %v743, 1.0
      %v786 = vadd.f32 %v745, 1.0
      %v787 = vadd.f32 %v747, 1.0
      %v788 = vadd.f32 %v749, 1.0
      %v789 = vadd.f32 %v751, 1.0
      %v790 = vadd.f32 %v753, 1.0
      %v791 = vadd.f32 %v755, 1.0
      %v792 = vadd.f32 %v757, 1.0
      %v793 = vadd.f32 %v759, 1.0
      %v794 = vadd.f32 %v761, 1.0
      %v795 = vadd.f32 %v763, 1.0
      %v796 = vrcp.pop %v764
      %v797 = vmul.f32 1.0, %v796
      %v798 = vrcp.pop %v765
      %v799 = vmul.f32 1.0, %v798
      %v800 = vrcp.pop %v766
      %v801 = vmul.f32 1.0, %v800
      %v802 = vrcp.pop %v767
      %v803 = vmul.f32 1.0, %v802
      %v804 = vrcp.pop %v768
      %v805 = vmul.f32 1.0, %v804
      %v806 = vrcp.pop %v769
      %v807 = vmul.f32 1.0, %v806
      %v808 = vrcp.pop %v770
      %v809 = vmul.f32 1.0, %v808
      %v810 = vrcp.pop %v771
      %v811 = vmul.f32 1.0, %v810
      %v812 = vrcp.pop %v772
      %v813 = vmul.f32 1.0, %v812
      %v814 = vrcp.pop %v773
      %v815 = vmul.f32 1.0, %v814
      %v816 = vrcp.pop %v774
      %v817 = vmul.f32 1.0, %v816
      %v818 = vrcp.pop %v775
      %v819 = vmul.f32 1.0, %v818
      %v820 = vrcp.pop %v776
      %v821 = vmul.f32 1.0, %v820
      %v822 = vrcp.pop %v777
      %v823 = vmul.f32 1.0, %v822
      %v824 = vrcp.pop %v778
      %v825 = vmul.f32 1.0, %v824
      %v826 = vrcp.pop %v779
      %v827 = vmul.f32 1.0, %v826
      %v828 = vrcp.pop %v780
      %v829 = vmul.f32 1.0, %v828
      %v830 = vrcp.pop %v781
      %v831 = vmul.f32 1.0, %v830
      %v832 = vrcp.pop %v782
      %v833 = vmul.f32 1.0, %v832
      %v834 = vrcp.pop %v783
      %v835 = vmul.f32 1.0, %v834
      %v836 = vrcp.pop %v784
      %v837 = vmul.f32 1.0, %v836
      %v838 = vrcp.pop %v785
      %v839 = vmul.f32 1.0, %v838
      %v840 = vrcp.pop %v786
      %v841 = vmul.f32 1.0, %v840
      %v842 = vrcp.pop %v787
      %v843 = vmul.f32 1.0, %v842
      %v844 = vrcp.pop %v788
      %v845 = vmul.f32 1.0, %v844
      %v846 = vrcp.pop %v789
      %v847 = vmul.f32 1.0, %v846
      %v848 = vrcp.pop %v790
      %v849 = vmul.f32 1.0, %v848
      %v850 = vrcp.pop %v791
      %v851 = vmul.f32 1.0, %v850
      %v852 = vrcp.pop %v792
      %v853 = vmul.f32 1.0, %v852
      %v854 = vrcp.pop %v793
      %v855 = vmul.f32 1.0, %v854
      %v856 = vrcp.pop %v794
      %v857 = vmul.f32 1.0, %v856
      %v858 = vrcp.pop %v795
      %v859 = vmul.f32 1.0, %v858
      %v860 = vmul.f32 %v510, %v797
      %v861 = vmul.f32 %v515, %v799
      %v862 = vmul.f32 %v520, %v801
      %v863 = vmul.f32 %v525, %v803
      %v864 = vmul.f32 %v530, %v805
      %v865 = vmul.f32 %v535, %v807
      %v866 = vmul.f32 %v540, %v809
      %v867 = vmul.f32 %v545, %v811
      %v868 = vmul.f32 %v550, %v813
      %v869 = vmul.f32 %v555, %v815
      %v870 = vmul.f32 %v560, %v817
      %v871 = vmul.f32 %v565, %v819
      %v872 = vmul.f32 %v570, %v821
      %v873 = vmul.f32 %v575, %v823
      %v874 = vmul.f32 %v580, %v825
      %v875 = vmul.f32 %v585, %v827
      %v876 = vmul.f32 %v590, %v829
      %v877 = vmul.f32 %v595, %v831
      %v878 = vmul.f32 %v600, %v833
      %v879 = vmul.f32 %v605, %v835
      %v880 = vmul.f32 %v610, %v837
      %v881 = vmul.f32 %v615, %v839
      %v882 = vmul.f32 %v620, %v841
      %v883 = vmul.f32 %v625, %v843
      %v884 = vmul.f32 %v630, %v845
      %v885 = vmul.f32 %v635, %v847
      %v886 = vmul.f32 %v640, %v849
      %v887 = vmul.f32 %v645, %v851
      %v888 = vmul.f32 %v650, %v853
      %v889 = vmul.f32 %v655, %v855
      %v890 = vmul.f32 %v660, %v857
      %v891 = vmul.f32 %v665, %v859
      %v892 = vlaneseq
      %v893 = vshrl.u32 %v892, 7
      %v894 = vadd.s32 %v893, 8
      %v895 = vadd.s32 %v893, 16
      %v896 = vadd.s32 %v893, 24
      %v897 = vadd.s32 %v893, 32
      %v898 = vadd.s32 %v893, 40
      %v899 = vadd.s32 %v893, 48
      %v900 = vadd.s32 %v893, 56
      %v901 = vadd.s32 %v893, 64
      %v902 = vadd.s32 %v893, 72
      %v903 = vadd.s32 %v893, 80
      %v904 = vadd.s32 %v893, 88
      %v905 = vadd.s32 %v893, 96
      %v906 = vadd.s32 %v893, 104
      %v907 = vadd.s32 %v893, 112
      %v908 = vadd.s32 %v893, 120
      %v909 = vadd.s32 %v893, 128
      %v910 = vadd.s32 %v893, 136
      %v911 = vadd.s32 %v893, 144
      %v912 = vadd.s32 %v893, 152
      %v913 = vadd.s32 %v893, 160
      %v914 = vadd.s32 %v893, 168
      %v915 = vadd.s32 %v893, 176
      %v916 = vadd.s32 %v893, 184
      %v917 = vadd.s32 %v893, 192
      %v918 = vadd.s32 %v893, 200
      %v919 = vadd.s32 %v893, 208
      %v920 = vadd.s32 %v893, 216
      %v921 = vadd.s32 %v893, 224
      %v922 = vadd.s32 %v893, 232
      %v923 = vadd.s32 %v893, 240
      %v924 = vadd.s32 %v893, 248
      %v925 = vand.u32 %v893, 15
      %v926 = vand.u32 %v894, 15
      %v927 = vand.u32 %v895, 15
      %v928 = vand.u32 %v896, 15
      %v929 = vand.u32 %v897, 15
      %v930 = vand.u32 %v898, 15
      %v931 = vand.u32 %v899, 15
      %v932 = vand.u32 %v900, 15
      %v933 = vand.u32 %v901, 15
      %v934 = vand.u32 %v902, 15
      %v935 = vand.u32 %v903, 15
      %v936 = vand.u32 %v904, 15
      %v937 = vand.u32 %v905, 15
      %v938 = vand.u32 %v906, 15
      %v939 = vand.u32 %v907, 15
      %v940 = vand.u32 %v908, 15
      %v941 = vand.u32 %v909, 15
      %v942 = vand.u32 %v910, 15
      %v943 = vand.u32 %v911, 15
      %v944 = vand.u32 %v912, 15
      %v945 = vand.u32 %v913, 15
      %v946 = vand.u32 %v914, 15
      %v947 = vand.u32 %v915, 15
      %v948 = vand.u32 %v916, 15
      %v949 = vand.u32 %v917, 15
      %v950 = vand.u32 %v918, 15
      %v951 = vand.u32 %v919, 15
      %v952 = vand.u32 %v920, 15
      %v953 = vand.u32 %v921, 15
      %v954 = vand.u32 %v922, 15
      %v955 = vand.u32 %v923, 15
      %v956 = vand.u32 %v924, 15
      %v957 = vshra.s32 %v893, 4
      %v958 = vshra.s32 %v894, 4
      %v959 = vshra.s32 %v895, 4
      %v960 = vshra.s32 %v896, 4
      %v961 = vshra.s32 %v897, 4
      %v962 = vshra.s32 %v898, 4
      %v963 = vshra.s32 %v899, 4
      %v964 = vshra.s32 %v900, 4
      %v965 = vshra.s32 %v901, 4
      %v966 = vshra.s32 %v902, 4
      %v967 = vshra.s32 %v903, 4
      %v968 = vshra.s32 %v904, 4
      %v969 = vshra.s32 %v905, 4
      %v970 = vshra.s32 %v906, 4
      %v971 = vshra.s32 %v907, 4
      %v972 = vshra.s32 %v908, 4
      %v973 = vshra.s32 %v909, 4
      %v974 = vshra.s32 %v910, 4
      %v975 = vshra.s32 %v911, 4
      %v976 = vshra.s32 %v912, 4
      %v977 = vshra.s32 %v913, 4
      %v978 = vshra.s32 %v914, 4
      %v979 = vshra.s32 %v915, 4
      %v980 = vshra.s32 %v916, 4
      %v981 = vshra.s32 %v917, 4
      %v982 = vshra.s32 %v918, 4
      %v983 = vshra.s32 %v919, 4
      %v984 = vshra.s32 %v920, 4
      %v985 = vshra.s32 %v921, 4
      %v986 = vshra.s32 %v922, 4
      %v987 = vshra.s32 %v923, 4
      %v988 = vshra.s32 %v924, 4
      %vm989 = vcmp.lt.s32.totalorder %v925, 15
      %vm990 = vcmp.lt.s32.totalorder %v926, 15
      %vm991 = vcmp.lt.s32.totalorder %v927, 15
      %vm992 = vcmp.lt.s32.totalorder %v928, 15
      %vm993 = vcmp.lt.s32.totalorder %v929, 15
      %vm994 = vcmp.lt.s32.totalorder %v930, 15
      %vm995 = vcmp.lt.s32.totalorder %v931, 15
      %vm996 = vcmp.lt.s32.totalorder %v932, 15
      %vm997 = vcmp.lt.s32.totalorder %v933, 15
      %vm998 = vcmp.lt.s32.totalorder %v934, 15
      %vm999 = vcmp.lt.s32.totalorder %v935, 15
      %vm1000 = vcmp.lt.s32.totalorder %v936, 15
      %vm1001 = vcmp.lt.s32.totalorder %v937, 15
      %vm1002 = vcmp.lt.s32.totalorder %v938, 15
      %vm1003 = vcmp.lt.s32.totalorder %v939, 15
      %vm1004 = vcmp.lt.s32.totalorder %v940, 15
      %vm1005 = vcmp.lt.s32.totalorder %v941, 15
      %vm1006 = vcmp.lt.s32.totalorder %v942, 15
      %vm1007 = vcmp.lt.s32.totalorder %v943, 15
      %vm1008 = vcmp.lt.s32.totalorder %v944, 15
      %vm1009 = vcmp.lt.s32.totalorder %v945, 15
      %vm1010 = vcmp.lt.s32.totalorder %v946, 15
      %vm1011 = vcmp.lt.s32.totalorder %v947, 15
      %vm1012 = vcmp.lt.s32.totalorder %v948, 15
      %vm1013 = vcmp.lt.s32.totalorder %v949, 15
      %vm1014 = vcmp.lt.s32.totalorder %v950, 15
      %vm1015 = vcmp.lt.s32.totalorder %v951, 15
      %vm1016 = vcmp.lt.s32.totalorder %v952, 15
      %vm1017 = vcmp.lt.s32.totalorder %v953, 15
      %vm1018 = vcmp.lt.s32.totalorder %v954, 15
      %vm1019 = vcmp.lt.s32.totalorder %v955, 15
      %vm1020 = vcmp.lt.s32.totalorder %v956, 15
      %vm1021 = vcmp.ge.s32.totalorder %v925, 1
      %vm1022 = vcmp.ge.s32.totalorder %v926, 1
      %vm1023 = vcmp.ge.s32.totalorder %v927, 1
      %vm1024 = vcmp.ge.s32.totalorder %v928, 1
      %vm1025 = vcmp.ge.s32.totalorder %v929, 1
      %vm1026 = vcmp.ge.s32.totalorder %v930, 1
      %vm1027 = vcmp.ge.s32.totalorder %v931, 1
      %vm1028 = vcmp.ge.s32.totalorder %v932, 1
      %vm1029 = vcmp.ge.s32.totalorder %v933, 1
      %vm1030 = vcmp.ge.s32.totalorder %v934, 1
      %vm1031 = vcmp.ge.s32.totalorder %v935, 1
      %vm1032 = vcmp.ge.s32.totalorder %v936, 1
      %vm1033 = vcmp.ge.s32.totalorder %v937, 1
      %vm1034 = vcmp.ge.s32.totalorder %v938, 1
      %vm1035 = vcmp.ge.s32.totalorder %v939, 1
      %vm1036 = vcmp.ge.s32.totalorder %v940, 1
      %vm1037 = vcmp.ge.s32.totalorder %v941, 1
      %vm1038 = vcmp.ge.s32.totalorder %v942, 1
      %vm1039 = vcmp.ge.s32.totalorder %v943, 1
      %vm1040 = vcmp.ge.s32.totalorder %v944, 1
      %vm1041 = vcmp.ge.s32.totalorder %v945, 1
      %vm1042 = vcmp.ge.s32.totalorder %v946, 1
      %vm1043 = vcmp.ge.s32.totalorder %v947, 1
      %vm1044 = vcmp.ge.s32.totalorder %v948, 1
      %vm1045 = vcmp.ge.s32.totalorder %v949, 1
      %vm1046 = vcmp.ge.s32.totalorder %v950, 1
      %vm1047 = vcmp.ge.s32.totalorder %v951, 1
      %vm1048 = vcmp.ge.s32.totalorder %v952, 1
      %vm1049 = vcmp.ge.s32.totalorder %v953, 1
      %vm1050 = vcmp.ge.s32.totalorder %v954, 1
      %vm1051 = vcmp.ge.s32.totalorder %v955, 1
      %vm1052 = vcmp.ge.s32.totalorder %v956, 1
      %vm1053 = vcmp.lt.s32.totalorder %v957, 15
      %vm1054 = vcmp.lt.s32.totalorder %v958, 15
      %vm1055 = vcmp.lt.s32.totalorder %v959, 15
      %vm1056 = vcmp.lt.s32.totalorder %v960, 15
      %vm1057 = vcmp.lt.s32.totalorder %v961, 15
      %vm1058 = vcmp.lt.s32.totalorder %v962, 15
      %vm1059 = vcmp.lt.s32.totalorder %v963, 15
      %vm1060 = vcmp.lt.s32.totalorder %v964, 15
      %vm1061 = vcmp.lt.s32.totalorder %v965, 15
      %vm1062 = vcmp.lt.s32.totalorder %v966, 15
      %vm1063 = vcmp.lt.s32.totalorder %v967, 15
      %vm1064 = vcmp.lt.s32.totalorder %v968, 15
      %vm1065 = vcmp.lt.s32.totalorder %v969, 15
      %vm1066 = vcmp.lt.s32.totalorder %v970, 15
      %vm1067 = vcmp.lt.s32.totalorder %v971, 15
      %vm1068 = vcmp.lt.s32.totalorder %v972, 15
      %vm1069 = vcmp.lt.s32.totalorder %v973, 15
      %vm1070 = vcmp.lt.s32.totalorder %v974, 15
      %vm1071 = vcmp.lt.s32.totalorder %v975, 15
      %vm1072 = vcmp.lt.s32.totalorder %v976, 15
      %vm1073 = vcmp.lt.s32.totalorder %v977, 15
      %vm1074 = vcmp.lt.s32.totalorder %v978, 15
      %vm1075 = vcmp.lt.s32.totalorder %v979, 15
      %vm1076 = vcmp.lt.s32.totalorder %v980, 15
      %vm1077 = vcmp.lt.s32.totalorder %v981, 15
      %vm1078 = vcmp.lt.s32.totalorder %v982, 15
      %vm1079 = vcmp.lt.s32.totalorder %v983, 15
      %vm1080 = vcmp.lt.s32.totalorder %v984, 15
      %vm1081 = vcmp.lt.s32.totalorder %v985, 15
      %vm1082 = vcmp.lt.s32.totalorder %v986, 15
      %vm1083 = vcmp.lt.s32.totalorder %v987, 15
      %vm1084 = vcmp.lt.s32.totalorder %v988, 15
      %vm1085 = vcmp.ge.s32.totalorder %v957, 1
      %vm1086 = vcmp.ge.s32.totalorder %v958, 1
      %vm1087 = vcmp.ge.s32.totalorder %v959, 1
      %vm1088 = vcmp.ge.s32.totalorder %v960, 1
      %vm1089 = vcmp.ge.s32.totalorder %v961, 1
      %vm1090 = vcmp.ge.s32.totalorder %v962, 1
      %vm1091 = vcmp.ge.s32.totalorder %v963, 1
      %vm1092 = vcmp.ge.s32.totalorder %v964, 1
      %vm1093 = vcmp.ge.s32.totalorder %v965, 1
      %vm1094 = vcmp.ge.s32.totalorder %v966, 1
      %vm1095 = vcmp.ge.s32.totalorder %v967, 1
      %vm1096 = vcmp.ge.s32.totalorder %v968, 1
      %vm1097 = vcmp.ge.s32.totalorder %v969, 1
      %vm1098 = vcmp.ge.s32.totalorder %v970, 1
      %vm1099 = vcmp.ge.s32.totalorder %v971, 1
      %vm1100 = vcmp.ge.s32.totalorder %v972, 1
      %vm1101 = vcmp.ge.s32.totalorder %v973, 1
      %vm1102 = vcmp.ge.s32.totalorder %v974, 1
      %vm1103 = vcmp.ge.s32.totalorder %v975, 1
      %vm1104 = vcmp.ge.s32.totalorder %v976, 1
      %vm1105 = vcmp.ge.s32.totalorder %v977, 1
      %vm1106 = vcmp.ge.s32.totalorder %v978, 1
      %vm1107 = vcmp.ge.s32.totalorder %v979, 1
      %vm1108 = vcmp.ge.s32.totalorder %v980, 1
      %vm1109 = vcmp.ge.s32.totalorder %v981, 1
      %vm1110 = vcmp.ge.s32.totalorder %v982, 1
      %vm1111 = vcmp.ge.s32.totalorder %v983, 1
      %vm1112 = vcmp.ge.s32.totalorder %v984, 1
      %vm1113 = vcmp.ge.s32.totalorder %v985, 1
      %vm1114 = vcmp.ge.s32.totalorder %v986, 1
      %vm1115 = vcmp.ge.s32.totalorder %v987, 1
      %vm1116 = vcmp.ge.s32.totalorder %v988, 1
      %vm1117 = vcmp.lt.s32.totalorder %v925, 14
      %vm1118 = vcmp.lt.s32.totalorder %v926, 14
      %vm1119 = vcmp.lt.s32.totalorder %v927, 14
      %vm1120 = vcmp.lt.s32.totalorder %v928, 14
      %vm1121 = vcmp.lt.s32.totalorder %v929, 14
      %vm1122 = vcmp.lt.s32.totalorder %v930, 14
      %vm1123 = vcmp.lt.s32.totalorder %v931, 14
      %vm1124 = vcmp.lt.s32.totalorder %v932, 14
      %vm1125 = vcmp.lt.s32.totalorder %v933, 14
      %vm1126 = vcmp.lt.s32.totalorder %v934, 14
      %vm1127 = vcmp.lt.s32.totalorder %v935, 14
      %vm1128 = vcmp.lt.s32.totalorder %v936, 14
      %vm1129 = vcmp.lt.s32.totalorder %v937, 14
      %vm1130 = vcmp.lt.s32.totalorder %v938, 14
      %vm1131 = vcmp.lt.s32.totalorder %v939, 14
      %vm1132 = vcmp.lt.s32.totalorder %v940, 14
      %vm1133 = vcmp.lt.s32.totalorder %v941, 14
      %vm1134 = vcmp.lt.s32.totalorder %v942, 14
      %vm1135 = vcmp.lt.s32.totalorder %v943, 14
      %vm1136 = vcmp.lt.s32.totalorder %v944, 14
      %vm1137 = vcmp.lt.s32.totalorder %v945, 14
      %vm1138 = vcmp.lt.s32.totalorder %v946, 14
      %vm1139 = vcmp.lt.s32.totalorder %v947, 14
      %vm1140 = vcmp.lt.s32.totalorder %v948, 14
      %vm1141 = vcmp.lt.s32.totalorder %v949, 14
      %vm1142 = vcmp.lt.s32.totalorder %v950, 14
      %vm1143 = vcmp.lt.s32.totalorder %v951, 14
      %vm1144 = vcmp.lt.s32.totalorder %v952, 14
      %vm1145 = vcmp.lt.s32.totalorder %v953, 14
      %vm1146 = vcmp.lt.s32.totalorder %v954, 14
      %vm1147 = vcmp.lt.s32.totalorder %v955, 14
      %vm1148 = vcmp.lt.s32.totalorder %v956, 14
      %vm1149 = vcmp.ge.s32.totalorder %v925, 2
      %vm1150 = vcmp.ge.s32.totalorder %v926, 2
      %vm1151 = vcmp.ge.s32.totalorder %v927, 2
      %vm1152 = vcmp.ge.s32.totalorder %v928, 2
      %vm1153 = vcmp.ge.s32.totalorder %v929, 2
      %vm1154 = vcmp.ge.s32.totalorder %v930, 2
      %vm1155 = vcmp.ge.s32.totalorder %v931, 2
      %vm1156 = vcmp.ge.s32.totalorder %v932, 2
      %vm1157 = vcmp.ge.s32.totalorder %v933, 2
      %vm1158 = vcmp.ge.s32.totalorder %v934, 2
      %vm1159 = vcmp.ge.s32.totalorder %v935, 2
      %vm1160 = vcmp.ge.s32.totalorder %v936, 2
      %vm1161 = vcmp.ge.s32.totalorder %v937, 2
      %vm1162 = vcmp.ge.s32.totalorder %v938, 2
      %vm1163 = vcmp.ge.s32.totalorder %v939, 2
      %vm1164 = vcmp.ge.s32.totalorder %v940, 2
      %vm1165 = vcmp.ge.s32.totalorder %v941, 2
      %vm1166 = vcmp.ge.s32.totalorder %v942, 2
      %vm1167 = vcmp.ge.s32.totalorder %v943, 2
      %vm1168 = vcmp.ge.s32.totalorder %v944, 2
      %vm1169 = vcmp.ge.s32.totalorder %v945, 2
      %vm1170 = vcmp.ge.s32.totalorder %v946, 2
      %vm1171 = vcmp.ge.s32.totalorder %v947, 2
      %vm1172 = vcmp.ge.s32.totalorder %v948, 2
      %vm1173 = vcmp.ge.s32.totalorder %v949, 2
      %vm1174 = vcmp.ge.s32.totalorder %v950, 2
      %vm1175 = vcmp.ge.s32.totalorder %v951, 2
      %vm1176 = vcmp.ge.s32.totalorder %v952, 2
      %vm1177 = vcmp.ge.s32.totalorder %v953, 2
      %vm1178 = vcmp.ge.s32.totalorder %v954, 2
      %vm1179 = vcmp.ge.s32.totalorder %v955, 2
      %vm1180 = vcmp.ge.s32.totalorder %v956, 2
      %vm1181 = vcmp.lt.s32.totalorder %v957, 14
      %vm1182 = vcmp.lt.s32.totalorder %v958, 14
      %vm1183 = vcmp.lt.s32.totalorder %v959, 14
      %vm1184 = vcmp.lt.s32.totalorder %v960, 14
      %vm1185 = vcmp.lt.s32.totalorder %v961, 14
      %vm1186 = vcmp.lt.s32.totalorder %v962, 14
      %vm1187 = vcmp.lt.s32.totalorder %v963, 14
      %vm1188 = vcmp.lt.s32.totalorder %v964, 14
      %vm1189 = vcmp.lt.s32.totalorder %v965, 14
      %vm1190 = vcmp.lt.s32.totalorder %v966, 14
      %vm1191 = vcmp.lt.s32.totalorder %v967, 14
      %vm1192 = vcmp.lt.s32.totalorder %v968, 14
      %vm1193 = vcmp.lt.s32.totalorder %v969, 14
      %vm1194 = vcmp.lt.s32.totalorder %v970, 14
      %vm1195 = vcmp.lt.s32.totalorder %v971, 14
      %vm1196 = vcmp.lt.s32.totalorder %v972, 14
      %vm1197 = vcmp.lt.s32.totalorder %v973, 14
      %vm1198 = vcmp.lt.s32.totalorder %v974, 14
      %vm1199 = vcmp.lt.s32.totalorder %v975, 14
      %vm1200 = vcmp.lt.s32.totalorder %v976, 14
      %vm1201 = vcmp.lt.s32.totalorder %v977, 14
      %vm1202 = vcmp.lt.s32.totalorder %v978, 14
      %vm1203 = vcmp.lt.s32.totalorder %v979, 14
      %vm1204 = vcmp.lt.s32.totalorder %v980, 14
      %vm1205 = vcmp.lt.s32.totalorder %v981, 14
      %vm1206 = vcmp.lt.s32.totalorder %v982, 14
      %vm1207 = vcmp.lt.s32.totalorder %v983, 14
      %vm1208 = vcmp.lt.s32.totalorder %v984, 14
      %vm1209 = vcmp.lt.s32.totalorder %v985, 14
      %vm1210 = vcmp.lt.s32.totalorder %v986, 14
      %vm1211 = vcmp.lt.s32.totalorder %v987, 14
      %vm1212 = vcmp.lt.s32.totalorder %v988, 14
      %vm1213 = vcmp.ge.s32.totalorder %v957, 2
      %vm1214 = vcmp.ge.s32.totalorder %v958, 2
      %vm1215 = vcmp.ge.s32.totalorder %v959, 2
      %vm1216 = vcmp.ge.s32.totalorder %v960, 2
      %vm1217 = vcmp.ge.s32.totalorder %v961, 2
      %vm1218 = vcmp.ge.s32.totalorder %v962, 2
      %vm1219 = vcmp.ge.s32.totalorder %v963, 2
      %vm1220 = vcmp.ge.s32.totalorder %v964, 2
      %vm1221 = vcmp.ge.s32.totalorder %v965, 2
      %vm1222 = vcmp.ge.s32.totalorder %v966, 2
      %vm1223 = vcmp.ge.s32.totalorder %v967, 2
      %vm1224 = vcmp.ge.s32.totalorder %v968, 2
      %vm1225 = vcmp.ge.s32.totalorder %v969, 2
      %vm1226 = vcmp.ge.s32.totalorder %v970, 2
      %vm1227 = vcmp.ge.s32.totalorder %v971, 2
      %vm1228 = vcmp.ge.s32.totalorder %v972, 2
      %vm1229 = vcmp.ge.s32.totalorder %v973, 2
      %vm1230 = vcmp.ge.s32.totalorder %v974, 2
      %vm1231 = vcmp.ge.s32.totalorder %v975, 2
      %vm1232 = vcmp.ge.s32.totalorder %v976, 2
      %vm1233 = vcmp.ge.s32.totalorder %v977, 2
      %vm1234 = vcmp.ge.s32.totalorder %v978, 2
      %vm1235 = vcmp.ge.s32.totalorder %v979, 2
      %vm1236 = vcmp.ge.s32.totalorder %v980, 2
      %vm1237 = vcmp.ge.s32.totalorder %v981, 2
      %vm1238 = vcmp.ge.s32.totalorder %v982, 2
      %vm1239 = vcmp.ge.s32.totalorder %v983, 2
      %vm1240 = vcmp.ge.s32.totalorder %v984, 2
      %vm1241 = vcmp.ge.s32.totalorder %v985, 2
      %vm1242 = vcmp.ge.s32.totalorder %v986, 2
      %vm1243 = vcmp.ge.s32.totalorder %v987, 2
      %vm1244 = vcmp.ge.s32.totalorder %v988, 2
      %v1245 = vrot.slane %v860, 1
      %v1246 = vrot.slane %v861, 1
      %v1247 = vrot.slane %v862, 1
      %v1248 = vrot.slane %v863, 1
      %v1249 = vrot.slane %v864, 1
      %v1250 = vrot.slane %v865, 1
      %v1251 = vrot.slane %v866, 1
      %v1252 = vrot.slane %v867, 1
      %v1253 = vrot.slane %v868, 1
      %v1254 = vrot.slane %v869, 1
      %v1255 = vrot.slane %v870, 1
      %v1256 = vrot.slane %v871, 1
      %v1257 = vrot.slane %v872, 1
      %v1258 = vrot.slane %v873, 1
      %v1259 = vrot.slane %v874, 1
      %v1260 = vrot.slane %v875, 1
      %v1261 = vrot.slane %v876, 1
      %v1262 = vrot.slane %v877, 1
      %v1263 = vrot.slane %v878, 1
      %v1264 = vrot.slane %v879, 1
      %v1265 = vrot.slane %v880, 1
      %v1266 = vrot.slane %v881, 1
      %v1267 = vrot.slane %v882, 1
      %v1268 = vrot.slane %v883, 1
      %v1269 = vrot.slane %v884, 1
      %v1270 = vrot.slane %v885, 1
      %v1271 = vrot.slane %v886, 1
      %v1272 = vrot.slane %v887, 1
      %v1273 = vrot.slane %v888, 1
      %v1274 = vrot.slane %v889, 1
      %v1275 = vrot.slane %v890, 1
      %v1276 = vrot.slane %v891, 1
      %vm1277 = vcmp.lt.s32.totalorder %v893, 7
      %v1278 = vsel %vm1277, %v1275, %v1276
      %v1279 = vsel %vm1277, %v1274, %v1275
      %v1280 = vsel %vm1277, %v1273, %v1274
      %v1281 = vsel %vm1277, %v1272, %v1273
      %v1282 = vsel %vm1277, %v1271, %v1272
      %v1283 = vsel %vm1277, %v1270, %v1271
      %v1284 = vsel %vm1277, %v1269, %v1270
      %v1285 = vsel %vm1277, %v1268, %v1269
      %v1286 = vsel %vm1277, %v1267, %v1268
      %v1287 = vsel %vm1277, %v1266, %v1267
      %v1288 = vsel %vm1277, %v1265, %v1266
      %v1289 = vsel %vm1277, %v1264, %v1265
      %v1290 = vsel %vm1277, %v1263, %v1264
      %v1291 = vsel %vm1277, %v1262, %v1263
      %v1292 = vsel %vm1277, %v1261, %v1262
      %v1293 = vsel %vm1277, %v1260, %v1261
      %v1294 = vsel %vm1277, %v1259, %v1260
      %v1295 = vsel %vm1277, %v1258, %v1259
      %v1296 = vsel %vm1277, %v1257, %v1258
      %v1297 = vsel %vm1277, %v1256, %v1257
      %v1298 = vsel %vm1277, %v1255, %v1256
      %v1299 = vsel %vm1277, %v1254, %v1255
      %v1300 = vsel %vm1277, %v1253, %v1254
      %v1301 = vsel %vm1277, %v1252, %v1253
      %v1302 = vsel %vm1277, %v1251, %v1252
      %v1303 = vsel %vm1277, %v1250, %v1251
      %v1304 = vsel %vm1277, %v1249, %v1250
      %v1305 = vsel %vm1277, %v1248, %v1249
      %v1306 = vsel %vm1277, %v1247, %v1248
      %v1307 = vsel %vm1277, %v1246, %v1247
      %v1308 = vsel %vm1277, %v1245, %v1246
      %v1309 = vsel %vm1277, %v1276, %v1245
      %v1310 = vsel %vm989, %v1308, -inf
      %v1311 = vsel %vm990, %v1307, -inf
      %v1312 = vsel %vm991, %v1306, -inf
      %v1313 = vsel %vm992, %v1305, -inf
      %v1314 = vsel %vm993, %v1304, -inf
      %v1315 = vsel %vm994, %v1303, -inf
      %v1316 = vsel %vm995, %v1302, -inf
      %v1317 = vsel %vm996, %v1301, -inf
      %v1318 = vsel %vm997, %v1300, -inf
      %v1319 = vsel %vm998, %v1299, -inf
      %v1320 = vsel %vm999, %v1298, -inf
      %v1321 = vsel %vm1000, %v1297, -inf
      %v1322 = vsel %vm1001, %v1296, -inf
      %v1323 = vsel %vm1002, %v1295, -inf
      %v1324 = vsel %vm1003, %v1294, -inf
      %v1325 = vsel %vm1004, %v1293, -inf
      %v1326 = vsel %vm1005, %v1292, -inf
      %v1327 = vsel %vm1006, %v1291, -inf
      %v1328 = vsel %vm1007, %v1290, -inf
      %v1329 = vsel %vm1008, %v1289, -inf
      %v1330 = vsel %vm1009, %v1288, -inf
      %v1331 = vsel %vm1010, %v1287, -inf
      %v1332 = vsel %vm1011, %v1286, -inf
      %v1333 = vsel %vm1012, %v1285, -inf
      %v1334 = vsel %vm1013, %v1284, -inf
      %v1335 = vsel %vm1014, %v1283, -inf
      %v1336 = vsel %vm1015, %v1282, -inf
      %v1337 = vsel %vm1016, %v1281, -inf
      %v1338 = vsel %vm1017, %v1280, -inf
      %v1339 = vsel %vm1018, %v1279, -inf
      %v1340 = vsel %vm1019, %v1278, -inf
      %v1341 = vsel %vm1020, %v1309, -inf
      %v1342 = vmax.f32 %v860, %v1310
      %v1343 = vmax.f32 %v861, %v1311
      %v1344 = vmax.f32 %v862, %v1312
      %v1345 = vmax.f32 %v863, %v1313
      %v1346 = vmax.f32 %v864, %v1314
      %v1347 = vmax.f32 %v865, %v1315
      %v1348 = vmax.f32 %v866, %v1316
      %v1349 = vmax.f32 %v867, %v1317
      %v1350 = vmax.f32 %v868, %v1318
      %v1351 = vmax.f32 %v869, %v1319
      %v1352 = vmax.f32 %v870, %v1320
      %v1353 = vmax.f32 %v871, %v1321
      %v1354 = vmax.f32 %v872, %v1322
      %v1355 = vmax.f32 %v873, %v1323
      %v1356 = vmax.f32 %v874, %v1324
      %v1357 = vmax.f32 %v875, %v1325
      %v1358 = vmax.f32 %v876, %v1326
      %v1359 = vmax.f32 %v877, %v1327
      %v1360 = vmax.f32 %v878, %v1328
      %v1361 = vmax.f32 %v879, %v1329
      %v1362 = vmax.f32 %v880, %v1330
      %v1363 = vmax.f32 %v881, %v1331
      %v1364 = vmax.f32 %v882, %v1332
      %v1365 = vmax.f32 %v883, %v1333
      %v1366 = vmax.f32 %v884, %v1334
      %v1367 = vmax.f32 %v885, %v1335
      %v1368 = vmax.f32 %v886, %v1336
      %v1369 = vmax.f32 %v887, %v1337
      %v1370 = vmax.f32 %v888, %v1338
      %v1371 = vmax.f32 %v889, %v1339
      %v1372 = vmax.f32 %v890, %v1340
      %v1373 = vmax.f32 %v891, %v1341
      %v1374 = vrot.slane %v860, 7
      %v1375 = vrot.slane %v861, 7
      %v1376 = vrot.slane %v862, 7
      %v1377 = vrot.slane %v863, 7
      %v1378 = vrot.slane %v864, 7
      %v1379 = vrot.slane %v865, 7
      %v1380 = vrot.slane %v866, 7
      %v1381 = vrot.slane %v867, 7
      %v1382 = vrot.slane %v868, 7
      %v1383 = vrot.slane %v869, 7
      %v1384 = vrot.slane %v870, 7
      %v1385 = vrot.slane %v871, 7
      %v1386 = vrot.slane %v872, 7
      %v1387 = vrot.slane %v873, 7
      %v1388 = vrot.slane %v874, 7
      %v1389 = vrot.slane %v875, 7
      %v1390 = vrot.slane %v876, 7
      %v1391 = vrot.slane %v877, 7
      %v1392 = vrot.slane %v878, 7
      %v1393 = vrot.slane %v879, 7
      %v1394 = vrot.slane %v880, 7
      %v1395 = vrot.slane %v881, 7
      %v1396 = vrot.slane %v882, 7
      %v1397 = vrot.slane %v883, 7
      %v1398 = vrot.slane %v884, 7
      %v1399 = vrot.slane %v885, 7
      %v1400 = vrot.slane %v886, 7
      %v1401 = vrot.slane %v887, 7
      %v1402 = vrot.slane %v888, 7
      %v1403 = vrot.slane %v889, 7
      %v1404 = vrot.slane %v890, 7
      %v1405 = vrot.slane %v891, 7
      %vm1406 = vcmp.lt.s32.totalorder %v893, 1
      %v1407 = vsel %vm1406, %v1404, %v1405
      %v1408 = vsel %vm1406, %v1403, %v1404
      %v1409 = vsel %vm1406, %v1402, %v1403
      %v1410 = vsel %vm1406, %v1401, %v1402
      %v1411 = vsel %vm1406, %v1400, %v1401
      %v1412 = vsel %vm1406, %v1399, %v1400
      %v1413 = vsel %vm1406, %v1398, %v1399
      %v1414 = vsel %vm1406, %v1397, %v1398
      %v1415 = vsel %vm1406, %v1396, %v1397
      %v1416 = vsel %vm1406, %v1395, %v1396
      %v1417 = vsel %vm1406, %v1394, %v1395
      %v1418 = vsel %vm1406, %v1393, %v1394
      %v1419 = vsel %vm1406, %v1392, %v1393
      %v1420 = vsel %vm1406, %v1391, %v1392
      %v1421 = vsel %vm1406, %v1390, %v1391
      %v1422 = vsel %vm1406, %v1389, %v1390
      %v1423 = vsel %vm1406, %v1388, %v1389
      %v1424 = vsel %vm1406, %v1387, %v1388
      %v1425 = vsel %vm1406, %v1386, %v1387
      %v1426 = vsel %vm1406, %v1385, %v1386
      %v1427 = vsel %vm1406, %v1384, %v1385
      %v1428 = vsel %vm1406, %v1383, %v1384
      %v1429 = vsel %vm1406, %v1382, %v1383
      %v1430 = vsel %vm1406, %v1381, %v1382
      %v1431 = vsel %vm1406, %v1380, %v1381
      %v1432 = vsel %vm1406, %v1379, %v1380
      %v1433 = vsel %vm1406, %v1378, %v1379
      %v1434 = vsel %vm1406, %v1377, %v1378
      %v1435 = vsel %vm1406, %v1376, %v1377
      %v1436 = vsel %vm1406, %v1375, %v1376
      %v1437 = vsel %vm1406, %v1374, %v1375
      %v1438 = vsel %vm1406, %v1405, %v1374
      %v1439 = vsel %vm1021, %v1438, -inf
      %v1440 = vsel %vm1022, %v1437, -inf
      %v1441 = vsel %vm1023, %v1436, -inf
      %v1442 = vsel %vm1024, %v1435, -inf
      %v1443 = vsel %vm1025, %v1434, -inf
      %v1444 = vsel %vm1026, %v1433, -inf
      %v1445 = vsel %vm1027, %v1432, -inf
      %v1446 = vsel %vm1028, %v1431, -inf
      %v1447 = vsel %vm1029, %v1430, -inf
      %v1448 = vsel %vm1030, %v1429, -inf
      %v1449 = vsel %vm1031, %v1428, -inf
      %v1450 = vsel %vm1032, %v1427, -inf
      %v1451 = vsel %vm1033, %v1426, -inf
      %v1452 = vsel %vm1034, %v1425, -inf
      %v1453 = vsel %vm1035, %v1424, -inf
      %v1454 = vsel %vm1036, %v1423, -inf
      %v1455 = vsel %vm1037, %v1422, -inf
      %v1456 = vsel %vm1038, %v1421, -inf
      %v1457 = vsel %vm1039, %v1420, -inf
      %v1458 = vsel %vm1040, %v1419, -inf
      %v1459 = vsel %vm1041, %v1418, -inf
      %v1460 = vsel %vm1042, %v1417, -inf
      %v1461 = vsel %vm1043, %v1416, -inf
      %v1462 = vsel %vm1044, %v1415, -inf
      %v1463 = vsel %vm1045, %v1414, -inf
      %v1464 = vsel %vm1046, %v1413, -inf
      %v1465 = vsel %vm1047, %v1412, -inf
      %v1466 = vsel %vm1048, %v1411, -inf
      %v1467 = vsel %vm1049, %v1410, -inf
      %v1468 = vsel %vm1050, %v1409, -inf
      %v1469 = vsel %vm1051, %v1408, -inf
      %v1470 = vsel %vm1052, %v1407, -inf
      %v1471 = vmax.f32 %v1342, %v1439
      %v1472 = vmax.f32 %v1343, %v1440
      %v1473 = vmax.f32 %v1344, %v1441
      %v1474 = vmax.f32 %v1345, %v1442
      %v1475 = vmax.f32 %v1346, %v1443
      %v1476 = vmax.f32 %v1347, %v1444
      %v1477 = vmax.f32 %v1348, %v1445
      %v1478 = vmax.f32 %v1349, %v1446
      %v1479 = vmax.f32 %v1350, %v1447
      %v1480 = vmax.f32 %v1351, %v1448
      %v1481 = vmax.f32 %v1352, %v1449
      %v1482 = vmax.f32 %v1353, %v1450
      %v1483 = vmax.f32 %v1354, %v1451
      %v1484 = vmax.f32 %v1355, %v1452
      %v1485 = vmax.f32 %v1356, %v1453
      %v1486 = vmax.f32 %v1357, %v1454
      %v1487 = vmax.f32 %v1358, %v1455
      %v1488 = vmax.f32 %v1359, %v1456
      %v1489 = vmax.f32 %v1360, %v1457
      %v1490 = vmax.f32 %v1361, %v1458
      %v1491 = vmax.f32 %v1362, %v1459
      %v1492 = vmax.f32 %v1363, %v1460
      %v1493 = vmax.f32 %v1364, %v1461
      %v1494 = vmax.f32 %v1365, %v1462
      %v1495 = vmax.f32 %v1366, %v1463
      %v1496 = vmax.f32 %v1367, %v1464
      %v1497 = vmax.f32 %v1368, %v1465
      %v1498 = vmax.f32 %v1369, %v1466
      %v1499 = vmax.f32 %v1370, %v1467
      %v1500 = vmax.f32 %v1371, %v1468
      %v1501 = vmax.f32 %v1372, %v1469
      %v1502 = vmax.f32 %v1373, %v1470
      %v1503 = vrot.slane %v860, 2
      %v1504 = vrot.slane %v861, 2
      %v1505 = vrot.slane %v862, 2
      %v1506 = vrot.slane %v863, 2
      %v1507 = vrot.slane %v864, 2
      %v1508 = vrot.slane %v865, 2
      %v1509 = vrot.slane %v866, 2
      %v1510 = vrot.slane %v867, 2
      %v1511 = vrot.slane %v868, 2
      %v1512 = vrot.slane %v869, 2
      %v1513 = vrot.slane %v870, 2
      %v1514 = vrot.slane %v871, 2
      %v1515 = vrot.slane %v872, 2
      %v1516 = vrot.slane %v873, 2
      %v1517 = vrot.slane %v874, 2
      %v1518 = vrot.slane %v875, 2
      %v1519 = vrot.slane %v876, 2
      %v1520 = vrot.slane %v877, 2
      %v1521 = vrot.slane %v878, 2
      %v1522 = vrot.slane %v879, 2
      %v1523 = vrot.slane %v880, 2
      %v1524 = vrot.slane %v881, 2
      %v1525 = vrot.slane %v882, 2
      %v1526 = vrot.slane %v883, 2
      %v1527 = vrot.slane %v884, 2
      %v1528 = vrot.slane %v885, 2
      %v1529 = vrot.slane %v886, 2
      %v1530 = vrot.slane %v887, 2
      %v1531 = vrot.slane %v888, 2
      %v1532 = vrot.slane %v889, 2
      %v1533 = vrot.slane %v890, 2
      %v1534 = vrot.slane %v891, 2
      %vm1535 = vcmp.lt.s32.totalorder %v893, 6
      %v1536 = vsel %vm1535, %v1533, %v1534
      %v1537 = vsel %vm1535, %v1532, %v1533
      %v1538 = vsel %vm1535, %v1531, %v1532
      %v1539 = vsel %vm1535, %v1530, %v1531
      %v1540 = vsel %vm1535, %v1529, %v1530
      %v1541 = vsel %vm1535, %v1528, %v1529
      %v1542 = vsel %vm1535, %v1527, %v1528
      %v1543 = vsel %vm1535, %v1526, %v1527
      %v1544 = vsel %vm1535, %v1525, %v1526
      %v1545 = vsel %vm1535, %v1524, %v1525
      %v1546 = vsel %vm1535, %v1523, %v1524
      %v1547 = vsel %vm1535, %v1522, %v1523
      %v1548 = vsel %vm1535, %v1521, %v1522
      %v1549 = vsel %vm1535, %v1520, %v1521
      %v1550 = vsel %vm1535, %v1519, %v1520
      %v1551 = vsel %vm1535, %v1518, %v1519
      %v1552 = vsel %vm1535, %v1517, %v1518
      %v1553 = vsel %vm1535, %v1516, %v1517
      %v1554 = vsel %vm1535, %v1515, %v1516
      %v1555 = vsel %vm1535, %v1514, %v1515
      %v1556 = vsel %vm1535, %v1513, %v1514
      %v1557 = vsel %vm1535, %v1512, %v1513
      %v1558 = vsel %vm1535, %v1511, %v1512
      %v1559 = vsel %vm1535, %v1510, %v1511
      %v1560 = vsel %vm1535, %v1509, %v1510
      %v1561 = vsel %vm1535, %v1508, %v1509
      %v1562 = vsel %vm1535, %v1507, %v1508
      %v1563 = vsel %vm1535, %v1506, %v1507
      %v1564 = vsel %vm1535, %v1505, %v1506
      %v1565 = vsel %vm1535, %v1504, %v1505
      %v1566 = vsel %vm1535, %v1503, %v1504
      %v1567 = vsel %vm1535, %v1534, %v1503
      %v1568 = vsel %vm1117, %v1566, -inf
      %v1569 = vsel %vm1118, %v1565, -inf
      %v1570 = vsel %vm1119, %v1564, -inf
      %v1571 = vsel %vm1120, %v1563, -inf
      %v1572 = vsel %vm1121, %v1562, -inf
      %v1573 = vsel %vm1122, %v1561, -inf
      %v1574 = vsel %vm1123, %v1560, -inf
      %v1575 = vsel %vm1124, %v1559, -inf
      %v1576 = vsel %vm1125, %v1558, -inf
      %v1577 = vsel %vm1126, %v1557, -inf
      %v1578 = vsel %vm1127, %v1556, -inf
      %v1579 = vsel %vm1128, %v1555, -inf
      %v1580 = vsel %vm1129, %v1554, -inf
      %v1581 = vsel %vm1130, %v1553, -inf
      %v1582 = vsel %vm1131, %v1552, -inf
      %v1583 = vsel %vm1132, %v1551, -inf
      %v1584 = vsel %vm1133, %v1550, -inf
      %v1585 = vsel %vm1134, %v1549, -inf
      %v1586 = vsel %vm1135, %v1548, -inf
      %v1587 = vsel %vm1136, %v1547, -inf
      %v1588 = vsel %vm1137, %v1546, -inf
      %v1589 = vsel %vm1138, %v1545, -inf
      %v1590 = vsel %vm1139, %v1544, -inf
      %v1591 = vsel %vm1140, %v1543, -inf
      %v1592 = vsel %vm1141, %v1542, -inf
      %v1593 = vsel %vm1142, %v1541, -inf
      %v1594 = vsel %vm1143, %v1540, -inf
      %v1595 = vsel %vm1144, %v1539, -inf
      %v1596 = vsel %vm1145, %v1538, -inf
      %v1597 = vsel %vm1146, %v1537, -inf
      %v1598 = vsel %vm1147, %v1536, -inf
      %v1599 = vsel %vm1148, %v1567, -inf
      %v1600 = vmax.f32 %v1471, %v1568
      %v1601 = vmax.f32 %v1472, %v1569
      %v1602 = vmax.f32 %v1473, %v1570
      %v1603 = vmax.f32 %v1474, %v1571
      %v1604 = vmax.f32 %v1475, %v1572
      %v1605 = vmax.f32 %v1476, %v1573
      %v1606 = vmax.f32 %v1477, %v1574
      %v1607 = vmax.f32 %v1478, %v1575
      %v1608 = vmax.f32 %v1479, %v1576
      %v1609 = vmax.f32 %v1480, %v1577
      %v1610 = vmax.f32 %v1481, %v1578
      %v1611 = vmax.f32 %v1482, %v1579
      %v1612 = vmax.f32 %v1483, %v1580
      %v1613 = vmax.f32 %v1484, %v1581
      %v1614 = vmax.f32 %v1485, %v1582
      %v1615 = vmax.f32 %v1486, %v1583
      %v1616 = vmax.f32 %v1487, %v1584
      %v1617 = vmax.f32 %v1488, %v1585
      %v1618 = vmax.f32 %v1489, %v1586
      %v1619 = vmax.f32 %v1490, %v1587
      %v1620 = vmax.f32 %v1491, %v1588
      %v1621 = vmax.f32 %v1492, %v1589
      %v1622 = vmax.f32 %v1493, %v1590
      %v1623 = vmax.f32 %v1494, %v1591
      %v1624 = vmax.f32 %v1495, %v1592
      %v1625 = vmax.f32 %v1496, %v1593
      %v1626 = vmax.f32 %v1497, %v1594
      %v1627 = vmax.f32 %v1498, %v1595
      %v1628 = vmax.f32 %v1499, %v1596
      %v1629 = vmax.f32 %v1500, %v1597
      %v1630 = vmax.f32 %v1501, %v1598
      %v1631 = vmax.f32 %v1502, %v1599
      %v1632 = vrot.slane %v860, 6
      %v1633 = vrot.slane %v861, 6
      %v1634 = vrot.slane %v862, 6
      %v1635 = vrot.slane %v863, 6
      %v1636 = vrot.slane %v864, 6
      %v1637 = vrot.slane %v865, 6
      %v1638 = vrot.slane %v866, 6
      %v1639 = vrot.slane %v867, 6
      %v1640 = vrot.slane %v868, 6
      %v1641 = vrot.slane %v869, 6
      %v1642 = vrot.slane %v870, 6
      %v1643 = vrot.slane %v871, 6
      %v1644 = vrot.slane %v872, 6
      %v1645 = vrot.slane %v873, 6
      %v1646 = vrot.slane %v874, 6
      %v1647 = vrot.slane %v875, 6
      %v1648 = vrot.slane %v876, 6
      %v1649 = vrot.slane %v877, 6
      %v1650 = vrot.slane %v878, 6
      %v1651 = vrot.slane %v879, 6
      %v1652 = vrot.slane %v880, 6
      %v1653 = vrot.slane %v881, 6
      %v1654 = vrot.slane %v882, 6
      %v1655 = vrot.slane %v883, 6
      %v1656 = vrot.slane %v884, 6
      %v1657 = vrot.slane %v885, 6
      %v1658 = vrot.slane %v886, 6
      %v1659 = vrot.slane %v887, 6
      %v1660 = vrot.slane %v888, 6
      %v1661 = vrot.slane %v889, 6
      %v1662 = vrot.slane %v890, 6
      %v1663 = vrot.slane %v891, 6
      %vm1664 = vcmp.lt.s32.totalorder %v893, 2
      %v1665 = vsel %vm1664, %v1662, %v1663
      %v1666 = vsel %vm1664, %v1661, %v1662
      %v1667 = vsel %vm1664, %v1660, %v1661
      %v1668 = vsel %vm1664, %v1659, %v1660
      %v1669 = vsel %vm1664, %v1658, %v1659
      %v1670 = vsel %vm1664, %v1657, %v1658
      %v1671 = vsel %vm1664, %v1656, %v1657
      %v1672 = vsel %vm1664, %v1655, %v1656
      %v1673 = vsel %vm1664, %v1654, %v1655
      %v1674 = vsel %vm1664, %v1653, %v1654
      %v1675 = vsel %vm1664, %v1652, %v1653
      %v1676 = vsel %vm1664, %v1651, %v1652
      %v1677 = vsel %vm1664, %v1650, %v1651
      %v1678 = vsel %vm1664, %v1649, %v1650
      %v1679 = vsel %vm1664, %v1648, %v1649
      %v1680 = vsel %vm1664, %v1647, %v1648
      %v1681 = vsel %vm1664, %v1646, %v1647
      %v1682 = vsel %vm1664, %v1645, %v1646
      %v1683 = vsel %vm1664, %v1644, %v1645
      %v1684 = vsel %vm1664, %v1643, %v1644
      %v1685 = vsel %vm1664, %v1642, %v1643
      %v1686 = vsel %vm1664, %v1641, %v1642
      %v1687 = vsel %vm1664, %v1640, %v1641
      %v1688 = vsel %vm1664, %v1639, %v1640
      %v1689 = vsel %vm1664, %v1638, %v1639
      %v1690 = vsel %vm1664, %v1637, %v1638
      %v1691 = vsel %vm1664, %v1636, %v1637
      %v1692 = vsel %vm1664, %v1635, %v1636
      %v1693 = vsel %vm1664, %v1634, %v1635
      %v1694 = vsel %vm1664, %v1633, %v1634
      %v1695 = vsel %vm1664, %v1632, %v1633
      %v1696 = vsel %vm1664, %v1663, %v1632
      %v1697 = vsel %vm1149, %v1696, -inf
      %v1698 = vsel %vm1150, %v1695, -inf
      %v1699 = vsel %vm1151, %v1694, -inf
      %v1700 = vsel %vm1152, %v1693, -inf
      %v1701 = vsel %vm1153, %v1692, -inf
      %v1702 = vsel %vm1154, %v1691, -inf
      %v1703 = vsel %vm1155, %v1690, -inf
      %v1704 = vsel %vm1156, %v1689, -inf
      %v1705 = vsel %vm1157, %v1688, -inf
      %v1706 = vsel %vm1158, %v1687, -inf
      %v1707 = vsel %vm1159, %v1686, -inf
      %v1708 = vsel %vm1160, %v1685, -inf
      %v1709 = vsel %vm1161, %v1684, -inf
      %v1710 = vsel %vm1162, %v1683, -inf
      %v1711 = vsel %vm1163, %v1682, -inf
      %v1712 = vsel %vm1164, %v1681, -inf
      %v1713 = vsel %vm1165, %v1680, -inf
      %v1714 = vsel %vm1166, %v1679, -inf
      %v1715 = vsel %vm1167, %v1678, -inf
      %v1716 = vsel %vm1168, %v1677, -inf
      %v1717 = vsel %vm1169, %v1676, -inf
      %v1718 = vsel %vm1170, %v1675, -inf
      %v1719 = vsel %vm1171, %v1674, -inf
      %v1720 = vsel %vm1172, %v1673, -inf
      %v1721 = vsel %vm1173, %v1672, -inf
      %v1722 = vsel %vm1174, %v1671, -inf
      %v1723 = vsel %vm1175, %v1670, -inf
      %v1724 = vsel %vm1176, %v1669, -inf
      %v1725 = vsel %vm1177, %v1668, -inf
      %v1726 = vsel %vm1178, %v1667, -inf
      %v1727 = vsel %vm1179, %v1666, -inf
      %v1728 = vsel %vm1180, %v1665, -inf
      %v1729 = vmax.f32 %v1600, %v1697
      %v1730 = vmax.f32 %v1601, %v1698
      %v1731 = vmax.f32 %v1602, %v1699
      %v1732 = vmax.f32 %v1603, %v1700
      %v1733 = vmax.f32 %v1604, %v1701
      %v1734 = vmax.f32 %v1605, %v1702
      %v1735 = vmax.f32 %v1606, %v1703
      %v1736 = vmax.f32 %v1607, %v1704
      %v1737 = vmax.f32 %v1608, %v1705
      %v1738 = vmax.f32 %v1609, %v1706
      %v1739 = vmax.f32 %v1610, %v1707
      %v1740 = vmax.f32 %v1611, %v1708
      %v1741 = vmax.f32 %v1612, %v1709
      %v1742 = vmax.f32 %v1613, %v1710
      %v1743 = vmax.f32 %v1614, %v1711
      %v1744 = vmax.f32 %v1615, %v1712
      %v1745 = vmax.f32 %v1616, %v1713
      %v1746 = vmax.f32 %v1617, %v1714
      %v1747 = vmax.f32 %v1618, %v1715
      %v1748 = vmax.f32 %v1619, %v1716
      %v1749 = vmax.f32 %v1620, %v1717
      %v1750 = vmax.f32 %v1621, %v1718
      %v1751 = vmax.f32 %v1622, %v1719
      %v1752 = vmax.f32 %v1623, %v1720
      %v1753 = vmax.f32 %v1624, %v1721
      %v1754 = vmax.f32 %v1625, %v1722
      %v1755 = vmax.f32 %v1626, %v1723
      %v1756 = vmax.f32 %v1627, %v1724
      %v1757 = vmax.f32 %v1628, %v1725
      %v1758 = vmax.f32 %v1629, %v1726
      %v1759 = vmax.f32 %v1630, %v1727
      %v1760 = vmax.f32 %v1631, %v1728
      %v1761 = vsel %vm1053, %v1731, -inf
      %v1762 = vsel %vm1054, %v1732, -inf
      %v1763 = vsel %vm1055, %v1733, -inf
      %v1764 = vsel %vm1056, %v1734, -inf
      %v1765 = vsel %vm1057, %v1735, -inf
      %v1766 = vsel %vm1058, %v1736, -inf
      %v1767 = vsel %vm1059, %v1737, -inf
      %v1768 = vsel %vm1060, %v1738, -inf
      %v1769 = vsel %vm1061, %v1739, -inf
      %v1770 = vsel %vm1062, %v1740, -inf
      %v1771 = vsel %vm1063, %v1741, -inf
      %v1772 = vsel %vm1064, %v1742, -inf
      %v1773 = vsel %vm1065, %v1743, -inf
      %v1774 = vsel %vm1066, %v1744, -inf
      %v1775 = vsel %vm1067, %v1745, -inf
      %v1776 = vsel %vm1068, %v1746, -inf
      %v1777 = vsel %vm1069, %v1747, -inf
      %v1778 = vsel %vm1070, %v1748, -inf
      %v1779 = vsel %vm1071, %v1749, -inf
      %v1780 = vsel %vm1072, %v1750, -inf
      %v1781 = vsel %vm1073, %v1751, -inf
      %v1782 = vsel %vm1074, %v1752, -inf
      %v1783 = vsel %vm1075, %v1753, -inf
      %v1784 = vsel %vm1076, %v1754, -inf
      %v1785 = vsel %vm1077, %v1755, -inf
      %v1786 = vsel %vm1078, %v1756, -inf
      %v1787 = vsel %vm1079, %v1757, -inf
      %v1788 = vsel %vm1080, %v1758, -inf
      %v1789 = vsel %vm1081, %v1759, -inf
      %v1790 = vsel %vm1082, %v1760, -inf
      %v1791 = vsel %vm1083, %v1729, -inf
      %v1792 = vsel %vm1084, %v1730, -inf
      %v1793 = vmax.f32 %v1729, %v1761
      %v1794 = vmax.f32 %v1730, %v1762
      %v1795 = vmax.f32 %v1731, %v1763
      %v1796 = vmax.f32 %v1732, %v1764
      %v1797 = vmax.f32 %v1733, %v1765
      %v1798 = vmax.f32 %v1734, %v1766
      %v1799 = vmax.f32 %v1735, %v1767
      %v1800 = vmax.f32 %v1736, %v1768
      %v1801 = vmax.f32 %v1737, %v1769
      %v1802 = vmax.f32 %v1738, %v1770
      %v1803 = vmax.f32 %v1739, %v1771
      %v1804 = vmax.f32 %v1740, %v1772
      %v1805 = vmax.f32 %v1741, %v1773
      %v1806 = vmax.f32 %v1742, %v1774
      %v1807 = vmax.f32 %v1743, %v1775
      %v1808 = vmax.f32 %v1744, %v1776
      %v1809 = vmax.f32 %v1745, %v1777
      %v1810 = vmax.f32 %v1746, %v1778
      %v1811 = vmax.f32 %v1747, %v1779
      %v1812 = vmax.f32 %v1748, %v1780
      %v1813 = vmax.f32 %v1749, %v1781
      %v1814 = vmax.f32 %v1750, %v1782
      %v1815 = vmax.f32 %v1751, %v1783
      %v1816 = vmax.f32 %v1752, %v1784
      %v1817 = vmax.f32 %v1753, %v1785
      %v1818 = vmax.f32 %v1754, %v1786
      %v1819 = vmax.f32 %v1755, %v1787
      %v1820 = vmax.f32 %v1756, %v1788
      %v1821 = vmax.f32 %v1757, %v1789
      %v1822 = vmax.f32 %v1758, %v1790
      %v1823 = vmax.f32 %v1759, %v1791
      %v1824 = vmax.f32 %v1760, %v1792
      %v1825 = vsel %vm1085, %v1759, -inf
      %v1826 = vsel %vm1086, %v1760, -inf
      %v1827 = vsel %vm1087, %v1729, -inf
      %v1828 = vsel %vm1088, %v1730, -inf
      %v1829 = vsel %vm1089, %v1731, -inf
      %v1830 = vsel %vm1090, %v1732, -inf
      %v1831 = vsel %vm1091, %v1733, -inf
      %v1832 = vsel %vm1092, %v1734, -inf
      %v1833 = vsel %vm1093, %v1735, -inf
      %v1834 = vsel %vm1094, %v1736, -inf
      %v1835 = vsel %vm1095, %v1737, -inf
      %v1836 = vsel %vm1096, %v1738, -inf
      %v1837 = vsel %vm1097, %v1739, -inf
      %v1838 = vsel %vm1098, %v1740, -inf
      %v1839 = vsel %vm1099, %v1741, -inf
      %v1840 = vsel %vm1100, %v1742, -inf
      %v1841 = vsel %vm1101, %v1743, -inf
      %v1842 = vsel %vm1102, %v1744, -inf
      %v1843 = vsel %vm1103, %v1745, -inf
      %v1844 = vsel %vm1104, %v1746, -inf
      %v1845 = vsel %vm1105, %v1747, -inf
      %v1846 = vsel %vm1106, %v1748, -inf
      %v1847 = vsel %vm1107, %v1749, -inf
      %v1848 = vsel %vm1108, %v1750, -inf
      %v1849 = vsel %vm1109, %v1751, -inf
      %v1850 = vsel %vm1110, %v1752, -inf
      %v1851 = vsel %vm1111, %v1753, -inf
      %v1852 = vsel %vm1112, %v1754, -inf
      %v1853 = vsel %vm1113, %v1755, -inf
      %v1854 = vsel %vm1114, %v1756, -inf
      %v1855 = vsel %vm1115, %v1757, -inf
      %v1856 = vsel %vm1116, %v1758, -inf
      %v1857 = vmax.f32 %v1793, %v1825
      %v1858 = vmax.f32 %v1794, %v1826
      %v1859 = vmax.f32 %v1795, %v1827
      %v1860 = vmax.f32 %v1796, %v1828
      %v1861 = vmax.f32 %v1797, %v1829
      %v1862 = vmax.f32 %v1798, %v1830
      %v1863 = vmax.f32 %v1799, %v1831
      %v1864 = vmax.f32 %v1800, %v1832
      %v1865 = vmax.f32 %v1801, %v1833
      %v1866 = vmax.f32 %v1802, %v1834
      %v1867 = vmax.f32 %v1803, %v1835
      %v1868 = vmax.f32 %v1804, %v1836
      %v1869 = vmax.f32 %v1805, %v1837
      %v1870 = vmax.f32 %v1806, %v1838
      %v1871 = vmax.f32 %v1807, %v1839
      %v1872 = vmax.f32 %v1808, %v1840
      %v1873 = vmax.f32 %v1809, %v1841
      %v1874 = vmax.f32 %v1810, %v1842
      %v1875 = vmax.f32 %v1811, %v1843
      %v1876 = vmax.f32 %v1812, %v1844
      %v1877 = vmax.f32 %v1813, %v1845
      %v1878 = vmax.f32 %v1814, %v1846
      %v1879 = vmax.f32 %v1815, %v1847
      %v1880 = vmax.f32 %v1816, %v1848
      %v1881 = vmax.f32 %v1817, %v1849
      %v1882 = vmax.f32 %v1818, %v1850
      %v1883 = vmax.f32 %v1819, %v1851
      %v1884 = vmax.f32 %v1820, %v1852
      %v1885 = vmax.f32 %v1821, %v1853
      %v1886 = vmax.f32 %v1822, %v1854
      %v1887 = vmax.f32 %v1823, %v1855
      %v1888 = vmax.f32 %v1824, %v1856
      %v1889 = vsel %vm1181, %v1733, -inf
      %v1890 = vsel %vm1182, %v1734, -inf
      %v1891 = vsel %vm1183, %v1735, -inf
      %v1892 = vsel %vm1184, %v1736, -inf
      %v1893 = vsel %vm1185, %v1737, -inf
      %v1894 = vsel %vm1186, %v1738, -inf
      %v1895 = vsel %vm1187, %v1739, -inf
      %v1896 = vsel %vm1188, %v1740, -inf
      %v1897 = vsel %vm1189, %v1741, -inf
      %v1898 = vsel %vm1190, %v1742, -inf
      %v1899 = vsel %vm1191, %v1743, -inf
      %v1900 = vsel %vm1192, %v1744, -inf
      %v1901 = vsel %vm1193, %v1745, -inf
      %v1902 = vsel %vm1194, %v1746, -inf
      %v1903 = vsel %vm1195, %v1747, -inf
      %v1904 = vsel %vm1196, %v1748, -inf
      %v1905 = vsel %vm1197, %v1749, -inf
      %v1906 = vsel %vm1198, %v1750, -inf
      %v1907 = vsel %vm1199, %v1751, -inf
      %v1908 = vsel %vm1200, %v1752, -inf
      %v1909 = vsel %vm1201, %v1753, -inf
      %v1910 = vsel %vm1202, %v1754, -inf
      %v1911 = vsel %vm1203, %v1755, -inf
      %v1912 = vsel %vm1204, %v1756, -inf
      %v1913 = vsel %vm1205, %v1757, -inf
      %v1914 = vsel %vm1206, %v1758, -inf
      %v1915 = vsel %vm1207, %v1759, -inf
      %v1916 = vsel %vm1208, %v1760, -inf
      %v1917 = vsel %vm1209, %v1729, -inf
      %v1918 = vsel %vm1210, %v1730, -inf
      %v1919 = vsel %vm1211, %v1731, -inf
      %v1920 = vsel %vm1212, %v1732, -inf
      %v1921 = vmax.f32 %v1857, %v1889
      %v1922 = vmax.f32 %v1858, %v1890
      %v1923 = vmax.f32 %v1859, %v1891
      %v1924 = vmax.f32 %v1860, %v1892
      %v1925 = vmax.f32 %v1861, %v1893
      %v1926 = vmax.f32 %v1862, %v1894
      %v1927 = vmax.f32 %v1863, %v1895
      %v1928 = vmax.f32 %v1864, %v1896
      %v1929 = vmax.f32 %v1865, %v1897
      %v1930 = vmax.f32 %v1866, %v1898
      %v1931 = vmax.f32 %v1867, %v1899
      %v1932 = vmax.f32 %v1868, %v1900
      %v1933 = vmax.f32 %v1869, %v1901
      %v1934 = vmax.f32 %v1870, %v1902
      %v1935 = vmax.f32 %v1871, %v1903
      %v1936 = vmax.f32 %v1872, %v1904
      %v1937 = vmax.f32 %v1873, %v1905
      %v1938 = vmax.f32 %v1874, %v1906
      %v1939 = vmax.f32 %v1875, %v1907
      %v1940 = vmax.f32 %v1876, %v1908
      %v1941 = vmax.f32 %v1877, %v1909
      %v1942 = vmax.f32 %v1878, %v1910
      %v1943 = vmax.f32 %v1879, %v1911
      %v1944 = vmax.f32 %v1880, %v1912
      %v1945 = vmax.f32 %v1881, %v1913
      %v1946 = vmax.f32 %v1882, %v1914
      %v1947 = vmax.f32 %v1883, %v1915
      %v1948 = vmax.f32 %v1884, %v1916
      %v1949 = vmax.f32 %v1885, %v1917
      %v1950 = vmax.f32 %v1886, %v1918
      %v1951 = vmax.f32 %v1887, %v1919
      %v1952 = vmax.f32 %v1888, %v1920
      %v1953 = vsel %vm1213, %v1757, -inf
      %v1954 = vsel %vm1214, %v1758, -inf
      %v1955 = vsel %vm1215, %v1759, -inf
      %v1956 = vsel %vm1216, %v1760, -inf
      %v1957 = vsel %vm1217, %v1729, -inf
      %v1958 = vsel %vm1218, %v1730, -inf
      %v1959 = vsel %vm1219, %v1731, -inf
      %v1960 = vsel %vm1220, %v1732, -inf
      %v1961 = vsel %vm1221, %v1733, -inf
      %v1962 = vsel %vm1222, %v1734, -inf
      %v1963 = vsel %vm1223, %v1735, -inf
      %v1964 = vsel %vm1224, %v1736, -inf
      %v1965 = vsel %vm1225, %v1737, -inf
      %v1966 = vsel %vm1226, %v1738, -inf
      %v1967 = vsel %vm1227, %v1739, -inf
      %v1968 = vsel %vm1228, %v1740, -inf
      %v1969 = vsel %vm1229, %v1741, -inf
      %v1970 = vsel %vm1230, %v1742, -inf
      %v1971 = vsel %vm1231, %v1743, -inf
      %v1972 = vsel %vm1232, %v1744, -inf
      %v1973 = vsel %vm1233, %v1745, -inf
      %v1974 = vsel %vm1234, %v1746, -inf
      %v1975 = vsel %vm1235, %v1747, -inf
      %v1976 = vsel %vm1236, %v1748, -inf
      %v1977 = vsel %vm1237, %v1749, -inf
      %v1978 = vsel %vm1238, %v1750, -inf
      %v1979 = vsel %vm1239, %v1751, -inf
      %v1980 = vsel %vm1240, %v1752, -inf
      %v1981 = vsel %vm1241, %v1753, -inf
      %v1982 = vsel %vm1242, %v1754, -inf
      %v1983 = vsel %vm1243, %v1755, -inf
      %v1984 = vsel %vm1244, %v1756, -inf
      %v1985 = vmax.f32 %v1921, %v1953
      %v1986 = vmax.f32 %v1922, %v1954
      %v1987 = vmax.f32 %v1923, %v1955
      %v1988 = vmax.f32 %v1924, %v1956
      %v1989 = vmax.f32 %v1925, %v1957
      %v1990 = vmax.f32 %v1926, %v1958
      %v1991 = vmax.f32 %v1927, %v1959
      %v1992 = vmax.f32 %v1928, %v1960
      %v1993 = vmax.f32 %v1929, %v1961
      %v1994 = vmax.f32 %v1930, %v1962
      %v1995 = vmax.f32 %v1931, %v1963
      %v1996 = vmax.f32 %v1932, %v1964
      %v1997 = vmax.f32 %v1933, %v1965
      %v1998 = vmax.f32 %v1934, %v1966
      %v1999 = vmax.f32 %v1935, %v1967
      %v2000 = vmax.f32 %v1936, %v1968
      %v2001 = vmax.f32 %v1937, %v1969
      %v2002 = vmax.f32 %v1938, %v1970
      %v2003 = vmax.f32 %v1939, %v1971
      %v2004 = vmax.f32 %v1940, %v1972
      %v2005 = vmax.f32 %v1941, %v1973
      %v2006 = vmax.f32 %v1942, %v1974
      %v2007 = vmax.f32 %v1943, %v1975
      %v2008 = vmax.f32 %v1944, %v1976
      %v2009 = vmax.f32 %v1945, %v1977
      %v2010 = vmax.f32 %v1946, %v1978
      %v2011 = vmax.f32 %v1947, %v1979
      %v2012 = vmax.f32 %v1948, %v1980
      %v2013 = vmax.f32 %v1949, %v1981
      %v2014 = vmax.f32 %v1950, %v1982
      %v2015 = vmax.f32 %v1951, %v1983
      %v2016 = vmax.f32 %v1952, %v1984
      %v2017 = vrot.slane %v1985, 1
      %v2018 = vrot.slane %v1986, 1
      %v2019 = vrot.slane %v1987, 1
      %v2020 = vrot.slane %v1988, 1
      %v2021 = vrot.slane %v1989, 1
      %v2022 = vrot.slane %v1990, 1
      %v2023 = vrot.slane %v1991, 1
      %v2024 = vrot.slane %v1992, 1
      %v2025 = vrot.slane %v1993, 1
      %v2026 = vrot.slane %v1994, 1
      %v2027 = vrot.slane %v1995, 1
      %v2028 = vrot.slane %v1996, 1
      %v2029 = vrot.slane %v1997, 1
      %v2030 = vrot.slane %v1998, 1
      %v2031 = vrot.slane %v1999, 1
      %v2032 = vrot.slane %v2000, 1
      %v2033 = vrot.slane %v2001, 1
      %v2034 = vrot.slane %v2002, 1
      %v2035 = vrot.slane %v2003, 1
      %v2036 = vrot.slane %v2004, 1
      %v2037 = vrot.slane %v2005, 1
      %v2038 = vrot.slane %v2006, 1
      %v2039 = vrot.slane %v2007, 1
      %v2040 = vrot.slane %v2008, 1
      %v2041 = vrot.slane %v2009, 1
      %v2042 = vrot.slane %v2010, 1
      %v2043 = vrot.slane %v2011, 1
      %v2044 = vrot.slane %v2012, 1
      %v2045 = vrot.slane %v2013, 1
      %v2046 = vrot.slane %v2014, 1
      %v2047 = vrot.slane %v2015, 1
      %v2048 = vrot.slane %v2016, 1
      %v2049 = vsel %vm1277, %v2047, %v2048
      %v2050 = vsel %vm1277, %v2046, %v2047
      %v2051 = vsel %vm1277, %v2045, %v2046
      %v2052 = vsel %vm1277, %v2044, %v2045
      %v2053 = vsel %vm1277, %v2043, %v2044
      %v2054 = vsel %vm1277, %v2042, %v2043
      %v2055 = vsel %vm1277, %v2041, %v2042
      %v2056 = vsel %vm1277, %v2040, %v2041
      %v2057 = vsel %vm1277, %v2039, %v2040
      %v2058 = vsel %vm1277, %v2038, %v2039
      %v2059 = vsel %vm1277, %v2037, %v2038
      %v2060 = vsel %vm1277, %v2036, %v2037
      %v2061 = vsel %vm1277, %v2035, %v2036
      %v2062 = vsel %vm1277, %v2034, %v2035
      %v2063 = vsel %vm1277, %v2033, %v2034
      %v2064 = vsel %vm1277, %v2032, %v2033
      %v2065 = vsel %vm1277, %v2031, %v2032
      %v2066 = vsel %vm1277, %v2030, %v2031
      %v2067 = vsel %vm1277, %v2029, %v2030
      %v2068 = vsel %vm1277, %v2028, %v2029
      %v2069 = vsel %vm1277, %v2027, %v2028
      %v2070 = vsel %vm1277, %v2026, %v2027
      %v2071 = vsel %vm1277, %v2025, %v2026
      %v2072 = vsel %vm1277, %v2024, %v2025
      %v2073 = vsel %vm1277, %v2023, %v2024
      %v2074 = vsel %vm1277, %v2022, %v2023
      %v2075 = vsel %vm1277, %v2021, %v2022
      %v2076 = vsel %vm1277, %v2020, %v2021
      %v2077 = vsel %vm1277, %v2019, %v2020
      %v2078 = vsel %vm1277, %v2018, %v2019
      %v2079 = vsel %vm1277, %v2017, %v2018
      %v2080 = vsel %vm1277, %v2048, %v2017
      %v2081 = vsel %vm989, %v2079, -inf
      %v2082 = vsel %vm990, %v2078, -inf
      %v2083 = vsel %vm991, %v2077, -inf
      %v2084 = vsel %vm992, %v2076, -inf
      %v2085 = vsel %vm993, %v2075, -inf
      %v2086 = vsel %vm994, %v2074, -inf
      %v2087 = vsel %vm995, %v2073, -inf
      %v2088 = vsel %vm996, %v2072, -inf
      %v2089 = vsel %vm997, %v2071, -inf
      %v2090 = vsel %vm998, %v2070, -inf
      %v2091 = vsel %vm999, %v2069, -inf
      %v2092 = vsel %vm1000, %v2068, -inf
      %v2093 = vsel %vm1001, %v2067, -inf
      %v2094 = vsel %vm1002, %v2066, -inf
      %v2095 = vsel %vm1003, %v2065, -inf
      %v2096 = vsel %vm1004, %v2064, -inf
      %v2097 = vsel %vm1005, %v2063, -inf
      %v2098 = vsel %vm1006, %v2062, -inf
      %v2099 = vsel %vm1007, %v2061, -inf
      %v2100 = vsel %vm1008, %v2060, -inf
      %v2101 = vsel %vm1009, %v2059, -inf
      %v2102 = vsel %vm1010, %v2058, -inf
      %v2103 = vsel %vm1011, %v2057, -inf
      %v2104 = vsel %vm1012, %v2056, -inf
      %v2105 = vsel %vm1013, %v2055, -inf
      %v2106 = vsel %vm1014, %v2054, -inf
      %v2107 = vsel %vm1015, %v2053, -inf
      %v2108 = vsel %vm1016, %v2052, -inf
      %v2109 = vsel %vm1017, %v2051, -inf
      %v2110 = vsel %vm1018, %v2050, -inf
      %v2111 = vsel %vm1019, %v2049, -inf
      %v2112 = vsel %vm1020, %v2080, -inf
      %v2113 = vmax.f32 %v1985, %v2081
      %v2114 = vmax.f32 %v1986, %v2082
      %v2115 = vmax.f32 %v1987, %v2083
      %v2116 = vmax.f32 %v1988, %v2084
      %v2117 = vmax.f32 %v1989, %v2085
      %v2118 = vmax.f32 %v1990, %v2086
      %v2119 = vmax.f32 %v1991, %v2087
      %v2120 = vmax.f32 %v1992, %v2088
      %v2121 = vmax.f32 %v1993, %v2089
      %v2122 = vmax.f32 %v1994, %v2090
      %v2123 = vmax.f32 %v1995, %v2091
      %v2124 = vmax.f32 %v1996, %v2092
      %v2125 = vmax.f32 %v1997, %v2093
      %v2126 = vmax.f32 %v1998, %v2094
      %v2127 = vmax.f32 %v1999, %v2095
      %v2128 = vmax.f32 %v2000, %v2096
      %v2129 = vmax.f32 %v2001, %v2097
      %v2130 = vmax.f32 %v2002, %v2098
      %v2131 = vmax.f32 %v2003, %v2099
      %v2132 = vmax.f32 %v2004, %v2100
      %v2133 = vmax.f32 %v2005, %v2101
      %v2134 = vmax.f32 %v2006, %v2102
      %v2135 = vmax.f32 %v2007, %v2103
      %v2136 = vmax.f32 %v2008, %v2104
      %v2137 = vmax.f32 %v2009, %v2105
      %v2138 = vmax.f32 %v2010, %v2106
      %v2139 = vmax.f32 %v2011, %v2107
      %v2140 = vmax.f32 %v2012, %v2108
      %v2141 = vmax.f32 %v2013, %v2109
      %v2142 = vmax.f32 %v2014, %v2110
      %v2143 = vmax.f32 %v2015, %v2111
      %v2144 = vmax.f32 %v2016, %v2112
      %v2145 = vrot.slane %v1985, 7
      %v2146 = vrot.slane %v1986, 7
      %v2147 = vrot.slane %v1987, 7
      %v2148 = vrot.slane %v1988, 7
      %v2149 = vrot.slane %v1989, 7
      %v2150 = vrot.slane %v1990, 7
      %v2151 = vrot.slane %v1991, 7
      %v2152 = vrot.slane %v1992, 7
      %v2153 = vrot.slane %v1993, 7
      %v2154 = vrot.slane %v1994, 7
      %v2155 = vrot.slane %v1995, 7
      %v2156 = vrot.slane %v1996, 7
      %v2157 = vrot.slane %v1997, 7
      %v2158 = vrot.slane %v1998, 7
      %v2159 = vrot.slane %v1999, 7
      %v2160 = vrot.slane %v2000, 7
      %v2161 = vrot.slane %v2001, 7
      %v2162 = vrot.slane %v2002, 7
      %v2163 = vrot.slane %v2003, 7
      %v2164 = vrot.slane %v2004, 7
      %v2165 = vrot.slane %v2005, 7
      %v2166 = vrot.slane %v2006, 7
      %v2167 = vrot.slane %v2007, 7
      %v2168 = vrot.slane %v2008, 7
      %v2169 = vrot.slane %v2009, 7
      %v2170 = vrot.slane %v2010, 7
      %v2171 = vrot.slane %v2011, 7
      %v2172 = vrot.slane %v2012, 7
      %v2173 = vrot.slane %v2013, 7
      %v2174 = vrot.slane %v2014, 7
      %v2175 = vrot.slane %v2015, 7
      %v2176 = vrot.slane %v2016, 7
      %v2177 = vsel %vm1406, %v2175, %v2176
      %v2178 = vsel %vm1406, %v2174, %v2175
      %v2179 = vsel %vm1406, %v2173, %v2174
      %v2180 = vsel %vm1406, %v2172, %v2173
      %v2181 = vsel %vm1406, %v2171, %v2172
      %v2182 = vsel %vm1406, %v2170, %v2171
      %v2183 = vsel %vm1406, %v2169, %v2170
      %v2184 = vsel %vm1406, %v2168, %v2169
      %v2185 = vsel %vm1406, %v2167, %v2168
      %v2186 = vsel %vm1406, %v2166, %v2167
      %v2187 = vsel %vm1406, %v2165, %v2166
      %v2188 = vsel %vm1406, %v2164, %v2165
      %v2189 = vsel %vm1406, %v2163, %v2164
      %v2190 = vsel %vm1406, %v2162, %v2163
      %v2191 = vsel %vm1406, %v2161, %v2162
      %v2192 = vsel %vm1406, %v2160, %v2161
      %v2193 = vsel %vm1406, %v2159, %v2160
      %v2194 = vsel %vm1406, %v2158, %v2159
      %v2195 = vsel %vm1406, %v2157, %v2158
      %v2196 = vsel %vm1406, %v2156, %v2157
      %v2197 = vsel %vm1406, %v2155, %v2156
      %v2198 = vsel %vm1406, %v2154, %v2155
      %v2199 = vsel %vm1406, %v2153, %v2154
      %v2200 = vsel %vm1406, %v2152, %v2153
      %v2201 = vsel %vm1406, %v2151, %v2152
      %v2202 = vsel %vm1406, %v2150, %v2151
      %v2203 = vsel %vm1406, %v2149, %v2150
      %v2204 = vsel %vm1406, %v2148, %v2149
      %v2205 = vsel %vm1406, %v2147, %v2148
      %v2206 = vsel %vm1406, %v2146, %v2147
      %v2207 = vsel %vm1406, %v2145, %v2146
      %v2208 = vsel %vm1406, %v2176, %v2145
      %v2209 = vsel %vm1021, %v2208, -inf
      %v2210 = vsel %vm1022, %v2207, -inf
      %v2211 = vsel %vm1023, %v2206, -inf
      %v2212 = vsel %vm1024, %v2205, -inf
      %v2213 = vsel %vm1025, %v2204, -inf
      %v2214 = vsel %vm1026, %v2203, -inf
      %v2215 = vsel %vm1027, %v2202, -inf
      %v2216 = vsel %vm1028, %v2201, -inf
      %v2217 = vsel %vm1029, %v2200, -inf
      %v2218 = vsel %vm1030, %v2199, -inf
      %v2219 = vsel %vm1031, %v2198, -inf
      %v2220 = vsel %vm1032, %v2197, -inf
      %v2221 = vsel %vm1033, %v2196, -inf
      %v2222 = vsel %vm1034, %v2195, -inf
      %v2223 = vsel %vm1035, %v2194, -inf
      %v2224 = vsel %vm1036, %v2193, -inf
      %v2225 = vsel %vm1037, %v2192, -inf
      %v2226 = vsel %vm1038, %v2191, -inf
      %v2227 = vsel %vm1039, %v2190, -inf
      %v2228 = vsel %vm1040, %v2189, -inf
      %v2229 = vsel %vm1041, %v2188, -inf
      %v2230 = vsel %vm1042, %v2187, -inf
      %v2231 = vsel %vm1043, %v2186, -inf
      %v2232 = vsel %vm1044, %v2185, -inf
      %v2233 = vsel %vm1045, %v2184, -inf
      %v2234 = vsel %vm1046, %v2183, -inf
      %v2235 = vsel %vm1047, %v2182, -inf
      %v2236 = vsel %vm1048, %v2181, -inf
      %v2237 = vsel %vm1049, %v2180, -inf
      %v2238 = vsel %vm1050, %v2179, -inf
      %v2239 = vsel %vm1051, %v2178, -inf
      %v2240 = vsel %vm1052, %v2177, -inf
      %v2241 = vmax.f32 %v2113, %v2209
      %v2242 = vmax.f32 %v2114, %v2210
      %v2243 = vmax.f32 %v2115, %v2211
      %v2244 = vmax.f32 %v2116, %v2212
      %v2245 = vmax.f32 %v2117, %v2213
      %v2246 = vmax.f32 %v2118, %v2214
      %v2247 = vmax.f32 %v2119, %v2215
      %v2248 = vmax.f32 %v2120, %v2216
      %v2249 = vmax.f32 %v2121, %v2217
      %v2250 = vmax.f32 %v2122, %v2218
      %v2251 = vmax.f32 %v2123, %v2219
      %v2252 = vmax.f32 %v2124, %v2220
      %v2253 = vmax.f32 %v2125, %v2221
      %v2254 = vmax.f32 %v2126, %v2222
      %v2255 = vmax.f32 %v2127, %v2223
      %v2256 = vmax.f32 %v2128, %v2224
      %v2257 = vmax.f32 %v2129, %v2225
      %v2258 = vmax.f32 %v2130, %v2226
      %v2259 = vmax.f32 %v2131, %v2227
      %v2260 = vmax.f32 %v2132, %v2228
      %v2261 = vmax.f32 %v2133, %v2229
      %v2262 = vmax.f32 %v2134, %v2230
      %v2263 = vmax.f32 %v2135, %v2231
      %v2264 = vmax.f32 %v2136, %v2232
      %v2265 = vmax.f32 %v2137, %v2233
      %v2266 = vmax.f32 %v2138, %v2234
      %v2267 = vmax.f32 %v2139, %v2235
      %v2268 = vmax.f32 %v2140, %v2236
      %v2269 = vmax.f32 %v2141, %v2237
      %v2270 = vmax.f32 %v2142, %v2238
      %v2271 = vmax.f32 %v2143, %v2239
      %v2272 = vmax.f32 %v2144, %v2240
      %v2273 = vrot.slane %v1985, 2
      %v2274 = vrot.slane %v1986, 2
      %v2275 = vrot.slane %v1987, 2
      %v2276 = vrot.slane %v1988, 2
      %v2277 = vrot.slane %v1989, 2
      %v2278 = vrot.slane %v1990, 2
      %v2279 = vrot.slane %v1991, 2
      %v2280 = vrot.slane %v1992, 2
      %v2281 = vrot.slane %v1993, 2
      %v2282 = vrot.slane %v1994, 2
      %v2283 = vrot.slane %v1995, 2
      %v2284 = vrot.slane %v1996, 2
      %v2285 = vrot.slane %v1997, 2
      %v2286 = vrot.slane %v1998, 2
      %v2287 = vrot.slane %v1999, 2
      %v2288 = vrot.slane %v2000, 2
      %v2289 = vrot.slane %v2001, 2
      %v2290 = vrot.slane %v2002, 2
      %v2291 = vrot.slane %v2003, 2
      %v2292 = vrot.slane %v2004, 2
      %v2293 = vrot.slane %v2005, 2
      %v2294 = vrot.slane %v2006, 2
      %v2295 = vrot.slane %v2007, 2
      %v2296 = vrot.slane %v2008, 2
      %v2297 = vrot.slane %v2009, 2
      %v2298 = vrot.slane %v2010, 2
      %v2299 = vrot.slane %v2011, 2
      %v2300 = vrot.slane %v2012, 2
      %v2301 = vrot.slane %v2013, 2
      %v2302 = vrot.slane %v2014, 2
      %v2303 = vrot.slane %v2015, 2
      %v2304 = vrot.slane %v2016, 2
      %v2305 = vsel %vm1535, %v2303, %v2304
      %v2306 = vsel %vm1535, %v2302, %v2303
      %v2307 = vsel %vm1535, %v2301, %v2302
      %v2308 = vsel %vm1535, %v2300, %v2301
      %v2309 = vsel %vm1535, %v2299, %v2300
      %v2310 = vsel %vm1535, %v2298, %v2299
      %v2311 = vsel %vm1535, %v2297, %v2298
      %v2312 = vsel %vm1535, %v2296, %v2297
      %v2313 = vsel %vm1535, %v2295, %v2296
      %v2314 = vsel %vm1535, %v2294, %v2295
      %v2315 = vsel %vm1535, %v2293, %v2294
      %v2316 = vsel %vm1535, %v2292, %v2293
      %v2317 = vsel %vm1535, %v2291, %v2292
      %v2318 = vsel %vm1535, %v2290, %v2291
      %v2319 = vsel %vm1535, %v2289, %v2290
      %v2320 = vsel %vm1535, %v2288, %v2289
      %v2321 = vsel %vm1535, %v2287, %v2288
      %v2322 = vsel %vm1535, %v2286, %v2287
      %v2323 = vsel %vm1535, %v2285, %v2286
      %v2324 = vsel %vm1535, %v2284, %v2285
      %v2325 = vsel %vm1535, %v2283, %v2284
      %v2326 = vsel %vm1535, %v2282, %v2283
      %v2327 = vsel %vm1535, %v2281, %v2282
      %v2328 = vsel %vm1535, %v2280, %v2281
      %v2329 = vsel %vm1535, %v2279, %v2280
      %v2330 = vsel %vm1535, %v2278, %v2279
      %v2331 = vsel %vm1535, %v2277, %v2278
      %v2332 = vsel %vm1535, %v2276, %v2277
      %v2333 = vsel %vm1535, %v2275, %v2276
      %v2334 = vsel %vm1535, %v2274, %v2275
      %v2335 = vsel %vm1535, %v2273, %v2274
      %v2336 = vsel %vm1535, %v2304, %v2273
      %v2337 = vsel %vm1117, %v2335, -inf
      %v2338 = vsel %vm1118, %v2334, -inf
      %v2339 = vsel %vm1119, %v2333, -inf
      %v2340 = vsel %vm1120, %v2332, -inf
      %v2341 = vsel %vm1121, %v2331, -inf
      %v2342 = vsel %vm1122, %v2330, -inf
      %v2343 = vsel %vm1123, %v2329, -inf
      %v2344 = vsel %vm1124, %v2328, -inf
      %v2345 = vsel %vm1125, %v2327, -inf
      %v2346 = vsel %vm1126, %v2326, -inf
      %v2347 = vsel %vm1127, %v2325, -inf
      %v2348 = vsel %vm1128, %v2324, -inf
      %v2349 = vsel %vm1129, %v2323, -inf
      %v2350 = vsel %vm1130, %v2322, -inf
      %v2351 = vsel %vm1131, %v2321, -inf
      %v2352 = vsel %vm1132, %v2320, -inf
      %v2353 = vsel %vm1133, %v2319, -inf
      %v2354 = vsel %vm1134, %v2318, -inf
      %v2355 = vsel %vm1135, %v2317, -inf
      %v2356 = vsel %vm1136, %v2316, -inf
      %v2357 = vsel %vm1137, %v2315, -inf
      %v2358 = vsel %vm1138, %v2314, -inf
      %v2359 = vsel %vm1139, %v2313, -inf
      %v2360 = vsel %vm1140, %v2312, -inf
      %v2361 = vsel %vm1141, %v2311, -inf
      %v2362 = vsel %vm1142, %v2310, -inf
      %v2363 = vsel %vm1143, %v2309, -inf
      %v2364 = vsel %vm1144, %v2308, -inf
      %v2365 = vsel %vm1145, %v2307, -inf
      %v2366 = vsel %vm1146, %v2306, -inf
      %v2367 = vsel %vm1147, %v2305, -inf
      %v2368 = vsel %vm1148, %v2336, -inf
      %v2369 = vmax.f32 %v2241, %v2337
      %v2370 = vmax.f32 %v2242, %v2338
      %v2371 = vmax.f32 %v2243, %v2339
      %v2372 = vmax.f32 %v2244, %v2340
      %v2373 = vmax.f32 %v2245, %v2341
      %v2374 = vmax.f32 %v2246, %v2342
      %v2375 = vmax.f32 %v2247, %v2343
      %v2376 = vmax.f32 %v2248, %v2344
      %v2377 = vmax.f32 %v2249, %v2345
      %v2378 = vmax.f32 %v2250, %v2346
      %v2379 = vmax.f32 %v2251, %v2347
      %v2380 = vmax.f32 %v2252, %v2348
      %v2381 = vmax.f32 %v2253, %v2349
      %v2382 = vmax.f32 %v2254, %v2350
      %v2383 = vmax.f32 %v2255, %v2351
      %v2384 = vmax.f32 %v2256, %v2352
      %v2385 = vmax.f32 %v2257, %v2353
      %v2386 = vmax.f32 %v2258, %v2354
      %v2387 = vmax.f32 %v2259, %v2355
      %v2388 = vmax.f32 %v2260, %v2356
      %v2389 = vmax.f32 %v2261, %v2357
      %v2390 = vmax.f32 %v2262, %v2358
      %v2391 = vmax.f32 %v2263, %v2359
      %v2392 = vmax.f32 %v2264, %v2360
      %v2393 = vmax.f32 %v2265, %v2361
      %v2394 = vmax.f32 %v2266, %v2362
      %v2395 = vmax.f32 %v2267, %v2363
      %v2396 = vmax.f32 %v2268, %v2364
      %v2397 = vmax.f32 %v2269, %v2365
      %v2398 = vmax.f32 %v2270, %v2366
      %v2399 = vmax.f32 %v2271, %v2367
      %v2400 = vmax.f32 %v2272, %v2368
      %v2401 = vrot.slane %v1985, 6
      %v2402 = vrot.slane %v1986, 6
      %v2403 = vrot.slane %v1987, 6
      %v2404 = vrot.slane %v1988, 6
      %v2405 = vrot.slane %v1989, 6
      %v2406 = vrot.slane %v1990, 6
      %v2407 = vrot.slane %v1991, 6
      %v2408 = vrot.slane %v1992, 6
      %v2409 = vrot.slane %v1993, 6
      %v2410 = vrot.slane %v1994, 6
      %v2411 = vrot.slane %v1995, 6
      %v2412 = vrot.slane %v1996, 6
      %v2413 = vrot.slane %v1997, 6
      %v2414 = vrot.slane %v1998, 6
      %v2415 = vrot.slane %v1999, 6
      %v2416 = vrot.slane %v2000, 6
      %v2417 = vrot.slane %v2001, 6
      %v2418 = vrot.slane %v2002, 6
      %v2419 = vrot.slane %v2003, 6
      %v2420 = vrot.slane %v2004, 6
      %v2421 = vrot.slane %v2005, 6
      %v2422 = vrot.slane %v2006, 6
      %v2423 = vrot.slane %v2007, 6
      %v2424 = vrot.slane %v2008, 6
      %v2425 = vrot.slane %v2009, 6
      %v2426 = vrot.slane %v2010, 6
      %v2427 = vrot.slane %v2011, 6
      %v2428 = vrot.slane %v2012, 6
      %v2429 = vrot.slane %v2013, 6
      %v2430 = vrot.slane %v2014, 6
      %v2431 = vrot.slane %v2015, 6
      %v2432 = vrot.slane %v2016, 6
      %v2433 = vsel %vm1664, %v2431, %v2432
      %v2434 = vsel %vm1664, %v2430, %v2431
      %v2435 = vsel %vm1664, %v2429, %v2430
      %v2436 = vsel %vm1664, %v2428, %v2429
      %v2437 = vsel %vm1664, %v2427, %v2428
      %v2438 = vsel %vm1664, %v2426, %v2427
      %v2439 = vsel %vm1664, %v2425, %v2426
      %v2440 = vsel %vm1664, %v2424, %v2425
      %v2441 = vsel %vm1664, %v2423, %v2424
      %v2442 = vsel %vm1664, %v2422, %v2423
      %v2443 = vsel %vm1664, %v2421, %v2422
      %v2444 = vsel %vm1664, %v2420, %v2421
      %v2445 = vsel %vm1664, %v2419, %v2420
      %v2446 = vsel %vm1664, %v2418, %v2419
      %v2447 = vsel %vm1664, %v2417, %v2418
      %v2448 = vsel %vm1664, %v2416, %v2417
      %v2449 = vsel %vm1664, %v2415, %v2416
      %v2450 = vsel %vm1664, %v2414, %v2415
      %v2451 = vsel %vm1664, %v2413, %v2414
      %v2452 = vsel %vm1664, %v2412, %v2413
      %v2453 = vsel %vm1664, %v2411, %v2412
      %v2454 = vsel %vm1664, %v2410, %v2411
      %v2455 = vsel %vm1664, %v2409, %v2410
      %v2456 = vsel %vm1664, %v2408, %v2409
      %v2457 = vsel %vm1664, %v2407, %v2408
      %v2458 = vsel %vm1664, %v2406, %v2407
      %v2459 = vsel %vm1664, %v2405, %v2406
      %v2460 = vsel %vm1664, %v2404, %v2405
      %v2461 = vsel %vm1664, %v2403, %v2404
      %v2462 = vsel %vm1664, %v2402, %v2403
      %v2463 = vsel %vm1664, %v2401, %v2402
      %v2464 = vsel %vm1664, %v2432, %v2401
      %v2465 = vsel %vm1149, %v2464, -inf
      %v2466 = vsel %vm1150, %v2463, -inf
      %v2467 = vsel %vm1151, %v2462, -inf
      %v2468 = vsel %vm1152, %v2461, -inf
      %v2469 = vsel %vm1153, %v2460, -inf
      %v2470 = vsel %vm1154, %v2459, -inf
      %v2471 = vsel %vm1155, %v2458, -inf
      %v2472 = vsel %vm1156, %v2457, -inf
      %v2473 = vsel %vm1157, %v2456, -inf
      %v2474 = vsel %vm1158, %v2455, -inf
      %v2475 = vsel %vm1159, %v2454, -inf
      %v2476 = vsel %vm1160, %v2453, -inf
      %v2477 = vsel %vm1161, %v2452, -inf
      %v2478 = vsel %vm1162, %v2451, -inf
      %v2479 = vsel %vm1163, %v2450, -inf
      %v2480 = vsel %vm1164, %v2449, -inf
      %v2481 = vsel %vm1165, %v2448, -inf
      %v2482 = vsel %vm1166, %v2447, -inf
      %v2483 = vsel %vm1167, %v2446, -inf
      %v2484 = vsel %vm1168, %v2445, -inf
      %v2485 = vsel %vm1169, %v2444, -inf
      %v2486 = vsel %vm1170, %v2443, -inf
      %v2487 = vsel %vm1171, %v2442, -inf
      %v2488 = vsel %vm1172, %v2441, -inf
      %v2489 = vsel %vm1173, %v2440, -inf
      %v2490 = vsel %vm1174, %v2439, -inf
      %v2491 = vsel %vm1175, %v2438, -inf
      %v2492 = vsel %vm1176, %v2437, -inf
      %v2493 = vsel %vm1177, %v2436, -inf
      %v2494 = vsel %vm1178, %v2435, -inf
      %v2495 = vsel %vm1179, %v2434, -inf
      %v2496 = vsel %vm1180, %v2433, -inf
      %v2497 = vmax.f32 %v2369, %v2465
      %v2498 = vmax.f32 %v2370, %v2466
      %v2499 = vmax.f32 %v2371, %v2467
      %v2500 = vmax.f32 %v2372, %v2468
      %v2501 = vmax.f32 %v2373, %v2469
      %v2502 = vmax.f32 %v2374, %v2470
      %v2503 = vmax.f32 %v2375, %v2471
      %v2504 = vmax.f32 %v2376, %v2472
      %v2505 = vmax.f32 %v2377, %v2473
      %v2506 = vmax.f32 %v2378, %v2474
      %v2507 = vmax.f32 %v2379, %v2475
      %v2508 = vmax.f32 %v2380, %v2476
      %v2509 = vmax.f32 %v2381, %v2477
      %v2510 = vmax.f32 %v2382, %v2478
      %v2511 = vmax.f32 %v2383, %v2479
      %v2512 = vmax.f32 %v2384, %v2480
      %v2513 = vmax.f32 %v2385, %v2481
      %v2514 = vmax.f32 %v2386, %v2482
      %v2515 = vmax.f32 %v2387, %v2483
      %v2516 = vmax.f32 %v2388, %v2484
      %v2517 = vmax.f32 %v2389, %v2485
      %v2518 = vmax.f32 %v2390, %v2486
      %v2519 = vmax.f32 %v2391, %v2487
      %v2520 = vmax.f32 %v2392, %v2488
      %v2521 = vmax.f32 %v2393, %v2489
      %v2522 = vmax.f32 %v2394, %v2490
      %v2523 = vmax.f32 %v2395, %v2491
      %v2524 = vmax.f32 %v2396, %v2492
      %v2525 = vmax.f32 %v2397, %v2493
      %v2526 = vmax.f32 %v2398, %v2494
      %v2527 = vmax.f32 %v2399, %v2495
      %v2528 = vmax.f32 %v2400, %v2496
      %v2529 = vsel %vm1053, %v2499, -inf
      %v2530 = vsel %vm1054, %v2500, -inf
      %v2531 = vsel %vm1055, %v2501, -inf
      %v2532 = vsel %vm1056, %v2502, -inf
      %v2533 = vsel %vm1057, %v2503, -inf
      %v2534 = vsel %vm1058, %v2504, -inf
      %v2535 = vsel %vm1059, %v2505, -inf
      %v2536 = vsel %vm1060, %v2506, -inf
      %v2537 = vsel %vm1061, %v2507, -inf
      %v2538 = vsel %vm1062, %v2508, -inf
      %v2539 = vsel %vm1063, %v2509, -inf
      %v2540 = vsel %vm1064, %v2510, -inf
      %v2541 = vsel %vm1065, %v2511, -inf
      %v2542 = vsel %vm1066, %v2512, -inf
      %v2543 = vsel %vm1067, %v2513, -inf
      %v2544 = vsel %vm1068, %v2514, -inf
      %v2545 = vsel %vm1069, %v2515, -inf
      %v2546 = vsel %vm1070, %v2516, -inf
      %v2547 = vsel %vm1071, %v2517, -inf
      %v2548 = vsel %vm1072, %v2518, -inf
      %v2549 = vsel %vm1073, %v2519, -inf
      %v2550 = vsel %vm1074, %v2520, -inf
      %v2551 = vsel %vm1075, %v2521, -inf
      %v2552 = vsel %vm1076, %v2522, -inf
      %v2553 = vsel %vm1077, %v2523, -inf
      %v2554 = vsel %vm1078, %v2524, -inf
      %v2555 = vsel %vm1079, %v2525, -inf
      %v2556 = vsel %vm1080, %v2526, -inf
      %v2557 = vsel %vm1081, %v2527, -inf
      %v2558 = vsel %vm1082, %v2528, -inf
      %v2559 = vsel %vm1083, %v2497, -inf
      %v2560 = vsel %vm1084, %v2498, -inf
      %v2561 = vmax.f32 %v2497, %v2529
      %v2562 = vmax.f32 %v2498, %v2530
      %v2563 = vmax.f32 %v2499, %v2531
      %v2564 = vmax.f32 %v2500, %v2532
      %v2565 = vmax.f32 %v2501, %v2533
      %v2566 = vmax.f32 %v2502, %v2534
      %v2567 = vmax.f32 %v2503, %v2535
      %v2568 = vmax.f32 %v2504, %v2536
      %v2569 = vmax.f32 %v2505, %v2537
      %v2570 = vmax.f32 %v2506, %v2538
      %v2571 = vmax.f32 %v2507, %v2539
      %v2572 = vmax.f32 %v2508, %v2540
      %v2573 = vmax.f32 %v2509, %v2541
      %v2574 = vmax.f32 %v2510, %v2542
      %v2575 = vmax.f32 %v2511, %v2543
      %v2576 = vmax.f32 %v2512, %v2544
      %v2577 = vmax.f32 %v2513, %v2545
      %v2578 = vmax.f32 %v2514, %v2546
      %v2579 = vmax.f32 %v2515, %v2547
      %v2580 = vmax.f32 %v2516, %v2548
      %v2581 = vmax.f32 %v2517, %v2549
      %v2582 = vmax.f32 %v2518, %v2550
      %v2583 = vmax.f32 %v2519, %v2551
      %v2584 = vmax.f32 %v2520, %v2552
      %v2585 = vmax.f32 %v2521, %v2553
      %v2586 = vmax.f32 %v2522, %v2554
      %v2587 = vmax.f32 %v2523, %v2555
      %v2588 = vmax.f32 %v2524, %v2556
      %v2589 = vmax.f32 %v2525, %v2557
      %v2590 = vmax.f32 %v2526, %v2558
      %v2591 = vmax.f32 %v2527, %v2559
      %v2592 = vmax.f32 %v2528, %v2560
      %v2593 = vsel %vm1085, %v2527, -inf
      %v2594 = vsel %vm1086, %v2528, -inf
      %v2595 = vsel %vm1087, %v2497, -inf
      %v2596 = vsel %vm1088, %v2498, -inf
      %v2597 = vsel %vm1089, %v2499, -inf
      %v2598 = vsel %vm1090, %v2500, -inf
      %v2599 = vsel %vm1091, %v2501, -inf
      %v2600 = vsel %vm1092, %v2502, -inf
      %v2601 = vsel %vm1093, %v2503, -inf
      %v2602 = vsel %vm1094, %v2504, -inf
      %v2603 = vsel %vm1095, %v2505, -inf
      %v2604 = vsel %vm1096, %v2506, -inf
      %v2605 = vsel %vm1097, %v2507, -inf
      %v2606 = vsel %vm1098, %v2508, -inf
      %v2607 = vsel %vm1099, %v2509, -inf
      %v2608 = vsel %vm1100, %v2510, -inf
      %v2609 = vsel %vm1101, %v2511, -inf
      %v2610 = vsel %vm1102, %v2512, -inf
      %v2611 = vsel %vm1103, %v2513, -inf
      %v2612 = vsel %vm1104, %v2514, -inf
      %v2613 = vsel %vm1105, %v2515, -inf
      %v2614 = vsel %vm1106, %v2516, -inf
      %v2615 = vsel %vm1107, %v2517, -inf
      %v2616 = vsel %vm1108, %v2518, -inf
      %v2617 = vsel %vm1109, %v2519, -inf
      %v2618 = vsel %vm1110, %v2520, -inf
      %v2619 = vsel %vm1111, %v2521, -inf
      %v2620 = vsel %vm1112, %v2522, -inf
      %v2621 = vsel %vm1113, %v2523, -inf
      %v2622 = vsel %vm1114, %v2524, -inf
      %v2623 = vsel %vm1115, %v2525, -inf
      %v2624 = vsel %vm1116, %v2526, -inf
      %v2625 = vmax.f32 %v2561, %v2593
      %v2626 = vmax.f32 %v2562, %v2594
      %v2627 = vmax.f32 %v2563, %v2595
      %v2628 = vmax.f32 %v2564, %v2596
      %v2629 = vmax.f32 %v2565, %v2597
      %v2630 = vmax.f32 %v2566, %v2598
      %v2631 = vmax.f32 %v2567, %v2599
      %v2632 = vmax.f32 %v2568, %v2600
      %v2633 = vmax.f32 %v2569, %v2601
      %v2634 = vmax.f32 %v2570, %v2602
      %v2635 = vmax.f32 %v2571, %v2603
      %v2636 = vmax.f32 %v2572, %v2604
      %v2637 = vmax.f32 %v2573, %v2605
      %v2638 = vmax.f32 %v2574, %v2606
      %v2639 = vmax.f32 %v2575, %v2607
      %v2640 = vmax.f32 %v2576, %v2608
      %v2641 = vmax.f32 %v2577, %v2609
      %v2642 = vmax.f32 %v2578, %v2610
      %v2643 = vmax.f32 %v2579, %v2611
      %v2644 = vmax.f32 %v2580, %v2612
      %v2645 = vmax.f32 %v2581, %v2613
      %v2646 = vmax.f32 %v2582, %v2614
      %v2647 = vmax.f32 %v2583, %v2615
      %v2648 = vmax.f32 %v2584, %v2616
      %v2649 = vmax.f32 %v2585, %v2617
      %v2650 = vmax.f32 %v2586, %v2618
      %v2651 = vmax.f32 %v2587, %v2619
      %v2652 = vmax.f32 %v2588, %v2620
      %v2653 = vmax.f32 %v2589, %v2621
      %v2654 = vmax.f32 %v2590, %v2622
      %v2655 = vmax.f32 %v2591, %v2623
      %v2656 = vmax.f32 %v2592, %v2624
      %v2657 = vsel %vm1181, %v2501, -inf
      %v2658 = vsel %vm1182, %v2502, -inf
      %v2659 = vsel %vm1183, %v2503, -inf
      %v2660 = vsel %vm1184, %v2504, -inf
      %v2661 = vsel %vm1185, %v2505, -inf
      %v2662 = vsel %vm1186, %v2506, -inf
      %v2663 = vsel %vm1187, %v2507, -inf
      %v2664 = vsel %vm1188, %v2508, -inf
      %v2665 = vsel %vm1189, %v2509, -inf
      %v2666 = vsel %vm1190, %v2510, -inf
      %v2667 = vsel %vm1191, %v2511, -inf
      %v2668 = vsel %vm1192, %v2512, -inf
      %v2669 = vsel %vm1193, %v2513, -inf
      %v2670 = vsel %vm1194, %v2514, -inf
      %v2671 = vsel %vm1195, %v2515, -inf
      %v2672 = vsel %vm1196, %v2516, -inf
      %v2673 = vsel %vm1197, %v2517, -inf
      %v2674 = vsel %vm1198, %v2518, -inf
      %v2675 = vsel %vm1199, %v2519, -inf
      %v2676 = vsel %vm1200, %v2520, -inf
      %v2677 = vsel %vm1201, %v2521, -inf
      %v2678 = vsel %vm1202, %v2522, -inf
      %v2679 = vsel %vm1203, %v2523, -inf
      %v2680 = vsel %vm1204, %v2524, -inf
      %v2681 = vsel %vm1205, %v2525, -inf
      %v2682 = vsel %vm1206, %v2526, -inf
      %v2683 = vsel %vm1207, %v2527, -inf
      %v2684 = vsel %vm1208, %v2528, -inf
      %v2685 = vsel %vm1209, %v2497, -inf
      %v2686 = vsel %vm1210, %v2498, -inf
      %v2687 = vsel %vm1211, %v2499, -inf
      %v2688 = vsel %vm1212, %v2500, -inf
      %v2689 = vmax.f32 %v2625, %v2657
      %v2690 = vmax.f32 %v2626, %v2658
      %v2691 = vmax.f32 %v2627, %v2659
      %v2692 = vmax.f32 %v2628, %v2660
      %v2693 = vmax.f32 %v2629, %v2661
      %v2694 = vmax.f32 %v2630, %v2662
      %v2695 = vmax.f32 %v2631, %v2663
      %v2696 = vmax.f32 %v2632, %v2664
      %v2697 = vmax.f32 %v2633, %v2665
      %v2698 = vmax.f32 %v2634, %v2666
      %v2699 = vmax.f32 %v2635, %v2667
      %v2700 = vmax.f32 %v2636, %v2668
      %v2701 = vmax.f32 %v2637, %v2669
      %v2702 = vmax.f32 %v2638, %v2670
      %v2703 = vmax.f32 %v2639, %v2671
      %v2704 = vmax.f32 %v2640, %v2672
      %v2705 = vmax.f32 %v2641, %v2673
      %v2706 = vmax.f32 %v2642, %v2674
      %v2707 = vmax.f32 %v2643, %v2675
      %v2708 = vmax.f32 %v2644, %v2676
      %v2709 = vmax.f32 %v2645, %v2677
      %v2710 = vmax.f32 %v2646, %v2678
      %v2711 = vmax.f32 %v2647, %v2679
      %v2712 = vmax.f32 %v2648, %v2680
      %v2713 = vmax.f32 %v2649, %v2681
      %v2714 = vmax.f32 %v2650, %v2682
      %v2715 = vmax.f32 %v2651, %v2683
      %v2716 = vmax.f32 %v2652, %v2684
      %v2717 = vmax.f32 %v2653, %v2685
      %v2718 = vmax.f32 %v2654, %v2686
      %v2719 = vmax.f32 %v2655, %v2687
      %v2720 = vmax.f32 %v2656, %v2688
      %v2721 = vsel %vm1213, %v2525, -inf
      %v2722 = vsel %vm1214, %v2526, -inf
      %v2723 = vsel %vm1215, %v2527, -inf
      %v2724 = vsel %vm1216, %v2528, -inf
      %v2725 = vsel %vm1217, %v2497, -inf
      %v2726 = vsel %vm1218, %v2498, -inf
      %v2727 = vsel %vm1219, %v2499, -inf
      %v2728 = vsel %vm1220, %v2500, -inf
      %v2729 = vsel %vm1221, %v2501, -inf
      %v2730 = vsel %vm1222, %v2502, -inf
      %v2731 = vsel %vm1223, %v2503, -inf
      %v2732 = vsel %vm1224, %v2504, -inf
      %v2733 = vsel %vm1225, %v2505, -inf
      %v2734 = vsel %vm1226, %v2506, -inf
      %v2735 = vsel %vm1227, %v2507, -inf
      %v2736 = vsel %vm1228, %v2508, -inf
      %v2737 = vsel %vm1229, %v2509, -inf
      %v2738 = vsel %vm1230, %v2510, -inf
      %v2739 = vsel %vm1231, %v2511, -inf
      %v2740 = vsel %vm1232, %v2512, -inf
      %v2741 = vsel %vm1233, %v2513, -inf
      %v2742 = vsel %vm1234, %v2514, -inf
      %v2743 = vsel %vm1235, %v2515, -inf
      %v2744 = vsel %vm1236, %v2516, -inf
      %v2745 = vsel %vm1237, %v2517, -inf
      %v2746 = vsel %vm1238, %v2518, -inf
      %v2747 = vsel %vm1239, %v2519, -inf
      %v2748 = vsel %vm1240, %v2520, -inf
      %v2749 = vsel %vm1241, %v2521, -inf
      %v2750 = vsel %vm1242, %v2522, -inf
      %v2751 = vsel %vm1243, %v2523, -inf
      %v2752 = vsel %vm1244, %v2524, -inf
      %v2753 = vmax.f32 %v2689, %v2721
      %v2754 = vmax.f32 %v2690, %v2722
      %v2755 = vmax.f32 %v2691, %v2723
      %v2756 = vmax.f32 %v2692, %v2724
      %v2757 = vmax.f32 %v2693, %v2725
      %v2758 = vmax.f32 %v2694, %v2726
      %v2759 = vmax.f32 %v2695, %v2727
      %v2760 = vmax.f32 %v2696, %v2728
      %v2761 = vmax.f32 %v2697, %v2729
      %v2762 = vmax.f32 %v2698, %v2730
      %v2763 = vmax.f32 %v2699, %v2731
      %v2764 = vmax.f32 %v2700, %v2732
      %v2765 = vmax.f32 %v2701, %v2733
      %v2766 = vmax.f32 %v2702, %v2734
      %v2767 = vmax.f32 %v2703, %v2735
      %v2768 = vmax.f32 %v2704, %v2736
      %v2769 = vmax.f32 %v2705, %v2737
      %v2770 = vmax.f32 %v2706, %v2738
      %v2771 = vmax.f32 %v2707, %v2739
      %v2772 = vmax.f32 %v2708, %v2740
      %v2773 = vmax.f32 %v2709, %v2741
      %v2774 = vmax.f32 %v2710, %v2742
      %v2775 = vmax.f32 %v2711, %v2743
      %v2776 = vmax.f32 %v2712, %v2744
      %v2777 = vmax.f32 %v2713, %v2745
      %v2778 = vmax.f32 %v2714, %v2746
      %v2779 = vmax.f32 %v2715, %v2747
      %v2780 = vmax.f32 %v2716, %v2748
      %v2781 = vmax.f32 %v2717, %v2749
      %v2782 = vmax.f32 %v2718, %v2750
      %v2783 = vmax.f32 %v2719, %v2751
      %v2784 = vmax.f32 %v2720, %v2752
      %v2785 = vrot.slane %v2753, 1
      %v2786 = vrot.slane %v2754, 1
      %v2787 = vrot.slane %v2755, 1
      %v2788 = vrot.slane %v2756, 1
      %v2789 = vrot.slane %v2757, 1
      %v2790 = vrot.slane %v2758, 1
      %v2791 = vrot.slane %v2759, 1
      %v2792 = vrot.slane %v2760, 1
      %v2793 = vrot.slane %v2761, 1
      %v2794 = vrot.slane %v2762, 1
      %v2795 = vrot.slane %v2763, 1
      %v2796 = vrot.slane %v2764, 1
      %v2797 = vrot.slane %v2765, 1
      %v2798 = vrot.slane %v2766, 1
      %v2799 = vrot.slane %v2767, 1
      %v2800 = vrot.slane %v2768, 1
      %v2801 = vrot.slane %v2769, 1
      %v2802 = vrot.slane %v2770, 1
      %v2803 = vrot.slane %v2771, 1
      %v2804 = vrot.slane %v2772, 1
      %v2805 = vrot.slane %v2773, 1
      %v2806 = vrot.slane %v2774, 1
      %v2807 = vrot.slane %v2775, 1
      %v2808 = vrot.slane %v2776, 1
      %v2809 = vrot.slane %v2777, 1
      %v2810 = vrot.slane %v2778, 1
      %v2811 = vrot.slane %v2779, 1
      %v2812 = vrot.slane %v2780, 1
      %v2813 = vrot.slane %v2781, 1
      %v2814 = vrot.slane %v2782, 1
      %v2815 = vrot.slane %v2783, 1
      %v2816 = vrot.slane %v2784, 1
      %v2817 = vsel %vm1277, %v2815, %v2816
      %v2818 = vsel %vm1277, %v2814, %v2815
      %v2819 = vsel %vm1277, %v2813, %v2814
      %v2820 = vsel %vm1277, %v2812, %v2813
      %v2821 = vsel %vm1277, %v2811, %v2812
      %v2822 = vsel %vm1277, %v2810, %v2811
      %v2823 = vsel %vm1277, %v2809, %v2810
      %v2824 = vsel %vm1277, %v2808, %v2809
      %v2825 = vsel %vm1277, %v2807, %v2808
      %v2826 = vsel %vm1277, %v2806, %v2807
      %v2827 = vsel %vm1277, %v2805, %v2806
      %v2828 = vsel %vm1277, %v2804, %v2805
      %v2829 = vsel %vm1277, %v2803, %v2804
      %v2830 = vsel %vm1277, %v2802, %v2803
      %v2831 = vsel %vm1277, %v2801, %v2802
      %v2832 = vsel %vm1277, %v2800, %v2801
      %v2833 = vsel %vm1277, %v2799, %v2800
      %v2834 = vsel %vm1277, %v2798, %v2799
      %v2835 = vsel %vm1277, %v2797, %v2798
      %v2836 = vsel %vm1277, %v2796, %v2797
      %v2837 = vsel %vm1277, %v2795, %v2796
      %v2838 = vsel %vm1277, %v2794, %v2795
      %v2839 = vsel %vm1277, %v2793, %v2794
      %v2840 = vsel %vm1277, %v2792, %v2793
      %v2841 = vsel %vm1277, %v2791, %v2792
      %v2842 = vsel %vm1277, %v2790, %v2791
      %v2843 = vsel %vm1277, %v2789, %v2790
      %v2844 = vsel %vm1277, %v2788, %v2789
      %v2845 = vsel %vm1277, %v2787, %v2788
      %v2846 = vsel %vm1277, %v2786, %v2787
      %v2847 = vsel %vm1277, %v2785, %v2786
      %v2848 = vsel %vm1277, %v2816, %v2785
      %v2849 = vsel %vm989, %v2847, -inf
      %v2850 = vsel %vm990, %v2846, -inf
      %v2851 = vsel %vm991, %v2845, -inf
      %v2852 = vsel %vm992, %v2844, -inf
      %v2853 = vsel %vm993, %v2843, -inf
      %v2854 = vsel %vm994, %v2842, -inf
      %v2855 = vsel %vm995, %v2841, -inf
      %v2856 = vsel %vm996, %v2840, -inf
      %v2857 = vsel %vm997, %v2839, -inf
      %v2858 = vsel %vm998, %v2838, -inf
      %v2859 = vsel %vm999, %v2837, -inf
      %v2860 = vsel %vm1000, %v2836, -inf
      %v2861 = vsel %vm1001, %v2835, -inf
      %v2862 = vsel %vm1002, %v2834, -inf
      %v2863 = vsel %vm1003, %v2833, -inf
      %v2864 = vsel %vm1004, %v2832, -inf
      %v2865 = vsel %vm1005, %v2831, -inf
      %v2866 = vsel %vm1006, %v2830, -inf
      %v2867 = vsel %vm1007, %v2829, -inf
      %v2868 = vsel %vm1008, %v2828, -inf
      %v2869 = vsel %vm1009, %v2827, -inf
      %v2870 = vsel %vm1010, %v2826, -inf
      %v2871 = vsel %vm1011, %v2825, -inf
      %v2872 = vsel %vm1012, %v2824, -inf
      %v2873 = vsel %vm1013, %v2823, -inf
      %v2874 = vsel %vm1014, %v2822, -inf
      %v2875 = vsel %vm1015, %v2821, -inf
      %v2876 = vsel %vm1016, %v2820, -inf
      %v2877 = vsel %vm1017, %v2819, -inf
      %v2878 = vsel %vm1018, %v2818, -inf
      %v2879 = vsel %vm1019, %v2817, -inf
      %v2880 = vsel %vm1020, %v2848, -inf
      %v2881 = vmax.f32 %v2753, %v2849
      %v2882 = vmax.f32 %v2754, %v2850
      %v2883 = vmax.f32 %v2755, %v2851
      %v2884 = vmax.f32 %v2756, %v2852
      %v2885 = vmax.f32 %v2757, %v2853
      %v2886 = vmax.f32 %v2758, %v2854
      %v2887 = vmax.f32 %v2759, %v2855
      %v2888 = vmax.f32 %v2760, %v2856
      %v2889 = vmax.f32 %v2761, %v2857
      %v2890 = vmax.f32 %v2762, %v2858
      %v2891 = vmax.f32 %v2763, %v2859
      %v2892 = vmax.f32 %v2764, %v2860
      %v2893 = vmax.f32 %v2765, %v2861
      %v2894 = vmax.f32 %v2766, %v2862
      %v2895 = vmax.f32 %v2767, %v2863
      %v2896 = vmax.f32 %v2768, %v2864
      %v2897 = vmax.f32 %v2769, %v2865
      %v2898 = vmax.f32 %v2770, %v2866
      %v2899 = vmax.f32 %v2771, %v2867
      %v2900 = vmax.f32 %v2772, %v2868
      %v2901 = vmax.f32 %v2773, %v2869
      %v2902 = vmax.f32 %v2774, %v2870
      %v2903 = vmax.f32 %v2775, %v2871
      %v2904 = vmax.f32 %v2776, %v2872
      %v2905 = vmax.f32 %v2777, %v2873
      %v2906 = vmax.f32 %v2778, %v2874
      %v2907 = vmax.f32 %v2779, %v2875
      %v2908 = vmax.f32 %v2780, %v2876
      %v2909 = vmax.f32 %v2781, %v2877
      %v2910 = vmax.f32 %v2782, %v2878
      %v2911 = vmax.f32 %v2783, %v2879
      %v2912 = vmax.f32 %v2784, %v2880
      %v2913 = vrot.slane %v2753, 7
      %v2914 = vrot.slane %v2754, 7
      %v2915 = vrot.slane %v2755, 7
      %v2916 = vrot.slane %v2756, 7
      %v2917 = vrot.slane %v2757, 7
      %v2918 = vrot.slane %v2758, 7
      %v2919 = vrot.slane %v2759, 7
      %v2920 = vrot.slane %v2760, 7
      %v2921 = vrot.slane %v2761, 7
      %v2922 = vrot.slane %v2762, 7
      %v2923 = vrot.slane %v2763, 7
      %v2924 = vrot.slane %v2764, 7
      %v2925 = vrot.slane %v2765, 7
      %v2926 = vrot.slane %v2766, 7
      %v2927 = vrot.slane %v2767, 7
      %v2928 = vrot.slane %v2768, 7
      %v2929 = vrot.slane %v2769, 7
      %v2930 = vrot.slane %v2770, 7
      %v2931 = vrot.slane %v2771, 7
      %v2932 = vrot.slane %v2772, 7
      %v2933 = vrot.slane %v2773, 7
      %v2934 = vrot.slane %v2774, 7
      %v2935 = vrot.slane %v2775, 7
      %v2936 = vrot.slane %v2776, 7
      %v2937 = vrot.slane %v2777, 7
      %v2938 = vrot.slane %v2778, 7
      %v2939 = vrot.slane %v2779, 7
      %v2940 = vrot.slane %v2780, 7
      %v2941 = vrot.slane %v2781, 7
      %v2942 = vrot.slane %v2782, 7
      %v2943 = vrot.slane %v2783, 7
      %v2944 = vrot.slane %v2784, 7
      %v2945 = vsel %vm1406, %v2943, %v2944
      %v2946 = vsel %vm1406, %v2942, %v2943
      %v2947 = vsel %vm1406, %v2941, %v2942
      %v2948 = vsel %vm1406, %v2940, %v2941
      %v2949 = vsel %vm1406, %v2939, %v2940
      %v2950 = vsel %vm1406, %v2938, %v2939
      %v2951 = vsel %vm1406, %v2937, %v2938
      %v2952 = vsel %vm1406, %v2936, %v2937
      %v2953 = vsel %vm1406, %v2935, %v2936
      %v2954 = vsel %vm1406, %v2934, %v2935
      %v2955 = vsel %vm1406, %v2933, %v2934
      %v2956 = vsel %vm1406, %v2932, %v2933
      %v2957 = vsel %vm1406, %v2931, %v2932
      %v2958 = vsel %vm1406, %v2930, %v2931
      %v2959 = vsel %vm1406, %v2929, %v2930
      %v2960 = vsel %vm1406, %v2928, %v2929
      %v2961 = vsel %vm1406, %v2927, %v2928
      %v2962 = vsel %vm1406, %v2926, %v2927
      %v2963 = vsel %vm1406, %v2925, %v2926
      %v2964 = vsel %vm1406, %v2924, %v2925
      %v2965 = vsel %vm1406, %v2923, %v2924
      %v2966 = vsel %vm1406, %v2922, %v2923
      %v2967 = vsel %vm1406, %v2921, %v2922
      %v2968 = vsel %vm1406, %v2920, %v2921
      %v2969 = vsel %vm1406, %v2919, %v2920
      %v2970 = vsel %vm1406, %v2918, %v2919
      %v2971 = vsel %vm1406, %v2917, %v2918
      %v2972 = vsel %vm1406, %v2916, %v2917
      %v2973 = vsel %vm1406, %v2915, %v2916
      %v2974 = vsel %vm1406, %v2914, %v2915
      %v2975 = vsel %vm1406, %v2913, %v2914
      %v2976 = vsel %vm1406, %v2944, %v2913
      %v2977 = vsel %vm1021, %v2976, -inf
      %v2978 = vsel %vm1022, %v2975, -inf
      %v2979 = vsel %vm1023, %v2974, -inf
      %v2980 = vsel %vm1024, %v2973, -inf
      %v2981 = vsel %vm1025, %v2972, -inf
      %v2982 = vsel %vm1026, %v2971, -inf
      %v2983 = vsel %vm1027, %v2970, -inf
      %v2984 = vsel %vm1028, %v2969, -inf
      %v2985 = vsel %vm1029, %v2968, -inf
      %v2986 = vsel %vm1030, %v2967, -inf
      %v2987 = vsel %vm1031, %v2966, -inf
      %v2988 = vsel %vm1032, %v2965, -inf
      %v2989 = vsel %vm1033, %v2964, -inf
      %v2990 = vsel %vm1034, %v2963, -inf
      %v2991 = vsel %vm1035, %v2962, -inf
      %v2992 = vsel %vm1036, %v2961, -inf
      %v2993 = vsel %vm1037, %v2960, -inf
      %v2994 = vsel %vm1038, %v2959, -inf
      %v2995 = vsel %vm1039, %v2958, -inf
      %v2996 = vsel %vm1040, %v2957, -inf
      %v2997 = vsel %vm1041, %v2956, -inf
      %v2998 = vsel %vm1042, %v2955, -inf
      %v2999 = vsel %vm1043, %v2954, -inf
      %v3000 = vsel %vm1044, %v2953, -inf
      %v3001 = vsel %vm1045, %v2952, -inf
      %v3002 = vsel %vm1046, %v2951, -inf
      %v3003 = vsel %vm1047, %v2950, -inf
      %v3004 = vsel %vm1048, %v2949, -inf
      %v3005 = vsel %vm1049, %v2948, -inf
      %v3006 = vsel %vm1050, %v2947, -inf
      %v3007 = vsel %vm1051, %v2946, -inf
      %v3008 = vsel %vm1052, %v2945, -inf
      %v3009 = vmax.f32 %v2881, %v2977
      %v3010 = vmax.f32 %v2882, %v2978
      %v3011 = vmax.f32 %v2883, %v2979
      %v3012 = vmax.f32 %v2884, %v2980
      %v3013 = vmax.f32 %v2885, %v2981
      %v3014 = vmax.f32 %v2886, %v2982
      %v3015 = vmax.f32 %v2887, %v2983
      %v3016 = vmax.f32 %v2888, %v2984
      %v3017 = vmax.f32 %v2889, %v2985
      %v3018 = vmax.f32 %v2890, %v2986
      %v3019 = vmax.f32 %v2891, %v2987
      %v3020 = vmax.f32 %v2892, %v2988
      %v3021 = vmax.f32 %v2893, %v2989
      %v3022 = vmax.f32 %v2894, %v2990
      %v3023 = vmax.f32 %v2895, %v2991
      %v3024 = vmax.f32 %v2896, %v2992
      %v3025 = vmax.f32 %v2897, %v2993
      %v3026 = vmax.f32 %v2898, %v2994
      %v3027 = vmax.f32 %v2899, %v2995
      %v3028 = vmax.f32 %v2900, %v2996
      %v3029 = vmax.f32 %v2901, %v2997
      %v3030 = vmax.f32 %v2902, %v2998
      %v3031 = vmax.f32 %v2903, %v2999
      %v3032 = vmax.f32 %v2904, %v3000
      %v3033 = vmax.f32 %v2905, %v3001
      %v3034 = vmax.f32 %v2906, %v3002
      %v3035 = vmax.f32 %v2907, %v3003
      %v3036 = vmax.f32 %v2908, %v3004
      %v3037 = vmax.f32 %v2909, %v3005
      %v3038 = vmax.f32 %v2910, %v3006
      %v3039 = vmax.f32 %v2911, %v3007
      %v3040 = vmax.f32 %v2912, %v3008
      %v3041 = vrot.slane %v2753, 2
      %v3042 = vrot.slane %v2754, 2
      %v3043 = vrot.slane %v2755, 2
      %v3044 = vrot.slane %v2756, 2
      %v3045 = vrot.slane %v2757, 2
      %v3046 = vrot.slane %v2758, 2
      %v3047 = vrot.slane %v2759, 2
      %v3048 = vrot.slane %v2760, 2
      %v3049 = vrot.slane %v2761, 2
      %v3050 = vrot.slane %v2762, 2
      %v3051 = vrot.slane %v2763, 2
      %v3052 = vrot.slane %v2764, 2
      %v3053 = vrot.slane %v2765, 2
      %v3054 = vrot.slane %v2766, 2
      %v3055 = vrot.slane %v2767, 2
      %v3056 = vrot.slane %v2768, 2
      %v3057 = vrot.slane %v2769, 2
      %v3058 = vrot.slane %v2770, 2
      %v3059 = vrot.slane %v2771, 2
      %v3060 = vrot.slane %v2772, 2
      %v3061 = vrot.slane %v2773, 2
      %v3062 = vrot.slane %v2774, 2
      %v3063 = vrot.slane %v2775, 2
      %v3064 = vrot.slane %v2776, 2
      %v3065 = vrot.slane %v2777, 2
      %v3066 = vrot.slane %v2778, 2
      %v3067 = vrot.slane %v2779, 2
      %v3068 = vrot.slane %v2780, 2
      %v3069 = vrot.slane %v2781, 2
      %v3070 = vrot.slane %v2782, 2
      %v3071 = vrot.slane %v2783, 2
      %v3072 = vrot.slane %v2784, 2
      %v3073 = vsel %vm1535, %v3071, %v3072
      %v3074 = vsel %vm1535, %v3070, %v3071
      %v3075 = vsel %vm1535, %v3069, %v3070
      %v3076 = vsel %vm1535, %v3068, %v3069
      %v3077 = vsel %vm1535, %v3067, %v3068
      %v3078 = vsel %vm1535, %v3066, %v3067
      %v3079 = vsel %vm1535, %v3065, %v3066
      %v3080 = vsel %vm1535, %v3064, %v3065
      %v3081 = vsel %vm1535, %v3063, %v3064
      %v3082 = vsel %vm1535, %v3062, %v3063
      %v3083 = vsel %vm1535, %v3061, %v3062
      %v3084 = vsel %vm1535, %v3060, %v3061
      %v3085 = vsel %vm1535, %v3059, %v3060
      %v3086 = vsel %vm1535, %v3058, %v3059
      %v3087 = vsel %vm1535, %v3057, %v3058
      %v3088 = vsel %vm1535, %v3056, %v3057
      %v3089 = vsel %vm1535, %v3055, %v3056
      %v3090 = vsel %vm1535, %v3054, %v3055
      %v3091 = vsel %vm1535, %v3053, %v3054
      %v3092 = vsel %vm1535, %v3052, %v3053
      %v3093 = vsel %vm1535, %v3051, %v3052
      %v3094 = vsel %vm1535, %v3050, %v3051
      %v3095 = vsel %vm1535, %v3049, %v3050
      %v3096 = vsel %vm1535, %v3048, %v3049
      %v3097 = vsel %vm1535, %v3047, %v3048
      %v3098 = vsel %vm1535, %v3046, %v3047
      %v3099 = vsel %vm1535, %v3045, %v3046
      %v3100 = vsel %vm1535, %v3044, %v3045
      %v3101 = vsel %vm1535, %v3043, %v3044
      %v3102 = vsel %vm1535, %v3042, %v3043
      %v3103 = vsel %vm1535, %v3041, %v3042
      %v3104 = vsel %vm1535, %v3072, %v3041
      %v3105 = vsel %vm1117, %v3103, -inf
      %v3106 = vsel %vm1118, %v3102, -inf
      %v3107 = vsel %vm1119, %v3101, -inf
      %v3108 = vsel %vm1120, %v3100, -inf
      %v3109 = vsel %vm1121, %v3099, -inf
      %v3110 = vsel %vm1122, %v3098, -inf
      %v3111 = vsel %vm1123, %v3097, -inf
      %v3112 = vsel %vm1124, %v3096, -inf
      %v3113 = vsel %vm1125, %v3095, -inf
      %v3114 = vsel %vm1126, %v3094, -inf
      %v3115 = vsel %vm1127, %v3093, -inf
      %v3116 = vsel %vm1128, %v3092, -inf
      %v3117 = vsel %vm1129, %v3091, -inf
      %v3118 = vsel %vm1130, %v3090, -inf
      %v3119 = vsel %vm1131, %v3089, -inf
      %v3120 = vsel %vm1132, %v3088, -inf
      %v3121 = vsel %vm1133, %v3087, -inf
      %v3122 = vsel %vm1134, %v3086, -inf
      %v3123 = vsel %vm1135, %v3085, -inf
      %v3124 = vsel %vm1136, %v3084, -inf
      %v3125 = vsel %vm1137, %v3083, -inf
      %v3126 = vsel %vm1138, %v3082, -inf
      %v3127 = vsel %vm1139, %v3081, -inf
      %v3128 = vsel %vm1140, %v3080, -inf
      %v3129 = vsel %vm1141, %v3079, -inf
      %v3130 = vsel %vm1142, %v3078, -inf
      %v3131 = vsel %vm1143, %v3077, -inf
      %v3132 = vsel %vm1144, %v3076, -inf
      %v3133 = vsel %vm1145, %v3075, -inf
      %v3134 = vsel %vm1146, %v3074, -inf
      %v3135 = vsel %vm1147, %v3073, -inf
      %v3136 = vsel %vm1148, %v3104, -inf
      %v3137 = vmax.f32 %v3009, %v3105
      %v3138 = vmax.f32 %v3010, %v3106
      %v3139 = vmax.f32 %v3011, %v3107
      %v3140 = vmax.f32 %v3012, %v3108
      %v3141 = vmax.f32 %v3013, %v3109
      %v3142 = vmax.f32 %v3014, %v3110
      %v3143 = vmax.f32 %v3015, %v3111
      %v3144 = vmax.f32 %v3016, %v3112
      %v3145 = vmax.f32 %v3017, %v3113
      %v3146 = vmax.f32 %v3018, %v3114
      %v3147 = vmax.f32 %v3019, %v3115
      %v3148 = vmax.f32 %v3020, %v3116
      %v3149 = vmax.f32 %v3021, %v3117
      %v3150 = vmax.f32 %v3022, %v3118
      %v3151 = vmax.f32 %v3023, %v3119
      %v3152 = vmax.f32 %v3024, %v3120
      %v3153 = vmax.f32 %v3025, %v3121
      %v3154 = vmax.f32 %v3026, %v3122
      %v3155 = vmax.f32 %v3027, %v3123
      %v3156 = vmax.f32 %v3028, %v3124
      %v3157 = vmax.f32 %v3029, %v3125
      %v3158 = vmax.f32 %v3030, %v3126
      %v3159 = vmax.f32 %v3031, %v3127
      %v3160 = vmax.f32 %v3032, %v3128
      %v3161 = vmax.f32 %v3033, %v3129
      %v3162 = vmax.f32 %v3034, %v3130
      %v3163 = vmax.f32 %v3035, %v3131
      %v3164 = vmax.f32 %v3036, %v3132
      %v3165 = vmax.f32 %v3037, %v3133
      %v3166 = vmax.f32 %v3038, %v3134
      %v3167 = vmax.f32 %v3039, %v3135
      %v3168 = vmax.f32 %v3040, %v3136
      %v3169 = vrot.slane %v2753, 6
      %v3170 = vrot.slane %v2754, 6
      %v3171 = vrot.slane %v2755, 6
      %v3172 = vrot.slane %v2756, 6
      %v3173 = vrot.slane %v2757, 6
      %v3174 = vrot.slane %v2758, 6
      %v3175 = vrot.slane %v2759, 6
      %v3176 = vrot.slane %v2760, 6
      %v3177 = vrot.slane %v2761, 6
      %v3178 = vrot.slane %v2762, 6
      %v3179 = vrot.slane %v2763, 6
      %v3180 = vrot.slane %v2764, 6
      %v3181 = vrot.slane %v2765, 6
      %v3182 = vrot.slane %v2766, 6
      %v3183 = vrot.slane %v2767, 6
      %v3184 = vrot.slane %v2768, 6
      %v3185 = vrot.slane %v2769, 6
      %v3186 = vrot.slane %v2770, 6
      %v3187 = vrot.slane %v2771, 6
      %v3188 = vrot.slane %v2772, 6
      %v3189 = vrot.slane %v2773, 6
      %v3190 = vrot.slane %v2774, 6
      %v3191 = vrot.slane %v2775, 6
      %v3192 = vrot.slane %v2776, 6
      %v3193 = vrot.slane %v2777, 6
      %v3194 = vrot.slane %v2778, 6
      %v3195 = vrot.slane %v2779, 6
      %v3196 = vrot.slane %v2780, 6
      %v3197 = vrot.slane %v2781, 6
      %v3198 = vrot.slane %v2782, 6
      %v3199 = vrot.slane %v2783, 6
      %v3200 = vrot.slane %v2784, 6
      %v3201 = vsel %vm1664, %v3199, %v3200
      %v3202 = vsel %vm1664, %v3198, %v3199
      %v3203 = vsel %vm1664, %v3197, %v3198
      %v3204 = vsel %vm1664, %v3196, %v3197
      %v3205 = vsel %vm1664, %v3195, %v3196
      %v3206 = vsel %vm1664, %v3194, %v3195
      %v3207 = vsel %vm1664, %v3193, %v3194
      %v3208 = vsel %vm1664, %v3192, %v3193
      %v3209 = vsel %vm1664, %v3191, %v3192
      %v3210 = vsel %vm1664, %v3190, %v3191
      %v3211 = vsel %vm1664, %v3189, %v3190
      %v3212 = vsel %vm1664, %v3188, %v3189
      %v3213 = vsel %vm1664, %v3187, %v3188
      %v3214 = vsel %vm1664, %v3186, %v3187
      %v3215 = vsel %vm1664, %v3185, %v3186
      %v3216 = vsel %vm1664, %v3184, %v3185
      %v3217 = vsel %vm1664, %v3183, %v3184
      %v3218 = vsel %vm1664, %v3182, %v3183
      %v3219 = vsel %vm1664, %v3181, %v3182
      %v3220 = vsel %vm1664, %v3180, %v3181
      %v3221 = vsel %vm1664, %v3179, %v3180
      %v3222 = vsel %vm1664, %v3178, %v3179
      %v3223 = vsel %vm1664, %v3177, %v3178
      %v3224 = vsel %vm1664, %v3176, %v3177
      %v3225 = vsel %vm1664, %v3175, %v3176
      %v3226 = vsel %vm1664, %v3174, %v3175
      %v3227 = vsel %vm1664, %v3173, %v3174
      %v3228 = vsel %vm1664, %v3172, %v3173
      %v3229 = vsel %vm1664, %v3171, %v3172
      %v3230 = vsel %vm1664, %v3170, %v3171
      %v3231 = vsel %vm1664, %v3169, %v3170
      %v3232 = vsel %vm1664, %v3200, %v3169
      %v3233 = vsel %vm1149, %v3232, -inf
      %v3234 = vsel %vm1150, %v3231, -inf
      %v3235 = vsel %vm1151, %v3230, -inf
      %v3236 = vsel %vm1152, %v3229, -inf
      %v3237 = vsel %vm1153, %v3228, -inf
      %v3238 = vsel %vm1154, %v3227, -inf
      %v3239 = vsel %vm1155, %v3226, -inf
      %v3240 = vsel %vm1156, %v3225, -inf
      %v3241 = vsel %vm1157, %v3224, -inf
      %v3242 = vsel %vm1158, %v3223, -inf
      %v3243 = vsel %vm1159, %v3222, -inf
      %v3244 = vsel %vm1160, %v3221, -inf
      %v3245 = vsel %vm1161, %v3220, -inf
      %v3246 = vsel %vm1162, %v3219, -inf
      %v3247 = vsel %vm1163, %v3218, -inf
      %v3248 = vsel %vm1164, %v3217, -inf
      %v3249 = vsel %vm1165, %v3216, -inf
      %v3250 = vsel %vm1166, %v3215, -inf
      %v3251 = vsel %vm1167, %v3214, -inf
      %v3252 = vsel %vm1168, %v3213, -inf
      %v3253 = vsel %vm1169, %v3212, -inf
      %v3254 = vsel %vm1170, %v3211, -inf
      %v3255 = vsel %vm1171, %v3210, -inf
      %v3256 = vsel %vm1172, %v3209, -inf
      %v3257 = vsel %vm1173, %v3208, -inf
      %v3258 = vsel %vm1174, %v3207, -inf
      %v3259 = vsel %vm1175, %v3206, -inf
      %v3260 = vsel %vm1176, %v3205, -inf
      %v3261 = vsel %vm1177, %v3204, -inf
      %v3262 = vsel %vm1178, %v3203, -inf
      %v3263 = vsel %vm1179, %v3202, -inf
      %v3264 = vsel %vm1180, %v3201, -inf
      %v3265 = vmax.f32 %v3137, %v3233
      %v3266 = vmax.f32 %v3138, %v3234
      %v3267 = vmax.f32 %v3139, %v3235
      %v3268 = vmax.f32 %v3140, %v3236
      %v3269 = vmax.f32 %v3141, %v3237
      %v3270 = vmax.f32 %v3142, %v3238
      %v3271 = vmax.f32 %v3143, %v3239
      %v3272 = vmax.f32 %v3144, %v3240
      %v3273 = vmax.f32 %v3145, %v3241
      %v3274 = vmax.f32 %v3146, %v3242
      %v3275 = vmax.f32 %v3147, %v3243
      %v3276 = vmax.f32 %v3148, %v3244
      %v3277 = vmax.f32 %v3149, %v3245
      %v3278 = vmax.f32 %v3150, %v3246
      %v3279 = vmax.f32 %v3151, %v3247
      %v3280 = vmax.f32 %v3152, %v3248
      %v3281 = vmax.f32 %v3153, %v3249
      %v3282 = vmax.f32 %v3154, %v3250
      %v3283 = vmax.f32 %v3155, %v3251
      %v3284 = vmax.f32 %v3156, %v3252
      %v3285 = vmax.f32 %v3157, %v3253
      %v3286 = vmax.f32 %v3158, %v3254
      %v3287 = vmax.f32 %v3159, %v3255
      %v3288 = vmax.f32 %v3160, %v3256
      %v3289 = vmax.f32 %v3161, %v3257
      %v3290 = vmax.f32 %v3162, %v3258
      %v3291 = vmax.f32 %v3163, %v3259
      %v3292 = vmax.f32 %v3164, %v3260
      %v3293 = vmax.f32 %v3165, %v3261
      %v3294 = vmax.f32 %v3166, %v3262
      %v3295 = vmax.f32 %v3167, %v3263
      %v3296 = vmax.f32 %v3168, %v3264
      %v3297 = vsel %vm1053, %v3267, -inf
      %v3298 = vsel %vm1054, %v3268, -inf
      %v3299 = vsel %vm1055, %v3269, -inf
      %v3300 = vsel %vm1056, %v3270, -inf
      %v3301 = vsel %vm1057, %v3271, -inf
      %v3302 = vsel %vm1058, %v3272, -inf
      %v3303 = vsel %vm1059, %v3273, -inf
      %v3304 = vsel %vm1060, %v3274, -inf
      %v3305 = vsel %vm1061, %v3275, -inf
      %v3306 = vsel %vm1062, %v3276, -inf
      %v3307 = vsel %vm1063, %v3277, -inf
      %v3308 = vsel %vm1064, %v3278, -inf
      %v3309 = vsel %vm1065, %v3279, -inf
      %v3310 = vsel %vm1066, %v3280, -inf
      %v3311 = vsel %vm1067, %v3281, -inf
      %v3312 = vsel %vm1068, %v3282, -inf
      %v3313 = vsel %vm1069, %v3283, -inf
      %v3314 = vsel %vm1070, %v3284, -inf
      %v3315 = vsel %vm1071, %v3285, -inf
      %v3316 = vsel %vm1072, %v3286, -inf
      %v3317 = vsel %vm1073, %v3287, -inf
      %v3318 = vsel %vm1074, %v3288, -inf
      %v3319 = vsel %vm1075, %v3289, -inf
      %v3320 = vsel %vm1076, %v3290, -inf
      %v3321 = vsel %vm1077, %v3291, -inf
      %v3322 = vsel %vm1078, %v3292, -inf
      %v3323 = vsel %vm1079, %v3293, -inf
      %v3324 = vsel %vm1080, %v3294, -inf
      %v3325 = vsel %vm1081, %v3295, -inf
      %v3326 = vsel %vm1082, %v3296, -inf
      %v3327 = vsel %vm1083, %v3265, -inf
      %v3328 = vsel %vm1084, %v3266, -inf
      %v3329 = vmax.f32 %v3265, %v3297
      %v3330 = vmax.f32 %v3266, %v3298
      %v3331 = vmax.f32 %v3267, %v3299
      %v3332 = vmax.f32 %v3268, %v3300
      %v3333 = vmax.f32 %v3269, %v3301
      %v3334 = vmax.f32 %v3270, %v3302
      %v3335 = vmax.f32 %v3271, %v3303
      %v3336 = vmax.f32 %v3272, %v3304
      %v3337 = vmax.f32 %v3273, %v3305
      %v3338 = vmax.f32 %v3274, %v3306
      %v3339 = vmax.f32 %v3275, %v3307
      %v3340 = vmax.f32 %v3276, %v3308
      %v3341 = vmax.f32 %v3277, %v3309
      %v3342 = vmax.f32 %v3278, %v3310
      %v3343 = vmax.f32 %v3279, %v3311
      %v3344 = vmax.f32 %v3280, %v3312
      %v3345 = vmax.f32 %v3281, %v3313
      %v3346 = vmax.f32 %v3282, %v3314
      %v3347 = vmax.f32 %v3283, %v3315
      %v3348 = vmax.f32 %v3284, %v3316
      %v3349 = vmax.f32 %v3285, %v3317
      %v3350 = vmax.f32 %v3286, %v3318
      %v3351 = vmax.f32 %v3287, %v3319
      %v3352 = vmax.f32 %v3288, %v3320
      %v3353 = vmax.f32 %v3289, %v3321
      %v3354 = vmax.f32 %v3290, %v3322
      %v3355 = vmax.f32 %v3291, %v3323
      %v3356 = vmax.f32 %v3292, %v3324
      %v3357 = vmax.f32 %v3293, %v3325
      %v3358 = vmax.f32 %v3294, %v3326
      %v3359 = vmax.f32 %v3295, %v3327
      %v3360 = vmax.f32 %v3296, %v3328
      %v3361 = vsel %vm1085, %v3295, -inf
      %v3362 = vsel %vm1086, %v3296, -inf
      %v3363 = vsel %vm1087, %v3265, -inf
      %v3364 = vsel %vm1088, %v3266, -inf
      %v3365 = vsel %vm1089, %v3267, -inf
      %v3366 = vsel %vm1090, %v3268, -inf
      %v3367 = vsel %vm1091, %v3269, -inf
      %v3368 = vsel %vm1092, %v3270, -inf
      %v3369 = vsel %vm1093, %v3271, -inf
      %v3370 = vsel %vm1094, %v3272, -inf
      %v3371 = vsel %vm1095, %v3273, -inf
      %v3372 = vsel %vm1096, %v3274, -inf
      %v3373 = vsel %vm1097, %v3275, -inf
      %v3374 = vsel %vm1098, %v3276, -inf
      %v3375 = vsel %vm1099, %v3277, -inf
      %v3376 = vsel %vm1100, %v3278, -inf
      %v3377 = vsel %vm1101, %v3279, -inf
      %v3378 = vsel %vm1102, %v3280, -inf
      %v3379 = vsel %vm1103, %v3281, -inf
      %v3380 = vsel %vm1104, %v3282, -inf
      %v3381 = vsel %vm1105, %v3283, -inf
      %v3382 = vsel %vm1106, %v3284, -inf
      %v3383 = vsel %vm1107, %v3285, -inf
      %v3384 = vsel %vm1108, %v3286, -inf
      %v3385 = vsel %vm1109, %v3287, -inf
      %v3386 = vsel %vm1110, %v3288, -inf
      %v3387 = vsel %vm1111, %v3289, -inf
      %v3388 = vsel %vm1112, %v3290, -inf
      %v3389 = vsel %vm1113, %v3291, -inf
      %v3390 = vsel %vm1114, %v3292, -inf
      %v3391 = vsel %vm1115, %v3293, -inf
      %v3392 = vsel %vm1116, %v3294, -inf
      %v3393 = vmax.f32 %v3329, %v3361
      %v3394 = vmax.f32 %v3330, %v3362
      %v3395 = vmax.f32 %v3331, %v3363
      %v3396 = vmax.f32 %v3332, %v3364
      %v3397 = vmax.f32 %v3333, %v3365
      %v3398 = vmax.f32 %v3334, %v3366
      %v3399 = vmax.f32 %v3335, %v3367
      %v3400 = vmax.f32 %v3336, %v3368
      %v3401 = vmax.f32 %v3337, %v3369
      %v3402 = vmax.f32 %v3338, %v3370
      %v3403 = vmax.f32 %v3339, %v3371
      %v3404 = vmax.f32 %v3340, %v3372
      %v3405 = vmax.f32 %v3341, %v3373
      %v3406 = vmax.f32 %v3342, %v3374
      %v3407 = vmax.f32 %v3343, %v3375
      %v3408 = vmax.f32 %v3344, %v3376
      %v3409 = vmax.f32 %v3345, %v3377
      %v3410 = vmax.f32 %v3346, %v3378
      %v3411 = vmax.f32 %v3347, %v3379
      %v3412 = vmax.f32 %v3348, %v3380
      %v3413 = vmax.f32 %v3349, %v3381
      %v3414 = vmax.f32 %v3350, %v3382
      %v3415 = vmax.f32 %v3351, %v3383
      %v3416 = vmax.f32 %v3352, %v3384
      %v3417 = vmax.f32 %v3353, %v3385
      %v3418 = vmax.f32 %v3354, %v3386
      %v3419 = vmax.f32 %v3355, %v3387
      %v3420 = vmax.f32 %v3356, %v3388
      %v3421 = vmax.f32 %v3357, %v3389
      %v3422 = vmax.f32 %v3358, %v3390
      %v3423 = vmax.f32 %v3359, %v3391
      %v3424 = vmax.f32 %v3360, %v3392
      %v3425 = vsel %vm1181, %v3269, -inf
      %v3426 = vsel %vm1182, %v3270, -inf
      %v3427 = vsel %vm1183, %v3271, -inf
      %v3428 = vsel %vm1184, %v3272, -inf
      %v3429 = vsel %vm1185, %v3273, -inf
      %v3430 = vsel %vm1186, %v3274, -inf
      %v3431 = vsel %vm1187, %v3275, -inf
      %v3432 = vsel %vm1188, %v3276, -inf
      %v3433 = vsel %vm1189, %v3277, -inf
      %v3434 = vsel %vm1190, %v3278, -inf
      %v3435 = vsel %vm1191, %v3279, -inf
      %v3436 = vsel %vm1192, %v3280, -inf
      %v3437 = vsel %vm1193, %v3281, -inf
      %v3438 = vsel %vm1194, %v3282, -inf
      %v3439 = vsel %vm1195, %v3283, -inf
      %v3440 = vsel %vm1196, %v3284, -inf
      %v3441 = vsel %vm1197, %v3285, -inf
      %v3442 = vsel %vm1198, %v3286, -inf
      %v3443 = vsel %vm1199, %v3287, -inf
      %v3444 = vsel %vm1200, %v3288, -inf
      %v3445 = vsel %vm1201, %v3289, -inf
      %v3446 = vsel %vm1202, %v3290, -inf
      %v3447 = vsel %vm1203, %v3291, -inf
      %v3448 = vsel %vm1204, %v3292, -inf
      %v3449 = vsel %vm1205, %v3293, -inf
      %v3450 = vsel %vm1206, %v3294, -inf
      %v3451 = vsel %vm1207, %v3295, -inf
      %v3452 = vsel %vm1208, %v3296, -inf
      %v3453 = vsel %vm1209, %v3265, -inf
      %v3454 = vsel %vm1210, %v3266, -inf
      %v3455 = vsel %vm1211, %v3267, -inf
      %v3456 = vsel %vm1212, %v3268, -inf
      %v3457 = vmax.f32 %v3393, %v3425
      %v3458 = vmax.f32 %v3394, %v3426
      %v3459 = vmax.f32 %v3395, %v3427
      %v3460 = vmax.f32 %v3396, %v3428
      %v3461 = vmax.f32 %v3397, %v3429
      %v3462 = vmax.f32 %v3398, %v3430
      %v3463 = vmax.f32 %v3399, %v3431
      %v3464 = vmax.f32 %v3400, %v3432
      %v3465 = vmax.f32 %v3401, %v3433
      %v3466 = vmax.f32 %v3402, %v3434
      %v3467 = vmax.f32 %v3403, %v3435
      %v3468 = vmax.f32 %v3404, %v3436
      %v3469 = vmax.f32 %v3405, %v3437
      %v3470 = vmax.f32 %v3406, %v3438
      %v3471 = vmax.f32 %v3407, %v3439
      %v3472 = vmax.f32 %v3408, %v3440
      %v3473 = vmax.f32 %v3409, %v3441
      %v3474 = vmax.f32 %v3410, %v3442
      %v3475 = vmax.f32 %v3411, %v3443
      %v3476 = vmax.f32 %v3412, %v3444
      %v3477 = vmax.f32 %v3413, %v3445
      %v3478 = vmax.f32 %v3414, %v3446
      %v3479 = vmax.f32 %v3415, %v3447
      %v3480 = vmax.f32 %v3416, %v3448
      %v3481 = vmax.f32 %v3417, %v3449
      %v3482 = vmax.f32 %v3418, %v3450
      %v3483 = vmax.f32 %v3419, %v3451
      %v3484 = vmax.f32 %v3420, %v3452
      %v3485 = vmax.f32 %v3421, %v3453
      %v3486 = vmax.f32 %v3422, %v3454
      %v3487 = vmax.f32 %v3423, %v3455
      %v3488 = vmax.f32 %v3424, %v3456
      %v3489 = vsel %vm1213, %v3293, -inf
      %v3490 = vsel %vm1214, %v3294, -inf
      %v3491 = vsel %vm1215, %v3295, -inf
      %v3492 = vsel %vm1216, %v3296, -inf
      %v3493 = vsel %vm1217, %v3265, -inf
      %v3494 = vsel %vm1218, %v3266, -inf
      %v3495 = vsel %vm1219, %v3267, -inf
      %v3496 = vsel %vm1220, %v3268, -inf
      %v3497 = vsel %vm1221, %v3269, -inf
      %v3498 = vsel %vm1222, %v3270, -inf
      %v3499 = vsel %vm1223, %v3271, -inf
      %v3500 = vsel %vm1224, %v3272, -inf
      %v3501 = vsel %vm1225, %v3273, -inf
      %v3502 = vsel %vm1226, %v3274, -inf
      %v3503 = vsel %vm1227, %v3275, -inf
      %v3504 = vsel %vm1228, %v3276, -inf
      %v3505 = vsel %vm1229, %v3277, -inf
      %v3506 = vsel %vm1230, %v3278, -inf
      %v3507 = vsel %vm1231, %v3279, -inf
      %v3508 = vsel %vm1232, %v3280, -inf
      %v3509 = vsel %vm1233, %v3281, -inf
      %v3510 = vsel %vm1234, %v3282, -inf
      %v3511 = vsel %vm1235, %v3283, -inf
      %v3512 = vsel %vm1236, %v3284, -inf
      %v3513 = vsel %vm1237, %v3285, -inf
      %v3514 = vsel %vm1238, %v3286, -inf
      %v3515 = vsel %vm1239, %v3287, -inf
      %v3516 = vsel %vm1240, %v3288, -inf
      %v3517 = vsel %vm1241, %v3289, -inf
      %v3518 = vsel %vm1242, %v3290, -inf
      %v3519 = vsel %vm1243, %v3291, -inf
      %v3520 = vsel %vm1244, %v3292, -inf
      %v3521 = vmax.f32 %v3457, %v3489
      %v3522 = vmax.f32 %v3458, %v3490
      %v3523 = vmax.f32 %v3459, %v3491
      %v3524 = vmax.f32 %v3460, %v3492
      %v3525 = vmax.f32 %v3461, %v3493
      %v3526 = vmax.f32 %v3462, %v3494
      %v3527 = vmax.f32 %v3463, %v3495
      %v3528 = vmax.f32 %v3464, %v3496
      %v3529 = vmax.f32 %v3465, %v3497
      %v3530 = vmax.f32 %v3466, %v3498
      %v3531 = vmax.f32 %v3467, %v3499
      %v3532 = vmax.f32 %v3468, %v3500
      %v3533 = vmax.f32 %v3469, %v3501
      %v3534 = vmax.f32 %v3470, %v3502
      %v3535 = vmax.f32 %v3471, %v3503
      %v3536 = vmax.f32 %v3472, %v3504
      %v3537 = vmax.f32 %v3473, %v3505
      %v3538 = vmax.f32 %v3474, %v3506
      %v3539 = vmax.f32 %v3475, %v3507
      %v3540 = vmax.f32 %v3476, %v3508
      %v3541 = vmax.f32 %v3477, %v3509
      %v3542 = vmax.f32 %v3478, %v3510
      %v3543 = vmax.f32 %v3479, %v3511
      %v3544 = vmax.f32 %v3480, %v3512
      %v3545 = vmax.f32 %v3481, %v3513
      %v3546 = vmax.f32 %v3482, %v3514
      %v3547 = vmax.f32 %v3483, %v3515
      %v3548 = vmax.f32 %v3484, %v3516
      %v3549 = vmax.f32 %v3485, %v3517
      %v3550 = vmax.f32 %v3486, %v3518
      %v3551 = vmax.f32 %v3487, %v3519
      %v3552 = vmax.f32 %v3488, %v3520
      %v3553 = vld [vmem:[%s3] sm:$0xf]
      %v3554 = vld [vmem:[%s4] sm:$0xf]
      %vm3555 = vcmask 31744
      %v3557 = vsel %vm3555, %v1985, 0
      %v3560 = vsel %vm3555, %v1986, 0
      %v3563 = vsel %vm3555, %v1987, 0
      %v3566 = vsel %vm3555, %v1988, 0
      %v3569 = vsel %vm3555, %v1989, 0
      %v3572 = vsel %vm3555, %v1990, 0
      %v3575 = vsel %vm3555, %v1991, 0
      %v3578 = vsel %vm3555, %v1992, 0
      %v3581 = vsel %vm3555, %v1993, 0
      %v3584 = vsel %vm3555, %v1994, 0
      %v3587 = vsel %vm3555, %v1995, 0
      %v3590 = vsel %vm3555, %v1996, 0
      %v3593 = vsel %vm3555, %v1997, 0
      %v3596 = vsel %vm3555, %v1998, 0
      %v3599 = vsel %vm3555, %v1999, 0
      %v3602 = vsel %vm3555, %v2000, 0
      %v3605 = vsel %vm3555, %v2001, 0
      %v3608 = vsel %vm3555, %v2002, 0
      %v3611 = vsel %vm3555, %v2003, 0
      %v3614 = vsel %vm3555, %v2004, 0
      %v3617 = vsel %vm3555, %v2005, 0
      %v3620 = vsel %vm3555, %v2006, 0
      %v3623 = vsel %vm3555, %v2007, 0
      %v3626 = vsel %vm3555, %v2008, 0
      %v3629 = vsel %vm3555, %v2009, 0
      %v3632 = vsel %vm3555, %v2010, 0
      %v3635 = vsel %vm3555, %v2011, 0
      %v3638 = vsel %vm3555, %v2012, 0
      %v3641 = vsel %vm3555, %v2013, 0
      %v3644 = vsel %vm3555, %v2014, 0
      %v3647 = vsel %vm3555, %v2015, 0
      %v3650 = vsel %vm3555, %v2016, 0
      %vm3652 = vcmask 1043456
      %v3654 = vsel %vm3652, %v3554, 0
      %3656 = vmatprep.subr.mxu0 0.0
      %3657 = vmatpush1.msra.mxu0 %v3654
      %3658 = vmatprep.subr.mxu0 0.0
      %3659 = vmatpush1.msra.mxu0 0.0
      %3660 = vmatprep.subr.mxu0 0.0
      %3661 = vmatpush1.msra.mxu0 0.0
      %3662 = vmatprep.subr.mxu0 0.0
      %3663 = vmatpush1.msra.mxu0 0.0
      %3664 = vmatprep.subr.mxu0 0.0
      %3665 = vmatpush1.msra.mxu0 0.0
      %3666 = vmatprep.subr.mxu0 0.0
      %3667 = vmatpush1.msra.mxu0 0.0
      %3668 = vmatprep.subr.mxu0 0.0
      %3669 = vmatpush1.msra.mxu0 0.0
      %3670 = vmatprep.subr.mxu0 0.0
      %3671 = vmatpush1.msra.mxu0 0.0
      %3672 = vmatprep.subr.mxu0 0.0
      %3673 = vmatpush1.msra.mxu0 0.0
      %3674 = vmatprep.subr.mxu0 0.0
      %3675 = vmatpush1.msra.mxu0 0.0
      %3676 = vmatprep.subr.mxu0 0.0
      %3677 = vmatpush1.msra.mxu0 0.0
      %3678 = vmatprep.subr.mxu0 0.0
      %3679 = vmatpush1.msra.mxu0 0.0
      %3680 = vmatprep.subr.mxu0 0.0
      %3681 = vmatpush1.msra.mxu0 0.0
      %3682 = vmatprep.subr.mxu0 0.0
      %3683 = vmatpush1.msra.mxu0 0.0
      %3684 = vmatprep.subr.mxu0 0.0
      %3685 = vmatpush1.msra.mxu0 0.0
      %3686 = vmatprep.subr.mxu0 0.0
      %3687 = vmatpush1.msra.mxu0 0.0
      %3688 = vmatprep.subr.mxu0 0.0
      %3689 = vmatpush1.msra.mxu0 0.0
      %3690 = vmatprep.subr.mxu0 0.0
      %3691 = vmatpush1.msra.mxu0 0.0
      %3692 = vmatprep.subr.mxu0 0.0
      %3693 = vmatpush1.msra.mxu0 0.0
      %3694 = vmatprep.subr.mxu0 0.0
      %3695 = vmatpush1.msra.mxu0 0.0
      %3696 = vmatprep.subr.mxu0 0.0
      %3697 = vmatpush1.msra.mxu0 0.0
      %3698 = vmatprep.subr.mxu0 0.0
      %3699 = vmatpush1.msra.mxu0 0.0
      %3700 = vmatprep.subr.mxu0 0.0
      %3701 = vmatpush1.msra.mxu0 0.0
      %3702 = vmatprep.subr.mxu0 0.0
      %3703 = vmatpush1.msra.mxu0 0.0
      %3704 = vmatprep.subr.mxu0 0.0
      %3705 = vmatpush1.msra.mxu0 0.0
      %3706 = vmatprep.subr.mxu0 0.0
      %3707 = vmatpush1.msra.mxu0 0.0
      %3708 = vmatprep.subr.mxu0 0.0
      %3709 = vmatpush1.msra.mxu0 0.0
      %3710 = vmatprep.subr.mxu0 0.0
      %3711 = vmatpush1.msra.mxu0 0.0
      %3712 = vmatprep.subr.mxu0 0.0
      %3713 = vmatpush1.msra.mxu0 0.0
      %3714 = vmatprep.subr.mxu0 0.0
      %3715 = vmatpush1.msra.mxu0 0.0
      %3716 = vmatprep.subr.mxu0 0.0
      %3717 = vmatpush1.msra.mxu0 0.0
      %3718 = vmatprep.subr.mxu0 0.0
      %3719 = vmatpush1.msra.mxu0 0.0
      %3720 = vmatprep.mubr.f32.mxu0 0.0
      %3721 = vmatmul.mubr.f32.gmra.mrb[0].mxu0 %v3557
      %v3722 = vpop.f32.mrb[0].mxu0
      %v3723 = vadd.f32 0.0, %v3722
      %v3724 = vpop.f32.mrb[0].mxu0
      %3725 = vmatprep.mubr.f32.mxu0 0.0
      %3726 = vmatmul.mubr.f32.gmra.mrb[0].mxu0 %v3560
      %v3727 = vpop.f32.mrb[0].mxu0
      %v3728 = vadd.f32 0.0, %v3727
      %v3729 = vpop.f32.mrb[0].mxu0
      %3730 = vmatprep.mubr.f32.mxu0 0.0
      %3731 = vmatmul.mubr.f32.gmra.mrb[0].mxu0 %v3563
      %v3732 = vpop.f32.mrb[0].mxu0
      %v3733 = vadd.f32 0.0, %v3732
      %v3734 = vpop.f32.mrb[0].mxu0
      %3735 = vmatprep.mubr.f32.mxu0 0.0
      %3736 = vmatmul.mubr.f32.gmra.mrb[0].mxu0 %v3566
      %v3737 = vpop.f32.mrb[0].mxu0
      %v3738 = vadd.f32 0.0, %v3737
      %v3739 = vpop.f32.mrb[0].mxu0
      %3740 = vmatprep.mubr.f32.mxu0 0.0
      %3741 = vmatmul.mubr.f32.gmra.mrb[0].mxu0 %v3569
      %v3742 = vpop.f32.mrb[0].mxu0
      %v3743 = vadd.f32 0.0, %v3742
      %v3744 = vpop.f32.mrb[0].mxu0
      %3745 = vmatprep.mubr.f32.mxu0 0.0
      %3746 = vmatmul.mubr.f32.gmra.mrb[0].mxu0 %v3572
      %v3747 = vpop.f32.mrb[0].mxu0
      %v3748 = vadd.f32 0.0, %v3747
      %v3749 = vpop.f32.mrb[0].mxu0
      %3750 = vmatprep.mubr.f32.mxu0 0.0
      %3751 = vmatmul.mubr.f32.gmra.mrb[0].mxu0 %v3575
      %v3752 = vpop.f32.mrb[0].mxu0
      %v3753 = vadd.f32 0.0, %v3752
      %v3754 = vpop.f32.mrb[0].mxu0
      %3755 = vmatprep.mubr.f32.mxu0 0.0
      %3756 = vmatmul.mubr.f32.gmra.mrb[0].mxu0 %v3578
      %v3757 = vpop.f32.mrb[0].mxu0
      %v3758 = vadd.f32 0.0, %v3757
      %v3759 = vpop.f32.mrb[0].mxu0
      %3760 = vmatprep.mubr.f32.mxu0 0.0
      %3761 = vmatmul.mubr.f32.gmra.mrb[0].mxu0 %v3581
      %v3762 = vpop.f32.mrb[0].mxu0
      %v3763 = vadd.f32 0.0, %v3762
      %v3764 = vpop.f32.mrb[0].mxu0
      %3765 = vmatprep.mubr.f32.mxu0 0.0
      %3766 = vmatmul.mubr.f32.gmra.mrb[0].mxu0 %v3584
      %v3767 = vpop.f32.mrb[0].mxu0
      %v3768 = vadd.f32 0.0, %v3767
      %v3769 = vpop.f32.mrb[0].mxu0
      %3770 = vmatprep.mubr.f32.mxu0 0.0
      %3771 = vmatmul.mubr.f32.gmra.mrb[0].mxu0 %v3587
      %v3772 = vpop.f32.mrb[0].mxu0
      %v3773 = vadd.f32 0.0, %v3772
      %v3774 = vpop.f32.mrb[0].mxu0
      %3775 = vmatprep.mubr.f32.mxu0 0.0
      %3776 = vmatmul.mubr.f32.gmra.mrb[0].mxu0 %v3590
      %v3777 = vpop.f32.mrb[0].mxu0
      %v3778 = vadd.f32 0.0, %v3777
      %v3779 = vpop.f32.mrb[0].mxu0
      %3780 = vmatprep.mubr.f32.mxu0 0.0
      %3781 = vmatmul.mubr.f32.gmra.mrb[0].mxu0 %v3593
      %v3782 = vpop.f32.mrb[0].mxu0
      %v3783 = vadd.f32 0.0, %v3782
      %v3784 = vpop.f32.mrb[0].mxu0
      %3785 = vmatprep.mubr.f32.mxu0 0.0
      %3786 = vmatmul.mubr.f32.gmra.mrb[0].mxu0 %v3596
      %v3787 = vpop.f32.mrb[0].mxu0
      %v3788 = vadd.f32 0.0, %v3787
      %v3789 = vpop.f32.mrb[0].mxu0
      %3790 = vmatprep.mubr.f32.mxu0 0.0
      %3791 = vmatmul.mubr.f32.gmra.mrb[0].mxu0 %v3599
      %v3792 = vpop.f32.mrb[0].mxu0
      %v3793 = vadd.f32 0.0, %v3792
      %v3794 = vpop.f32.mrb[0].mxu0
      %3795 = vmatprep.mubr.f32.mxu0 0.0
      %3796 = vmatmul.mubr.f32.gmra.mrb[0].mxu0 %v3602
      %v3797 = vpop.f32.mrb[0].mxu0
      %v3798 = vadd.f32 0.0, %v3797
      %v3799 = vpop.f32.mrb[0].mxu0
      %3800 = vmatprep.mubr.f32.mxu0 0.0
      %3801 = vmatmul.mubr.f32.gmra.mrb[0].mxu0 %v3605
      %v3802 = vpop.f32.mrb[0].mxu0
      %v3803 = vadd.f32 0.0, %v3802
      %v3804 = vpop.f32.mrb[0].mxu0
      %3805 = vmatprep.mubr.f32.mxu0 0.0
      %3806 = vmatmul.mubr.f32.gmra.mrb[0].mxu0 %v3608
      %v3807 = vpop.f32.mrb[0].mxu0
      %v3808 = vadd.f32 0.0, %v3807
      %v3809 = vpop.f32.mrb[0].mxu0
      %3810 = vmatprep.mubr.f32.mxu0 0.0
      %3811 = vmatmul.mubr.f32.gmra.mrb[0].mxu0 %v3611
      %v3812 = vpop.f32.mrb[0].mxu0
      %v3813 = vadd.f32 0.0, %v3812
      %v3814 = vpop.f32.mrb[0].mxu0
      %3815 = vmatprep.mubr.f32.mxu0 0.0
      %3816 = vmatmul.mubr.f32.gmra.mrb[0].mxu0 %v3614
      %v3817 = vpop.f32.mrb[0].mxu0
      %v3818 = vadd.f32 0.0, %v3817
      %v3819 = vpop.f32.mrb[0].mxu0
      %3820 = vmatprep.mubr.f32.mxu0 0.0
      %3821 = vmatmul.mubr.f32.gmra.mrb[0].mxu0 %v3617
      %v3822 = vpop.f32.mrb[0].mxu0
      %v3823 = vadd.f32 0.0, %v3822
      %v3824 = vpop.f32.mrb[0].mxu0
      %3825 = vmatprep.mubr.f32.mxu0 0.0
      %3826 = vmatmul.mubr.f32.gmra.mrb[0].mxu0 %v3620
      %v3827 = vpop.f32.mrb[0].mxu0
      %v3828 = vadd.f32 0.0, %v3827
      %v3829 = vpop.f32.mrb[0].mxu0
      %3830 = vmatprep.mubr.f32.mxu0 0.0
      %3831 = vmatmul.mubr.f32.gmra.mrb[0].mxu0 %v3623
      %v3832 = vpop.f32.mrb[0].mxu0
      %v3833 = vadd.f32 0.0, %v3832
      %v3834 = vpop.f32.mrb[0].mxu0
      %3835 = vmatprep.mubr.f32.mxu0 0.0
      %3836 = vmatmul.mubr.f32.gmra.mrb[0].mxu0 %v3626
      %v3837 = vpop.f32.mrb[0].mxu0
      %v3838 = vadd.f32 0.0, %v3837
      %v3839 = vpop.f32.mrb[0].mxu0
      %3840 = vmatprep.mubr.f32.mxu0 0.0
      %3841 = vmatmul.mubr.f32.gmra.mrb[0].mxu0 %v3629
      %v3842 = vpop.f32.mrb[0].mxu0
      %v3843 = vadd.f32 0.0, %v3842
      %v3844 = vpop.f32.mrb[0].mxu0
      %3845 = vmatprep.mubr.f32.mxu0 0.0
      %3846 = vmatmul.mubr.f32.gmra.mrb[0].mxu0 %v3632
      %v3847 = vpop.f32.mrb[0].mxu0
      %v3848 = vadd.f32 0.0, %v3847
      %v3849 = vpop.f32.mrb[0].mxu0
      %3850 = vmatprep.mubr.f32.mxu0 0.0
      %3851 = vmatmul.mubr.f32.gmra.mrb[0].mxu0 %v3635
      %v3852 = vpop.f32.mrb[0].mxu0
      %v3853 = vadd.f32 0.0, %v3852
      %v3854 = vpop.f32.mrb[0].mxu0
      %3855 = vmatprep.mubr.f32.mxu0 0.0
      %3856 = vmatmul.mubr.f32.gmra.mrb[0].mxu0 %v3638
      %v3857 = vpop.f32.mrb[0].mxu0
      %v3858 = vadd.f32 0.0, %v3857
      %v3859 = vpop.f32.mrb[0].mxu0
      %3860 = vmatprep.mubr.f32.mxu0 0.0
      %3861 = vmatmul.mubr.f32.gmra.mrb[0].mxu0 %v3641
      %v3862 = vpop.f32.mrb[0].mxu0
      %v3863 = vadd.f32 0.0, %v3862
      %v3864 = vpop.f32.mrb[0].mxu0
      %3865 = vmatprep.mubr.f32.mxu0 0.0
      %3866 = vmatmul.mubr.f32.gmra.mrb[0].mxu0 %v3644
      %v3867 = vpop.f32.mrb[0].mxu0
      %v3868 = vadd.f32 0.0, %v3867
      %v3869 = vpop.f32.mrb[0].mxu0
      %3870 = vmatprep.mubr.f32.mxu0 0.0
      %3871 = vmatmul.mubr.f32.gmra.mrb[0].mxu0 %v3647
      %v3872 = vpop.f32.mrb[0].mxu0
      %v3873 = vadd.f32 0.0, %v3872
      %v3874 = vpop.f32.mrb[0].mxu0
      %3875 = vmatprep.mubr.f32.mxu0 0.0
      %3876 = vmatmul.mubr.f32.gmra.mrb[0].mxu0 %v3650
      %v3877 = vpop.f32.mrb[0].mxu0
      %v3878 = vadd.f32 0.0, %v3877
      %v3879 = vpop.f32.mrb[0].mxu0
      %3880 = vdwg.mxu0
      %v3882 = vsel %vm3555, %v860, 0
      %v3885 = vsel %vm3555, %v861, 0
      %v3888 = vsel %vm3555, %v862, 0
      %v3891 = vsel %vm3555, %v863, 0
      %v3894 = vsel %vm3555, %v864, 0
      %v3897 = vsel %vm3555, %v865, 0
      %v3900 = vsel %vm3555, %v866, 0
      %v3903 = vsel %vm3555, %v867, 0
      %v3906 = vsel %vm3555, %v868, 0
      %v3909 = vsel %vm3555, %v869, 0
      %v3912 = vsel %vm3555, %v870, 0
      %v3915 = vsel %vm3555, %v871, 0
      %v3918 = vsel %vm3555, %v872, 0
      %v3921 = vsel %vm3555, %v873, 0
      %v3924 = vsel %vm3555, %v874, 0
      %v3927 = vsel %vm3555, %v875, 0
      %v3930 = vsel %vm3555, %v876, 0
      %v3933 = vsel %vm3555, %v877, 0
      %v3936 = vsel %vm3555, %v878, 0
      %v3939 = vsel %vm3555, %v879, 0
      %v3942 = vsel %vm3555, %v880, 0
      %v3945 = vsel %vm3555, %v881, 0
      %v3948 = vsel %vm3555, %v882, 0
      %v3951 = vsel %vm3555, %v883, 0
      %v3954 = vsel %vm3555, %v884, 0
      %v3957 = vsel %vm3555, %v885, 0
      %v3960 = vsel %vm3555, %v886, 0
      %v3963 = vsel %vm3555, %v887, 0
      %v3966 = vsel %vm3555, %v888, 0
      %v3969 = vsel %vm3555, %v889, 0
      %v3972 = vsel %vm3555, %v890, 0
      %v3975 = vsel %vm3555, %v891, 0
      %v3978 = vsel %vm3652, %v3553, 0
      %3980 = vmatprep.subr.mxu0 0.0
      %3981 = vmatpush1.msra.mxu0 %v3978
      %3982 = vmatprep.subr.mxu0 0.0
      %3983 = vmatpush1.msra.mxu0 0.0
      %3984 = vmatprep.subr.mxu0 0.0
      %3985 = vmatpush1.msra.mxu0 0.0
      %3986 = vmatprep.subr.mxu0 0.0
      %3987 = vmatpush1.msra.mxu0 0.0
      %3988 = vmatprep.subr.mxu0 0.0
      %3989 = vmatpush1.msra.mxu0 0.0
      %3990 = vmatprep.subr.mxu0 0.0
      %3991 = vmatpush1.msra.mxu0 0.0
      %3992 = vmatprep.subr.mxu0 0.0
      %3993 = vmatpush1.msra.mxu0 0.0
      %3994 = vmatprep.subr.mxu0 0.0
      %3995 = vmatpush1.msra.mxu0 0.0
      %3996 = vmatprep.subr.mxu0 0.0
      %3997 = vmatpush1.msra.mxu0 0.0
      %3998 = vmatprep.subr.mxu0 0.0
      %3999 = vmatpush1.msra.mxu0 0.0
      %4000 = vmatprep.subr.mxu0 0.0
      %4001 = vmatpush1.msra.mxu0 0.0
      %4002 = vmatprep.subr.mxu0 0.0
      %4003 = vmatpush1.msra.mxu0 0.0
      %4004 = vmatprep.subr.mxu0 0.0
      %4005 = vmatpush1.msra.mxu0 0.0
      %4006 = vmatprep.subr.mxu0 0.0
      %4007 = vmatpush1.msra.mxu0 0.0
      %4008 = vmatprep.subr.mxu0 0.0
      %4009 = vmatpush1.msra.mxu0 0.0
      %4010 = vmatprep.subr.mxu0 0.0
      %4011 = vmatpush1.msra.mxu0 0.0
      %4012 = vmatprep.subr.mxu0 0.0
      %4013 = vmatpush1.msra.mxu0 0.0
      %4014 = vmatprep.subr.mxu0 0.0
      %4015 = vmatpush1.msra.mxu0 0.0
      %4016 = vmatprep.subr.mxu0 0.0
      %4017 = vmatpush1.msra.mxu0 0.0
      %4018 = vmatprep.subr.mxu0 0.0
      %4019 = vmatpush1.msra.mxu0 0.0
      %4020 = vmatprep.subr.mxu0 0.0
      %4021 = vmatpush1.msra.mxu0 0.0
      %4022 = vmatprep.subr.mxu0 0.0
      %4023 = vmatpush1.msra.mxu0 0.0
      %4024 = vmatprep.subr.mxu0 0.0
      %4025 = vmatpush1.msra.mxu0 0.0
      %4026 = vmatprep.subr.mxu0 0.0
      %4027 = vmatpush1.msra.mxu0 0.0
      %4028 = vmatprep.subr.mxu0 0.0
      %4029 = vmatpush1.msra.mxu0 0.0
      %4030 = vmatprep.subr.mxu0 0.0
      %4031 = vmatpush1.msra.mxu0 0.0
      %4032 = vmatprep.subr.mxu0 0.0
      %4033 = vmatpush1.msra.mxu0 0.0
      %4034 = vmatprep.subr.mxu0 0.0
      %4035 = vmatpush1.msra.mxu0 0.0
      %4036 = vmatprep.subr.mxu0 0.0
      %4037 = vmatpush1.msra.mxu0 0.0
      %4038 = vmatprep.subr.mxu0 0.0
      %4039 = vmatpush1.msra.mxu0 0.0
      %4040 = vmatprep.subr.mxu0 0.0
      %4041 = vmatpush1.msra.mxu0 0.0
      %4042 = vmatprep.subr.mxu0 0.0
      %4043 = vmatpush1.msra.mxu0 0.0
      %4044 = vmatprep.mubr.f32.mxu0 0.0
      %4045 = vmatmul.mubr.f32.gmra.mrb[0].mxu0 %v3882
      %v4046 = vpop.f32.mrb[0].mxu0
      %v4047 = vadd.f32 %v3723, %v4046
      %v4048 = vpop.f32.mrb[0].mxu0
      %4049 = vmatprep.mubr.f32.mxu0 0.0
      %4050 = vmatmul.mubr.f32.gmra.mrb[0].mxu0 %v3885
      %v4051 = vpop.f32.mrb[0].mxu0
      %v4052 = vadd.f32 %v3728, %v4051
      %v4053 = vpop.f32.mrb[0].mxu0
      %4054 = vmatprep.mubr.f32.mxu0 0.0
      %4055 = vmatmul.mubr.f32.gmra.mrb[0].mxu0 %v3888
      %v4056 = vpop.f32.mrb[0].mxu0
      %v4057 = vadd.f32 %v3733, %v4056
      %v4058 = vpop.f32.mrb[0].mxu0
      %4059 = vmatprep.mubr.f32.mxu0 0.0
      %4060 = vmatmul.mubr.f32.gmra.mrb[0].mxu0 %v3891
      %v4061 = vpop.f32.mrb[0].mxu0
      %v4062 = vadd.f32 %v3738, %v4061
      %v4063 = vpop.f32.mrb[0].mxu0
      %4064 = vmatprep.mubr.f32.mxu0 0.0
      %4065 = vmatmul.mubr.f32.gmra.mrb[0].mxu0 %v3894
      %v4066 = vpop.f32.mrb[0].mxu0
      %v4067 = vadd.f32 %v3743, %v4066
      %v4068 = vpop.f32.mrb[0].mxu0
      %4069 = vmatprep.mubr.f32.mxu0 0.0
      %4070 = vmatmul.mubr.f32.gmra.mrb[0].mxu0 %v3897
      %v4071 = vpop.f32.mrb[0].mxu0
      %v4072 = vadd.f32 %v3748, %v4071
      %v4073 = vpop.f32.mrb[0].mxu0
      %4074 = vmatprep.mubr.f32.mxu0 0.0
      %4075 = vmatmul.mubr.f32.gmra.mrb[0].mxu0 %v3900
      %v4076 = vpop.f32.mrb[0].mxu0
      %v4077 = vadd.f32 %v3753, %v4076
      %v4078 = vpop.f32.mrb[0].mxu0
      %4079 = vmatprep.mubr.f32.mxu0 0.0
      %4080 = vmatmul.mubr.f32.gmra.mrb[0].mxu0 %v3903
      %v4081 = vpop.f32.mrb[0].mxu0
      %v4082 = vadd.f32 %v3758, %v4081
      %v4083 = vpop.f32.mrb[0].mxu0
      %4084 = vmatprep.mubr.f32.mxu0 0.0
      %4085 = vmatmul.mubr.f32.gmra.mrb[0].mxu0 %v3906
      %v4086 = vpop.f32.mrb[0].mxu0
      %v4087 = vadd.f32 %v3763, %v4086
      %v4088 = vpop.f32.mrb[0].mxu0
      %4089 = vmatprep.mubr.f32.mxu0 0.0
      %4090 = vmatmul.mubr.f32.gmra.mrb[0].mxu0 %v3909
      %v4091 = vpop.f32.mrb[0].mxu0
      %v4092 = vadd.f32 %v3768, %v4091
      %v4093 = vpop.f32.mrb[0].mxu0
      %4094 = vmatprep.mubr.f32.mxu0 0.0
      %4095 = vmatmul.mubr.f32.gmra.mrb[0].mxu0 %v3912
      %v4096 = vpop.f32.mrb[0].mxu0
      %v4097 = vadd.f32 %v3773, %v4096
      %v4098 = vpop.f32.mrb[0].mxu0
      %4099 = vmatprep.mubr.f32.mxu0 0.0
      %4100 = vmatmul.mubr.f32.gmra.mrb[0].mxu0 %v3915
      %v4101 = vpop.f32.mrb[0].mxu0
      %v4102 = vadd.f32 %v3778, %v4101
      %v4103 = vpop.f32.mrb[0].mxu0
      %4104 = vmatprep.mubr.f32.mxu0 0.0
      %4105 = vmatmul.mubr.f32.gmra.mrb[0].mxu0 %v3918
      %v4106 = vpop.f32.mrb[0].mxu0
      %v4107 = vadd.f32 %v3783, %v4106
      %v4108 = vpop.f32.mrb[0].mxu0
      %4109 = vmatprep.mubr.f32.mxu0 0.0
      %4110 = vmatmul.mubr.f32.gmra.mrb[0].mxu0 %v3921
      %v4111 = vpop.f32.mrb[0].mxu0
      %v4112 = vadd.f32 %v3788, %v4111
      %v4113 = vpop.f32.mrb[0].mxu0
      %4114 = vmatprep.mubr.f32.mxu0 0.0
      %4115 = vmatmul.mubr.f32.gmra.mrb[0].mxu0 %v3924
      %v4116 = vpop.f32.mrb[0].mxu0
      %v4117 = vadd.f32 %v3793, %v4116
      %v4118 = vpop.f32.mrb[0].mxu0
      %4119 = vmatprep.mubr.f32.mxu0 0.0
      %4120 = vmatmul.mubr.f32.gmra.mrb[0].mxu0 %v3927
      %v4121 = vpop.f32.mrb[0].mxu0
      %v4122 = vadd.f32 %v3798, %v4121
      %v4123 = vpop.f32.mrb[0].mxu0
      %4124 = vmatprep.mubr.f32.mxu0 0.0
      %4125 = vmatmul.mubr.f32.gmra.mrb[0].mxu0 %v3930
      %v4126 = vpop.f32.mrb[0].mxu0
      %v4127 = vadd.f32 %v3803, %v4126
      %v4128 = vpop.f32.mrb[0].mxu0
      %4129 = vmatprep.mubr.f32.mxu0 0.0
      %4130 = vmatmul.mubr.f32.gmra.mrb[0].mxu0 %v3933
      %v4131 = vpop.f32.mrb[0].mxu0
      %v4132 = vadd.f32 %v3808, %v4131
      %v4133 = vpop.f32.mrb[0].mxu0
      %4134 = vmatprep.mubr.f32.mxu0 0.0
      %4135 = vmatmul.mubr.f32.gmra.mrb[0].mxu0 %v3936
      %v4136 = vpop.f32.mrb[0].mxu0
      %v4137 = vadd.f32 %v3813, %v4136
      %v4138 = vpop.f32.mrb[0].mxu0
      %4139 = vmatprep.mubr.f32.mxu0 0.0
      %4140 = vmatmul.mubr.f32.gmra.mrb[0].mxu0 %v3939
      %v4141 = vpop.f32.mrb[0].mxu0
      %v4142 = vadd.f32 %v3818, %v4141
      %v4143 = vpop.f32.mrb[0].mxu0
      %4144 = vmatprep.mubr.f32.mxu0 0.0
      %4145 = vmatmul.mubr.f32.gmra.mrb[0].mxu0 %v3942
      %v4146 = vpop.f32.mrb[0].mxu0
      %v4147 = vadd.f32 %v3823, %v4146
      %v4148 = vpop.f32.mrb[0].mxu0
      %4149 = vmatprep.mubr.f32.mxu0 0.0
      %4150 = vmatmul.mubr.f32.gmra.mrb[0].mxu0 %v3945
      %v4151 = vpop.f32.mrb[0].mxu0
      %v4152 = vadd.f32 %v3828, %v4151
      %v4153 = vpop.f32.mrb[0].mxu0
      %4154 = vmatprep.mubr.f32.mxu0 0.0
      %4155 = vmatmul.mubr.f32.gmra.mrb[0].mxu0 %v3948
      %v4156 = vpop.f32.mrb[0].mxu0
      %v4157 = vadd.f32 %v3833, %v4156
      %v4158 = vpop.f32.mrb[0].mxu0
      %4159 = vmatprep.mubr.f32.mxu0 0.0
      %4160 = vmatmul.mubr.f32.gmra.mrb[0].mxu0 %v3951
      %v4161 = vpop.f32.mrb[0].mxu0
      %v4162 = vadd.f32 %v3838, %v4161
      %v4163 = vpop.f32.mrb[0].mxu0
      %4164 = vmatprep.mubr.f32.mxu0 0.0
      %4165 = vmatmul.mubr.f32.gmra.mrb[0].mxu0 %v3954
      %v4166 = vpop.f32.mrb[0].mxu0
      %v4167 = vadd.f32 %v3843, %v4166
      %v4168 = vpop.f32.mrb[0].mxu0
      %4169 = vmatprep.mubr.f32.mxu0 0.0
      %4170 = vmatmul.mubr.f32.gmra.mrb[0].mxu0 %v3957
      %v4171 = vpop.f32.mrb[0].mxu0
      %v4172 = vadd.f32 %v3848, %v4171
      %v4173 = vpop.f32.mrb[0].mxu0
      %4174 = vmatprep.mubr.f32.mxu0 0.0
      %4175 = vmatmul.mubr.f32.gmra.mrb[0].mxu0 %v3960
      %v4176 = vpop.f32.mrb[0].mxu0
      %v4177 = vadd.f32 %v3853, %v4176
      %v4178 = vpop.f32.mrb[0].mxu0
      %4179 = vmatprep.mubr.f32.mxu0 0.0
      %4180 = vmatmul.mubr.f32.gmra.mrb[0].mxu0 %v3963
      %v4181 = vpop.f32.mrb[0].mxu0
      %v4182 = vadd.f32 %v3858, %v4181
      %v4183 = vpop.f32.mrb[0].mxu0
      %4184 = vmatprep.mubr.f32.mxu0 0.0
      %4185 = vmatmul.mubr.f32.gmra.mrb[0].mxu0 %v3966
      %v4186 = vpop.f32.mrb[0].mxu0
      %v4187 = vadd.f32 %v3863, %v4186
      %v4188 = vpop.f32.mrb[0].mxu0
      %4189 = vmatprep.mubr.f32.mxu0 0.0
      %4190 = vmatmul.mubr.f32.gmra.mrb[0].mxu0 %v3969
      %v4191 = vpop.f32.mrb[0].mxu0
      %v4192 = vadd.f32 %v3868, %v4191
      %v4193 = vpop.f32.mrb[0].mxu0
      %4194 = vmatprep.mubr.f32.mxu0 0.0
      %4195 = vmatmul.mubr.f32.gmra.mrb[0].mxu0 %v3972
      %v4196 = vpop.f32.mrb[0].mxu0
      %v4197 = vadd.f32 %v3873, %v4196
      %v4198 = vpop.f32.mrb[0].mxu0
      %4199 = vmatprep.mubr.f32.mxu0 0.0
      %4200 = vmatmul.mubr.f32.gmra.mrb[0].mxu0 %v3975
      %v4201 = vpop.f32.mrb[0].mxu0
      %v4202 = vadd.f32 %v3878, %v4201
      %v4203 = vpop.f32.mrb[0].mxu0
      %4204 = vdwg.mxu0
      %v4205 = vld [vmem:[%s5] sm:$0xf]
      %v4207 = vsel %vm3555, %v2753, 0
      %v4210 = vsel %vm3555, %v2754, 0
      %v4213 = vsel %vm3555, %v2755, 0
      %v4216 = vsel %vm3555, %v2756, 0
      %v4219 = vsel %vm3555, %v2757, 0
      %v4222 = vsel %vm3555, %v2758, 0
      %v4225 = vsel %vm3555, %v2759, 0
      %v4228 = vsel %vm3555, %v2760, 0
      %v4231 = vsel %vm3555, %v2761, 0
      %v4234 = vsel %vm3555, %v2762, 0
      %v4237 = vsel %vm3555, %v2763, 0
      %v4240 = vsel %vm3555, %v2764, 0
      %v4243 = vsel %vm3555, %v2765, 0
      %v4246 = vsel %vm3555, %v2766, 0
      %v4249 = vsel %vm3555, %v2767, 0
      %v4252 = vsel %vm3555, %v2768, 0
      %v4255 = vsel %vm3555, %v2769, 0
      %v4258 = vsel %vm3555, %v2770, 0
      %v4261 = vsel %vm3555, %v2771, 0
      %v4264 = vsel %vm3555, %v2772, 0
      %v4267 = vsel %vm3555, %v2773, 0
      %v4270 = vsel %vm3555, %v2774, 0
      %v4273 = vsel %vm3555, %v2775, 0
      %v4276 = vsel %vm3555, %v2776, 0
      %v4279 = vsel %vm3555, %v2777, 0
      %v4282 = vsel %vm3555, %v2778, 0
      %v4285 = vsel %vm3555, %v2779, 0
      %v4288 = vsel %vm3555, %v2780, 0
      %v4291 = vsel %vm3555, %v2781, 0
      %v4294 = vsel %vm3555, %v2782, 0
      %v4297 = vsel %vm3555, %v2783, 0
      %v4300 = vsel %vm3555, %v2784, 0
      %v4303 = vsel %vm3652, %v4205, 0
      %4305 = vmatprep.subr.mxu0 0.0
      %4306 = vmatpush1.msra.mxu0 %v4303
      %4307 = vmatprep.subr.mxu0 0.0
      %4308 = vmatpush1.msra.mxu0 0.0
      %4309 = vmatprep.subr.mxu0 0.0
      %4310 = vmatpush1.msra.mxu0 0.0
      %4311 = vmatprep.subr.mxu0 0.0
      %4312 = vmatpush1.msra.mxu0 0.0
      %4313 = vmatprep.subr.mxu0 0.0
      %4314 = vmatpush1.msra.mxu0 0.0
      %4315 = vmatprep.subr.mxu0 0.0
      %4316 = vmatpush1.msra.mxu0 0.0
      %4317 = vmatprep.subr.mxu0 0.0
      %4318 = vmatpush1.msra.mxu0 0.0
      %4319 = vmatprep.subr.mxu0 0.0
      %4320 = vmatpush1.msra.mxu0 0.0
      %4321 = vmatprep.subr.mxu0 0.0
      %4322 = vmatpush1.msra.mxu0 0.0
      %4323 = vmatprep.subr.mxu0 0.0
      %4324 = vmatpush1.msra.mxu0 0.0
      %4325 = vmatprep.subr.mxu0 0.0
      %4326 = vmatpush1.msra.mxu0 0.0
      %4327 = vmatprep.subr.mxu0 0.0
      %4328 = vmatpush1.msra.mxu0 0.0
      %4329 = vmatprep.subr.mxu0 0.0
      %4330 = vmatpush1.msra.mxu0 0.0
      %4331 = vmatprep.subr.mxu0 0.0
      %4332 = vmatpush1.msra.mxu0 0.0
      %4333 = vmatprep.subr.mxu0 0.0
      %4334 = vmatpush1.msra.mxu0 0.0
      %4335 = vmatprep.subr.mxu0 0.0
      %4336 = vmatpush1.msra.mxu0 0.0
      %4337 = vmatprep.subr.mxu0 0.0
      %4338 = vmatpush1.msra.mxu0 0.0
      %4339 = vmatprep.subr.mxu0 0.0
      %4340 = vmatpush1.msra.mxu0 0.0
      %4341 = vmatprep.subr.mxu0 0.0
      %4342 = vmatpush1.msra.mxu0 0.0
      %4343 = vmatprep.subr.mxu0 0.0
      %4344 = vmatpush1.msra.mxu0 0.0
      %4345 = vmatprep.subr.mxu0 0.0
      %4346 = vmatpush1.msra.mxu0 0.0
      %4347 = vmatprep.subr.mxu0 0.0
      %4348 = vmatpush1.msra.mxu0 0.0
      %4349 = vmatprep.subr.mxu0 0.0
      %4350 = vmatpush1.msra.mxu0 0.0
      %4351 = vmatprep.subr.mxu0 0.0
      %4352 = vmatpush1.msra.mxu0 0.0
      %4353 = vmatprep.subr.mxu0 0.0
      %4354 = vmatpush1.msra.mxu0 0.0
      %4355 = vmatprep.subr.mxu0 0.0
      %4356 = vmatpush1.msra.mxu0 0.0
      %4357 = vmatprep.subr.mxu0 0.0
      %4358 = vmatpush1.msra.mxu0 0.0
      %4359 = vmatprep.subr.mxu0 0.0
      %4360 = vmatpush1.msra.mxu0 0.0
      %4361 = vmatprep.subr.mxu0 0.0
      %4362 = vmatpush1.msra.mxu0 0.0
      %4363 = vmatprep.subr.mxu0 0.0
      %4364 = vmatpush1.msra.mxu0 0.0
      %4365 = vmatprep.subr.mxu0 0.0
      %4366 = vmatpush1.msra.mxu0 0.0
      %4367 = vmatprep.subr.mxu0 0.0
      %4368 = vmatpush1.msra.mxu0 0.0
      %4369 = vmatprep.mubr.f32.mxu0 0.0
      %4370 = vmatmul.mubr.f32.gmra.mrb[0].mxu0 %v4207
      %v4371 = vpop.f32.mrb[0].mxu0
      %v4372 = vadd.f32 0.0, %v4371
      %v4373 = vpop.f32.mrb[0].mxu0
      %4374 = vmatprep.mubr.f32.mxu0 0.0
      %4375 = vmatmul.mubr.f32.gmra.mrb[0].mxu0 %v4210
      %v4376 = vpop.f32.mrb[0].mxu0
      %v4377 = vadd.f32 0.0, %v4376
      %v4378 = vpop.f32.mrb[0].mxu0
      %4379 = vmatprep.mubr.f32.mxu0 0.0
      %4380 = vmatmul.mubr.f32.gmra.mrb[0].mxu0 %v4213
      %v4381 = vpop.f32.mrb[0].mxu0
      %v4382 = vadd.f32 0.0, %v4381
      %v4383 = vpop.f32.mrb[0].mxu0
      %4384 = vmatprep.mubr.f32.mxu0 0.0
      %4385 = vmatmul.mubr.f32.gmra.mrb[0].mxu0 %v4216
      %v4386 = vpop.f32.mrb[0].mxu0
      %v4387 = vadd.f32 0.0, %v4386
      %v4388 = vpop.f32.mrb[0].mxu0
      %4389 = vmatprep.mubr.f32.mxu0 0.0
      %4390 = vmatmul.mubr.f32.gmra.mrb[0].mxu0 %v4219
      %v4391 = vpop.f32.mrb[0].mxu0
      %v4392 = vadd.f32 0.0, %v4391
      %v4393 = vpop.f32.mrb[0].mxu0
      %4394 = vmatprep.mubr.f32.mxu0 0.0
      %4395 = vmatmul.mubr.f32.gmra.mrb[0].mxu0 %v4222
      %v4396 = vpop.f32.mrb[0].mxu0
      %v4397 = vadd.f32 0.0, %v4396
      %v4398 = vpop.f32.mrb[0].mxu0
      %4399 = vmatprep.mubr.f32.mxu0 0.0
      %4400 = vmatmul.mubr.f32.gmra.mrb[0].mxu0 %v4225
      %v4401 = vpop.f32.mrb[0].mxu0
      %v4402 = vadd.f32 0.0, %v4401
      %v4403 = vpop.f32.mrb[0].mxu0
      %4404 = vmatprep.mubr.f32.mxu0 0.0
      %4405 = vmatmul.mubr.f32.gmra.mrb[0].mxu0 %v4228
      %v4406 = vpop.f32.mrb[0].mxu0
      %v4407 = vadd.f32 0.0, %v4406
      %v4408 = vpop.f32.mrb[0].mxu0
      %4409 = vmatprep.mubr.f32.mxu0 0.0
      %4410 = vmatmul.mubr.f32.gmra.mrb[0].mxu0 %v4231
      %v4411 = vpop.f32.mrb[0].mxu0
      %v4412 = vadd.f32 0.0, %v4411
      %v4413 = vpop.f32.mrb[0].mxu0
      %4414 = vmatprep.mubr.f32.mxu0 0.0
      %4415 = vmatmul.mubr.f32.gmra.mrb[0].mxu0 %v4234
      %v4416 = vpop.f32.mrb[0].mxu0
      %v4417 = vadd.f32 0.0, %v4416
      %v4418 = vpop.f32.mrb[0].mxu0
      %4419 = vmatprep.mubr.f32.mxu0 0.0
      %4420 = vmatmul.mubr.f32.gmra.mrb[0].mxu0 %v4237
      %v4421 = vpop.f32.mrb[0].mxu0
      %v4422 = vadd.f32 0.0, %v4421
      %v4423 = vpop.f32.mrb[0].mxu0
      %4424 = vmatprep.mubr.f32.mxu0 0.0
      %4425 = vmatmul.mubr.f32.gmra.mrb[0].mxu0 %v4240
      %v4426 = vpop.f32.mrb[0].mxu0
      %v4427 = vadd.f32 0.0, %v4426
      %v4428 = vpop.f32.mrb[0].mxu0
      %4429 = vmatprep.mubr.f32.mxu0 0.0
      %4430 = vmatmul.mubr.f32.gmra.mrb[0].mxu0 %v4243
      %v4431 = vpop.f32.mrb[0].mxu0
      %v4432 = vadd.f32 0.0, %v4431
      %v4433 = vpop.f32.mrb[0].mxu0
      %4434 = vmatprep.mubr.f32.mxu0 0.0
      %4435 = vmatmul.mubr.f32.gmra.mrb[0].mxu0 %v4246
      %v4436 = vpop.f32.mrb[0].mxu0
      %v4437 = vadd.f32 0.0, %v4436
      %v4438 = vpop.f32.mrb[0].mxu0
      %4439 = vmatprep.mubr.f32.mxu0 0.0
      %4440 = vmatmul.mubr.f32.gmra.mrb[0].mxu0 %v4249
      %v4441 = vpop.f32.mrb[0].mxu0
      %v4442 = vadd.f32 0.0, %v4441
      %v4443 = vpop.f32.mrb[0].mxu0
      %4444 = vmatprep.mubr.f32.mxu0 0.0
      %4445 = vmatmul.mubr.f32.gmra.mrb[0].mxu0 %v4252
      %v4446 = vpop.f32.mrb[0].mxu0
      %v4447 = vadd.f32 0.0, %v4446
      %v4448 = vpop.f32.mrb[0].mxu0
      %4449 = vmatprep.mubr.f32.mxu0 0.0
      %4450 = vmatmul.mubr.f32.gmra.mrb[0].mxu0 %v4255
      %v4451 = vpop.f32.mrb[0].mxu0
      %v4452 = vadd.f32 0.0, %v4451
      %v4453 = vpop.f32.mrb[0].mxu0
      %4454 = vmatprep.mubr.f32.mxu0 0.0
      %4455 = vmatmul.mubr.f32.gmra.mrb[0].mxu0 %v4258
      %v4456 = vpop.f32.mrb[0].mxu0
      %v4457 = vadd.f32 0.0, %v4456
      %v4458 = vpop.f32.mrb[0].mxu0
      %4459 = vmatprep.mubr.f32.mxu0 0.0
      %4460 = vmatmul.mubr.f32.gmra.mrb[0].mxu0 %v4261
      %v4461 = vpop.f32.mrb[0].mxu0
      %v4462 = vadd.f32 0.0, %v4461
      %v4463 = vpop.f32.mrb[0].mxu0
      %4464 = vmatprep.mubr.f32.mxu0 0.0
      %4465 = vmatmul.mubr.f32.gmra.mrb[0].mxu0 %v4264
      %v4466 = vpop.f32.mrb[0].mxu0
      %v4467 = vadd.f32 0.0, %v4466
      %v4468 = vpop.f32.mrb[0].mxu0
      %4469 = vmatprep.mubr.f32.mxu0 0.0
      %4470 = vmatmul.mubr.f32.gmra.mrb[0].mxu0 %v4267
      %v4471 = vpop.f32.mrb[0].mxu0
      %v4472 = vadd.f32 0.0, %v4471
      %v4473 = vpop.f32.mrb[0].mxu0
      %4474 = vmatprep.mubr.f32.mxu0 0.0
      %4475 = vmatmul.mubr.f32.gmra.mrb[0].mxu0 %v4270
      %v4476 = vpop.f32.mrb[0].mxu0
      %v4477 = vadd.f32 0.0, %v4476
      %v4478 = vpop.f32.mrb[0].mxu0
      %4479 = vmatprep.mubr.f32.mxu0 0.0
      %4480 = vmatmul.mubr.f32.gmra.mrb[0].mxu0 %v4273
      %v4481 = vpop.f32.mrb[0].mxu0
      %v4482 = vadd.f32 0.0, %v4481
      %v4483 = vpop.f32.mrb[0].mxu0
      %4484 = vmatprep.mubr.f32.mxu0 0.0
      %4485 = vmatmul.mubr.f32.gmra.mrb[0].mxu0 %v4276
      %v4486 = vpop.f32.mrb[0].mxu0
      %v4487 = vadd.f32 0.0, %v4486
      %v4488 = vpop.f32.mrb[0].mxu0
      %4489 = vmatprep.mubr.f32.mxu0 0.0
      %4490 = vmatmul.mubr.f32.gmra.mrb[0].mxu0 %v4279
      %v4491 = vpop.f32.mrb[0].mxu0
      %v4492 = vadd.f32 0.0, %v4491
      %v4493 = vpop.f32.mrb[0].mxu0
      %4494 = vmatprep.mubr.f32.mxu0 0.0
      %4495 = vmatmul.mubr.f32.gmra.mrb[0].mxu0 %v4282
      %v4496 = vpop.f32.mrb[0].mxu0
      %v4497 = vadd.f32 0.0, %v4496
      %v4498 = vpop.f32.mrb[0].mxu0
      %4499 = vmatprep.mubr.f32.mxu0 0.0
      %4500 = vmatmul.mubr.f32.gmra.mrb[0].mxu0 %v4285
      %v4501 = vpop.f32.mrb[0].mxu0
      %v4502 = vadd.f32 0.0, %v4501
      %v4503 = vpop.f32.mrb[0].mxu0
      %4504 = vmatprep.mubr.f32.mxu0 0.0
      %4505 = vmatmul.mubr.f32.gmra.mrb[0].mxu0 %v4288
      %v4506 = vpop.f32.mrb[0].mxu0
      %v4507 = vadd.f32 0.0, %v4506
      %v4508 = vpop.f32.mrb[0].mxu0
      %4509 = vmatprep.mubr.f32.mxu0 0.0
      %4510 = vmatmul.mubr.f32.gmra.mrb[0].mxu0 %v4291
      %v4511 = vpop.f32.mrb[0].mxu0
      %v4512 = vadd.f32 0.0, %v4511
      %v4513 = vpop.f32.mrb[0].mxu0
      %4514 = vmatprep.mubr.f32.mxu0 0.0
      %4515 = vmatmul.mubr.f32.gmra.mrb[0].mxu0 %v4294
      %v4516 = vpop.f32.mrb[0].mxu0
      %v4517 = vadd.f32 0.0, %v4516
      %v4518 = vpop.f32.mrb[0].mxu0
      %4519 = vmatprep.mubr.f32.mxu0 0.0
      %4520 = vmatmul.mubr.f32.gmra.mrb[0].mxu0 %v4297
      %v4521 = vpop.f32.mrb[0].mxu0
      %v4522 = vadd.f32 0.0, %v4521
      %v4523 = vpop.f32.mrb[0].mxu0
      %4524 = vmatprep.mubr.f32.mxu0 0.0
      %4525 = vmatmul.mubr.f32.gmra.mrb[0].mxu0 %v4300
      %v4526 = vpop.f32.mrb[0].mxu0
      %v4527 = vadd.f32 0.0, %v4526
      %v4528 = vpop.f32.mrb[0].mxu0
      %4529 = vdwg.mxu0
      %v4530 = vadd.f32 %v4047, %v4372
      %v4531 = vadd.f32 %v4052, %v4377
      %v4532 = vadd.f32 %v4057, %v4382
      %v4533 = vadd.f32 %v4062, %v4387
      %v4534 = vadd.f32 %v4067, %v4392
      %v4535 = vadd.f32 %v4072, %v4397
      %v4536 = vadd.f32 %v4077, %v4402
      %v4537 = vadd.f32 %v4082, %v4407
      %v4538 = vadd.f32 %v4087, %v4412
      %v4539 = vadd.f32 %v4092, %v4417
      %v4540 = vadd.f32 %v4097, %v4422
      %v4541 = vadd.f32 %v4102, %v4427
      %v4542 = vadd.f32 %v4107, %v4432
      %v4543 = vadd.f32 %v4112, %v4437
      %v4544 = vadd.f32 %v4117, %v4442
      %v4545 = vadd.f32 %v4122, %v4447
      %v4546 = vadd.f32 %v4127, %v4452
      %v4547 = vadd.f32 %v4132, %v4457
      %v4548 = vadd.f32 %v4137, %v4462
      %v4549 = vadd.f32 %v4142, %v4467
      %v4550 = vadd.f32 %v4147, %v4472
      %v4551 = vadd.f32 %v4152, %v4477
      %v4552 = vadd.f32 %v4157, %v4482
      %v4553 = vadd.f32 %v4162, %v4487
      %v4554 = vadd.f32 %v4167, %v4492
      %v4555 = vadd.f32 %v4172, %v4497
      %v4556 = vadd.f32 %v4177, %v4502
      %v4557 = vadd.f32 %v4182, %v4507
      %v4558 = vadd.f32 %v4187, %v4512
      %v4559 = vadd.f32 %v4192, %v4517
      %v4560 = vadd.f32 %v4197, %v4522
      %v4561 = vadd.f32 %v4202, %v4527
      %v4562 = vld [vmem:[%s6] sm:$0xf]
      %v4564 = vsel %vm3555, %v3521, 0
      %v4567 = vsel %vm3555, %v3522, 0
      %v4570 = vsel %vm3555, %v3523, 0
      %v4573 = vsel %vm3555, %v3524, 0
      %v4576 = vsel %vm3555, %v3525, 0
      %v4579 = vsel %vm3555, %v3526, 0
      %v4582 = vsel %vm3555, %v3527, 0
      %v4585 = vsel %vm3555, %v3528, 0
      %v4588 = vsel %vm3555, %v3529, 0
      %v4591 = vsel %vm3555, %v3530, 0
      %v4594 = vsel %vm3555, %v3531, 0
      %v4597 = vsel %vm3555, %v3532, 0
      %v4600 = vsel %vm3555, %v3533, 0
      %v4603 = vsel %vm3555, %v3534, 0
      %v4606 = vsel %vm3555, %v3535, 0
      %v4609 = vsel %vm3555, %v3536, 0
      %v4612 = vsel %vm3555, %v3537, 0
      %v4615 = vsel %vm3555, %v3538, 0
      %v4618 = vsel %vm3555, %v3539, 0
      %v4621 = vsel %vm3555, %v3540, 0
      %v4624 = vsel %vm3555, %v3541, 0
      %v4627 = vsel %vm3555, %v3542, 0
      %v4630 = vsel %vm3555, %v3543, 0
      %v4633 = vsel %vm3555, %v3544, 0
      %v4636 = vsel %vm3555, %v3545, 0
      %v4639 = vsel %vm3555, %v3546, 0
      %v4642 = vsel %vm3555, %v3547, 0
      %v4645 = vsel %vm3555, %v3548, 0
      %v4648 = vsel %vm3555, %v3549, 0
      %v4651 = vsel %vm3555, %v3550, 0
      %v4654 = vsel %vm3555, %v3551, 0
      %v4657 = vsel %vm3555, %v3552, 0
      %v4660 = vsel %vm3652, %v4562, 0
      %4662 = vmatprep.subr.mxu0 0.0
      %4663 = vmatpush1.msra.mxu0 %v4660
      %4664 = vmatprep.subr.mxu0 0.0
      %4665 = vmatpush1.msra.mxu0 0.0
      %4666 = vmatprep.subr.mxu0 0.0
      %4667 = vmatpush1.msra.mxu0 0.0
      %4668 = vmatprep.subr.mxu0 0.0
      %4669 = vmatpush1.msra.mxu0 0.0
      %4670 = vmatprep.subr.mxu0 0.0
      %4671 = vmatpush1.msra.mxu0 0.0
      %4672 = vmatprep.subr.mxu0 0.0
      %4673 = vmatpush1.msra.mxu0 0.0
      %4674 = vmatprep.subr.mxu0 0.0
      %4675 = vmatpush1.msra.mxu0 0.0
      %4676 = vmatprep.subr.mxu0 0.0
      %4677 = vmatpush1.msra.mxu0 0.0
      %4678 = vmatprep.subr.mxu0 0.0
      %4679 = vmatpush1.msra.mxu0 0.0
      %4680 = vmatprep.subr.mxu0 0.0
      %4681 = vmatpush1.msra.mxu0 0.0
      %4682 = vmatprep.subr.mxu0 0.0
      %4683 = vmatpush1.msra.mxu0 0.0
      %4684 = vmatprep.subr.mxu0 0.0
      %4685 = vmatpush1.msra.mxu0 0.0
      %4686 = vmatprep.subr.mxu0 0.0
      %4687 = vmatpush1.msra.mxu0 0.0
      %4688 = vmatprep.subr.mxu0 0.0
      %4689 = vmatpush1.msra.mxu0 0.0
      %4690 = vmatprep.subr.mxu0 0.0
      %4691 = vmatpush1.msra.mxu0 0.0
      %4692 = vmatprep.subr.mxu0 0.0
      %4693 = vmatpush1.msra.mxu0 0.0
      %4694 = vmatprep.subr.mxu0 0.0
      %4695 = vmatpush1.msra.mxu0 0.0
      %4696 = vmatprep.subr.mxu0 0.0
      %4697 = vmatpush1.msra.mxu0 0.0
      %4698 = vmatprep.subr.mxu0 0.0
      %4699 = vmatpush1.msra.mxu0 0.0
      %4700 = vmatprep.subr.mxu0 0.0
      %4701 = vmatpush1.msra.mxu0 0.0
      %4702 = vmatprep.subr.mxu0 0.0
      %4703 = vmatpush1.msra.mxu0 0.0
      %4704 = vmatprep.subr.mxu0 0.0
      %4705 = vmatpush1.msra.mxu0 0.0
      %4706 = vmatprep.subr.mxu0 0.0
      %4707 = vmatpush1.msra.mxu0 0.0
      %4708 = vmatprep.subr.mxu0 0.0
      %4709 = vmatpush1.msra.mxu0 0.0
      %4710 = vmatprep.subr.mxu0 0.0
      %4711 = vmatpush1.msra.mxu0 0.0
      %4712 = vmatprep.subr.mxu0 0.0
      %4713 = vmatpush1.msra.mxu0 0.0
      %4714 = vmatprep.subr.mxu0 0.0
      %4715 = vmatpush1.msra.mxu0 0.0
      %4716 = vmatprep.subr.mxu0 0.0
      %4717 = vmatpush1.msra.mxu0 0.0
      %4718 = vmatprep.subr.mxu0 0.0
      %4719 = vmatpush1.msra.mxu0 0.0
      %4720 = vmatprep.subr.mxu0 0.0
      %4721 = vmatpush1.msra.mxu0 0.0
      %4722 = vmatprep.subr.mxu0 0.0
      %4723 = vmatpush1.msra.mxu0 0.0
      %4724 = vmatprep.subr.mxu0 0.0
      %4725 = vmatpush1.msra.mxu0 0.0
      %4726 = vmatprep.mubr.f32.mxu0 0.0
      %4727 = vmatmul.mubr.f32.gmra.mrb[0].mxu0 %v4564
      %v4728 = vpop.f32.mrb[0].mxu0
      %v4729 = vadd.f32 0.0, %v4728
      %v4730 = vpop.f32.mrb[0].mxu0
      %4731 = vmatprep.mubr.f32.mxu0 0.0
      %4732 = vmatmul.mubr.f32.gmra.mrb[0].mxu0 %v4567
      %v4733 = vpop.f32.mrb[0].mxu0
      %v4734 = vadd.f32 0.0, %v4733
      %v4735 = vpop.f32.mrb[0].mxu0
      %4736 = vmatprep.mubr.f32.mxu0 0.0
      %4737 = vmatmul.mubr.f32.gmra.mrb[0].mxu0 %v4570
      %v4738 = vpop.f32.mrb[0].mxu0
      %v4739 = vadd.f32 0.0, %v4738
      %v4740 = vpop.f32.mrb[0].mxu0
      %4741 = vmatprep.mubr.f32.mxu0 0.0
      %4742 = vmatmul.mubr.f32.gmra.mrb[0].mxu0 %v4573
      %v4743 = vpop.f32.mrb[0].mxu0
      %v4744 = vadd.f32 0.0, %v4743
      %v4745 = vpop.f32.mrb[0].mxu0
      %4746 = vmatprep.mubr.f32.mxu0 0.0
      %4747 = vmatmul.mubr.f32.gmra.mrb[0].mxu0 %v4576
      %v4748 = vpop.f32.mrb[0].mxu0
      %v4749 = vadd.f32 0.0, %v4748
      %v4750 = vpop.f32.mrb[0].mxu0
      %4751 = vmatprep.mubr.f32.mxu0 0.0
      %4752 = vmatmul.mubr.f32.gmra.mrb[0].mxu0 %v4579
      %v4753 = vpop.f32.mrb[0].mxu0
      %v4754 = vadd.f32 0.0, %v4753
      %v4755 = vpop.f32.mrb[0].mxu0
      %4756 = vmatprep.mubr.f32.mxu0 0.0
      %4757 = vmatmul.mubr.f32.gmra.mrb[0].mxu0 %v4582
      %v4758 = vpop.f32.mrb[0].mxu0
      %v4759 = vadd.f32 0.0, %v4758
      %v4760 = vpop.f32.mrb[0].mxu0
      %4761 = vmatprep.mubr.f32.mxu0 0.0
      %4762 = vmatmul.mubr.f32.gmra.mrb[0].mxu0 %v4585
      %v4763 = vpop.f32.mrb[0].mxu0
      %v4764 = vadd.f32 0.0, %v4763
      %v4765 = vpop.f32.mrb[0].mxu0
      %4766 = vmatprep.mubr.f32.mxu0 0.0
      %4767 = vmatmul.mubr.f32.gmra.mrb[0].mxu0 %v4588
      %v4768 = vpop.f32.mrb[0].mxu0
      %v4769 = vadd.f32 0.0, %v4768
      %v4770 = vpop.f32.mrb[0].mxu0
      %4771 = vmatprep.mubr.f32.mxu0 0.0
      %4772 = vmatmul.mubr.f32.gmra.mrb[0].mxu0 %v4591
      %v4773 = vpop.f32.mrb[0].mxu0
      %v4774 = vadd.f32 0.0, %v4773
      %v4775 = vpop.f32.mrb[0].mxu0
      %4776 = vmatprep.mubr.f32.mxu0 0.0
      %4777 = vmatmul.mubr.f32.gmra.mrb[0].mxu0 %v4594
      %v4778 = vpop.f32.mrb[0].mxu0
      %v4779 = vadd.f32 0.0, %v4778
      %v4780 = vpop.f32.mrb[0].mxu0
      %4781 = vmatprep.mubr.f32.mxu0 0.0
      %4782 = vmatmul.mubr.f32.gmra.mrb[0].mxu0 %v4597
      %v4783 = vpop.f32.mrb[0].mxu0
      %v4784 = vadd.f32 0.0, %v4783
      %v4785 = vpop.f32.mrb[0].mxu0
      %4786 = vmatprep.mubr.f32.mxu0 0.0
      %4787 = vmatmul.mubr.f32.gmra.mrb[0].mxu0 %v4600
      %v4788 = vpop.f32.mrb[0].mxu0
      %v4789 = vadd.f32 0.0, %v4788
      %v4790 = vpop.f32.mrb[0].mxu0
      %4791 = vmatprep.mubr.f32.mxu0 0.0
      %4792 = vmatmul.mubr.f32.gmra.mrb[0].mxu0 %v4603
      %v4793 = vpop.f32.mrb[0].mxu0
      %v4794 = vadd.f32 0.0, %v4793
      %v4795 = vpop.f32.mrb[0].mxu0
      %4796 = vmatprep.mubr.f32.mxu0 0.0
      %4797 = vmatmul.mubr.f32.gmra.mrb[0].mxu0 %v4606
      %v4798 = vpop.f32.mrb[0].mxu0
      %v4799 = vadd.f32 0.0, %v4798
      %v4800 = vpop.f32.mrb[0].mxu0
      %4801 = vmatprep.mubr.f32.mxu0 0.0
      %4802 = vmatmul.mubr.f32.gmra.mrb[0].mxu0 %v4609
      %v4803 = vpop.f32.mrb[0].mxu0
      %v4804 = vadd.f32 0.0, %v4803
      %v4805 = vpop.f32.mrb[0].mxu0
      %4806 = vmatprep.mubr.f32.mxu0 0.0
      %4807 = vmatmul.mubr.f32.gmra.mrb[0].mxu0 %v4612
      %v4808 = vpop.f32.mrb[0].mxu0
      %v4809 = vadd.f32 0.0, %v4808
      %v4810 = vpop.f32.mrb[0].mxu0
      %4811 = vmatprep.mubr.f32.mxu0 0.0
      %4812 = vmatmul.mubr.f32.gmra.mrb[0].mxu0 %v4615
      %v4813 = vpop.f32.mrb[0].mxu0
      %v4814 = vadd.f32 0.0, %v4813
      %v4815 = vpop.f32.mrb[0].mxu0
      %4816 = vmatprep.mubr.f32.mxu0 0.0
      %4817 = vmatmul.mubr.f32.gmra.mrb[0].mxu0 %v4618
      %v4818 = vpop.f32.mrb[0].mxu0
      %v4819 = vadd.f32 0.0, %v4818
      %v4820 = vpop.f32.mrb[0].mxu0
      %4821 = vmatprep.mubr.f32.mxu0 0.0
      %4822 = vmatmul.mubr.f32.gmra.mrb[0].mxu0 %v4621
      %v4823 = vpop.f32.mrb[0].mxu0
      %v4824 = vadd.f32 0.0, %v4823
      %v4825 = vpop.f32.mrb[0].mxu0
      %4826 = vmatprep.mubr.f32.mxu0 0.0
      %4827 = vmatmul.mubr.f32.gmra.mrb[0].mxu0 %v4624
      %v4828 = vpop.f32.mrb[0].mxu0
      %v4829 = vadd.f32 0.0, %v4828
      %v4830 = vpop.f32.mrb[0].mxu0
      %4831 = vmatprep.mubr.f32.mxu0 0.0
      %4832 = vmatmul.mubr.f32.gmra.mrb[0].mxu0 %v4627
      %v4833 = vpop.f32.mrb[0].mxu0
      %v4834 = vadd.f32 0.0, %v4833
      %v4835 = vpop.f32.mrb[0].mxu0
      %4836 = vmatprep.mubr.f32.mxu0 0.0
      %4837 = vmatmul.mubr.f32.gmra.mrb[0].mxu0 %v4630
      %v4838 = vpop.f32.mrb[0].mxu0
      %v4839 = vadd.f32 0.0, %v4838
      %v4840 = vpop.f32.mrb[0].mxu0
      %4841 = vmatprep.mubr.f32.mxu0 0.0
      %4842 = vmatmul.mubr.f32.gmra.mrb[0].mxu0 %v4633
      %v4843 = vpop.f32.mrb[0].mxu0
      %v4844 = vadd.f32 0.0, %v4843
      %v4845 = vpop.f32.mrb[0].mxu0
      %4846 = vmatprep.mubr.f32.mxu0 0.0
      %4847 = vmatmul.mubr.f32.gmra.mrb[0].mxu0 %v4636
      %v4848 = vpop.f32.mrb[0].mxu0
      %v4849 = vadd.f32 0.0, %v4848
      %v4850 = vpop.f32.mrb[0].mxu0
      %4851 = vmatprep.mubr.f32.mxu0 0.0
      %4852 = vmatmul.mubr.f32.gmra.mrb[0].mxu0 %v4639
      %v4853 = vpop.f32.mrb[0].mxu0
      %v4854 = vadd.f32 0.0, %v4853
      %v4855 = vpop.f32.mrb[0].mxu0
      %4856 = vmatprep.mubr.f32.mxu0 0.0
      %4857 = vmatmul.mubr.f32.gmra.mrb[0].mxu0 %v4642
      %v4858 = vpop.f32.mrb[0].mxu0
      %v4859 = vadd.f32 0.0, %v4858
      %v4860 = vpop.f32.mrb[0].mxu0
      %4861 = vmatprep.mubr.f32.mxu0 0.0
      %4862 = vmatmul.mubr.f32.gmra.mrb[0].mxu0 %v4645
      %v4863 = vpop.f32.mrb[0].mxu0
      %v4864 = vadd.f32 0.0, %v4863
      %v4865 = vpop.f32.mrb[0].mxu0
      %4866 = vmatprep.mubr.f32.mxu0 0.0
      %4867 = vmatmul.mubr.f32.gmra.mrb[0].mxu0 %v4648
      %v4868 = vpop.f32.mrb[0].mxu0
      %v4869 = vadd.f32 0.0, %v4868
      %v4870 = vpop.f32.mrb[0].mxu0
      %4871 = vmatprep.mubr.f32.mxu0 0.0
      %4872 = vmatmul.mubr.f32.gmra.mrb[0].mxu0 %v4651
      %v4873 = vpop.f32.mrb[0].mxu0
      %v4874 = vadd.f32 0.0, %v4873
      %v4875 = vpop.f32.mrb[0].mxu0
      %4876 = vmatprep.mubr.f32.mxu0 0.0
      %4877 = vmatmul.mubr.f32.gmra.mrb[0].mxu0 %v4654
      %v4878 = vpop.f32.mrb[0].mxu0
      %v4879 = vadd.f32 0.0, %v4878
      %v4880 = vpop.f32.mrb[0].mxu0
      %4881 = vmatprep.mubr.f32.mxu0 0.0
      %4882 = vmatmul.mubr.f32.gmra.mrb[0].mxu0 %v4657
      %v4883 = vpop.f32.mrb[0].mxu0
      %v4884 = vadd.f32 0.0, %v4883
      %v4885 = vpop.f32.mrb[0].mxu0
      %4886 = vdwg.mxu0
      %v4887 = vadd.f32 %v4530, %v4729
      %v4888 = vadd.f32 %v4531, %v4734
      %v4889 = vadd.f32 %v4532, %v4739
      %v4890 = vadd.f32 %v4533, %v4744
      %v4891 = vadd.f32 %v4534, %v4749
      %v4892 = vadd.f32 %v4535, %v4754
      %v4893 = vadd.f32 %v4536, %v4759
      %v4894 = vadd.f32 %v4537, %v4764
      %v4895 = vadd.f32 %v4538, %v4769
      %v4896 = vadd.f32 %v4539, %v4774
      %v4897 = vadd.f32 %v4540, %v4779
      %v4898 = vadd.f32 %v4541, %v4784
      %v4899 = vadd.f32 %v4542, %v4789
      %v4900 = vadd.f32 %v4543, %v4794
      %v4901 = vadd.f32 %v4544, %v4799
      %v4902 = vadd.f32 %v4545, %v4804
      %v4903 = vadd.f32 %v4546, %v4809
      %v4904 = vadd.f32 %v4547, %v4814
      %v4905 = vadd.f32 %v4548, %v4819
      %v4906 = vadd.f32 %v4549, %v4824
      %v4907 = vadd.f32 %v4550, %v4829
      %v4908 = vadd.f32 %v4551, %v4834
      %v4909 = vadd.f32 %v4552, %v4839
      %v4910 = vadd.f32 %v4553, %v4844
      %v4911 = vadd.f32 %v4554, %v4849
      %v4912 = vadd.f32 %v4555, %v4854
      %v4913 = vadd.f32 %v4556, %v4859
      %v4914 = vadd.f32 %v4557, %v4864
      %v4915 = vadd.f32 %v4558, %v4869
      %v4916 = vadd.f32 %v4559, %v4874
      %v4917 = vadd.f32 %v4560, %v4879
      %v4918 = vadd.f32 %v4561, %v4884
      %v4919 = vld [vmem:[%s7] sm:$0x1]
      %v4921 = vlaneseq
      %v4922 = vshrl.u32 %v4921, 7
      %v4923 = vsub.s32 0, %v4922
      %v4924 = vrot.slane %v4919, %v4923
      %v4926 = vadd.f32 %v4887, %v4924
      %v4927 = vadd.f32 %v4888, %v4924
      %v4928 = vadd.f32 %v4889, %v4924
      %v4929 = vadd.f32 %v4890, %v4924
      %v4930 = vadd.f32 %v4891, %v4924
      %v4931 = vadd.f32 %v4892, %v4924
      %v4932 = vadd.f32 %v4893, %v4924
      %v4933 = vadd.f32 %v4894, %v4924
      %v4934 = vadd.f32 %v4895, %v4924
      %v4935 = vadd.f32 %v4896, %v4924
      %v4936 = vadd.f32 %v4897, %v4924
      %v4937 = vadd.f32 %v4898, %v4924
      %v4938 = vadd.f32 %v4899, %v4924
      %v4939 = vadd.f32 %v4900, %v4924
      %v4940 = vadd.f32 %v4901, %v4924
      %v4941 = vadd.f32 %v4902, %v4924
      %v4942 = vadd.f32 %v4903, %v4924
      %v4943 = vadd.f32 %v4904, %v4924
      %v4944 = vadd.f32 %v4905, %v4924
      %v4945 = vadd.f32 %v4906, %v4924
      %v4946 = vadd.f32 %v4907, %v4924
      %v4947 = vadd.f32 %v4908, %v4924
      %v4948 = vadd.f32 %v4909, %v4924
      %v4949 = vadd.f32 %v4910, %v4924
      %v4950 = vadd.f32 %v4911, %v4924
      %v4951 = vadd.f32 %v4912, %v4924
      %v4952 = vadd.f32 %v4913, %v4924
      %v4953 = vadd.f32 %v4914, %v4924
      %v4954 = vadd.f32 %v4915, %v4924
      %v4955 = vadd.f32 %v4916, %v4924
      %v4956 = vadd.f32 %v4917, %v4924
      %v4957 = vadd.f32 %v4918, %v4924
      %v4958 = vxor.u32 %v4926, 2147483648
      %v4959 = vxor.u32 %v4927, 2147483648
      %v4960 = vxor.u32 %v4928, 2147483648
      %v4961 = vxor.u32 %v4929, 2147483648
      %v4962 = vxor.u32 %v4930, 2147483648
      %v4963 = vxor.u32 %v4931, 2147483648
      %v4964 = vxor.u32 %v4932, 2147483648
      %v4965 = vxor.u32 %v4933, 2147483648
      %v4966 = vxor.u32 %v4934, 2147483648
      %v4967 = vxor.u32 %v4935, 2147483648
      %v4968 = vxor.u32 %v4936, 2147483648
      %v4969 = vxor.u32 %v4937, 2147483648
      %v4970 = vxor.u32 %v4938, 2147483648
      %v4971 = vxor.u32 %v4939, 2147483648
      %v4972 = vxor.u32 %v4940, 2147483648
      %v4973 = vxor.u32 %v4941, 2147483648
      %v4974 = vxor.u32 %v4942, 2147483648
      %v4975 = vxor.u32 %v4943, 2147483648
      %v4976 = vxor.u32 %v4944, 2147483648
      %v4977 = vxor.u32 %v4945, 2147483648
      %v4978 = vxor.u32 %v4946, 2147483648
      %v4979 = vxor.u32 %v4947, 2147483648
      %v4980 = vxor.u32 %v4948, 2147483648
      %v4981 = vxor.u32 %v4949, 2147483648
      %v4982 = vxor.u32 %v4950, 2147483648
      %v4983 = vxor.u32 %v4951, 2147483648
      %v4984 = vxor.u32 %v4952, 2147483648
      %v4985 = vxor.u32 %v4953, 2147483648
      %v4986 = vxor.u32 %v4954, 2147483648
      %v4987 = vxor.u32 %v4955, 2147483648
      %v4988 = vxor.u32 %v4956, 2147483648
      %v4989 = vxor.u32 %v4957, 2147483648
      %v4990 = vmul.f32 %v4958, 1.442695
      %v4991 = vpow.pop %v4990
      %v4992 = vmul.f32 %v4959, 1.442695
      %v4993 = vpow.pop %v4992
      %v4994 = vmul.f32 %v4960, 1.442695
      %v4995 = vpow.pop %v4994
      %v4996 = vmul.f32 %v4961, 1.442695
      %v4997 = vpow.pop %v4996
      %v4998 = vmul.f32 %v4962, 1.442695
      %v4999 = vpow.pop %v4998
      %v5000 = vmul.f32 %v4963, 1.442695
      %v5001 = vpow.pop %v5000
      %v5002 = vmul.f32 %v4964, 1.442695
      %v5003 = vpow.pop %v5002
      %v5004 = vmul.f32 %v4965, 1.442695
      %v5005 = vpow.pop %v5004
      %v5006 = vmul.f32 %v4966, 1.442695
      %v5007 = vpow.pop %v5006
      %v5008 = vmul.f32 %v4967, 1.442695
      %v5009 = vpow.pop %v5008
      %v5010 = vmul.f32 %v4968, 1.442695
      %v5011 = vpow.pop %v5010
      %v5012 = vmul.f32 %v4969, 1.442695
      %v5013 = vpow.pop %v5012
      %v5014 = vmul.f32 %v4970, 1.442695
      %v5015 = vpow.pop %v5014
      %v5016 = vmul.f32 %v4971, 1.442695
      %v5017 = vpow.pop %v5016
      %v5018 = vmul.f32 %v4972, 1.442695
      %v5019 = vpow.pop %v5018
      %v5020 = vmul.f32 %v4973, 1.442695
      %v5021 = vpow.pop %v5020
      %v5022 = vmul.f32 %v4974, 1.442695
      %v5023 = vpow.pop %v5022
      %v5024 = vmul.f32 %v4975, 1.442695
      %v5025 = vpow.pop %v5024
      %v5026 = vmul.f32 %v4976, 1.442695
      %v5027 = vpow.pop %v5026
      %v5028 = vmul.f32 %v4977, 1.442695
      %v5029 = vpow.pop %v5028
      %v5030 = vmul.f32 %v4978, 1.442695
      %v5031 = vpow.pop %v5030
      %v5032 = vmul.f32 %v4979, 1.442695
      %v5033 = vpow.pop %v5032
      %v5034 = vmul.f32 %v4980, 1.442695
      %v5035 = vpow.pop %v5034
      %v5036 = vmul.f32 %v4981, 1.442695
      %v5037 = vpow.pop %v5036
      %v5038 = vmul.f32 %v4982, 1.442695
      %v5039 = vpow.pop %v5038
      %v5040 = vmul.f32 %v4983, 1.442695
      %v5041 = vpow.pop %v5040
      %v5042 = vmul.f32 %v4984, 1.442695
      %v5043 = vpow.pop %v5042
      %v5044 = vmul.f32 %v4985, 1.442695
      %v5045 = vpow.pop %v5044
      %v5046 = vmul.f32 %v4986, 1.442695
      %v5047 = vpow.pop %v5046
      %v5048 = vmul.f32 %v4987, 1.442695
      %v5049 = vpow.pop %v5048
      %v5050 = vmul.f32 %v4988, 1.442695
      %v5051 = vpow.pop %v5050
      %v5052 = vmul.f32 %v4989, 1.442695
      %v5053 = vpow.pop %v5052
      %v5054 = vadd.f32 %v4991, 1.0
      %v5055 = vadd.f32 %v4993, 1.0
      %v5056 = vadd.f32 %v4995, 1.0
      %v5057 = vadd.f32 %v4997, 1.0
      %v5058 = vadd.f32 %v4999, 1.0
      %v5059 = vadd.f32 %v5001, 1.0
      %v5060 = vadd.f32 %v5003, 1.0
      %v5061 = vadd.f32 %v5005, 1.0
      %v5062 = vadd.f32 %v5007, 1.0
      %v5063 = vadd.f32 %v5009, 1.0
      %v5064 = vadd.f32 %v5011, 1.0
      %v5065 = vadd.f32 %v5013, 1.0
      %v5066 = vadd.f32 %v5015, 1.0
      %v5067 = vadd.f32 %v5017, 1.0
      %v5068 = vadd.f32 %v5019, 1.0
      %v5069 = vadd.f32 %v5021, 1.0
      %v5070 = vadd.f32 %v5023, 1.0
      %v5071 = vadd.f32 %v5025, 1.0
      %v5072 = vadd.f32 %v5027, 1.0
      %v5073 = vadd.f32 %v5029, 1.0
      %v5074 = vadd.f32 %v5031, 1.0
      %v5075 = vadd.f32 %v5033, 1.0
      %v5076 = vadd.f32 %v5035, 1.0
      %v5077 = vadd.f32 %v5037, 1.0
      %v5078 = vadd.f32 %v5039, 1.0
      %v5079 = vadd.f32 %v5041, 1.0
      %v5080 = vadd.f32 %v5043, 1.0
      %v5081 = vadd.f32 %v5045, 1.0
      %v5082 = vadd.f32 %v5047, 1.0
      %v5083 = vadd.f32 %v5049, 1.0
      %v5084 = vadd.f32 %v5051, 1.0
      %v5085 = vadd.f32 %v5053, 1.0
      %v5086 = vrcp.pop %v5054
      %v5087 = vmul.f32 1.0, %v5086
      %v5088 = vrcp.pop %v5055
      %v5089 = vmul.f32 1.0, %v5088
      %v5090 = vrcp.pop %v5056
      %v5091 = vmul.f32 1.0, %v5090
      %v5092 = vrcp.pop %v5057
      %v5093 = vmul.f32 1.0, %v5092
      %v5094 = vrcp.pop %v5058
      %v5095 = vmul.f32 1.0, %v5094
      %v5096 = vrcp.pop %v5059
      %v5097 = vmul.f32 1.0, %v5096
      %v5098 = vrcp.pop %v5060
      %v5099 = vmul.f32 1.0, %v5098
      %v5100 = vrcp.pop %v5061
      %v5101 = vmul.f32 1.0, %v5100
      %v5102 = vrcp.pop %v5062
      %v5103 = vmul.f32 1.0, %v5102
      %v5104 = vrcp.pop %v5063
      %v5105 = vmul.f32 1.0, %v5104
      %v5106 = vrcp.pop %v5064
      %v5107 = vmul.f32 1.0, %v5106
      %v5108 = vrcp.pop %v5065
      %v5109 = vmul.f32 1.0, %v5108
      %v5110 = vrcp.pop %v5066
      %v5111 = vmul.f32 1.0, %v5110
      %v5112 = vrcp.pop %v5067
      %v5113 = vmul.f32 1.0, %v5112
      %v5114 = vrcp.pop %v5068
      %v5115 = vmul.f32 1.0, %v5114
      %v5116 = vrcp.pop %v5069
      %v5117 = vmul.f32 1.0, %v5116
      %v5118 = vrcp.pop %v5070
      %v5119 = vmul.f32 1.0, %v5118
      %v5120 = vrcp.pop %v5071
      %v5121 = vmul.f32 1.0, %v5120
      %v5122 = vrcp.pop %v5072
      %v5123 = vmul.f32 1.0, %v5122
      %v5124 = vrcp.pop %v5073
      %v5125 = vmul.f32 1.0, %v5124
      %v5126 = vrcp.pop %v5074
      %v5127 = vmul.f32 1.0, %v5126
      %v5128 = vrcp.pop %v5075
      %v5129 = vmul.f32 1.0, %v5128
      %v5130 = vrcp.pop %v5076
      %v5131 = vmul.f32 1.0, %v5130
      %v5132 = vrcp.pop %v5077
      %v5133 = vmul.f32 1.0, %v5132
      %v5134 = vrcp.pop %v5078
      %v5135 = vmul.f32 1.0, %v5134
      %v5136 = vrcp.pop %v5079
      %v5137 = vmul.f32 1.0, %v5136
      %v5138 = vrcp.pop %v5080
      %v5139 = vmul.f32 1.0, %v5138
      %v5140 = vrcp.pop %v5081
      %v5141 = vmul.f32 1.0, %v5140
      %v5142 = vrcp.pop %v5082
      %v5143 = vmul.f32 1.0, %v5142
      %v5144 = vrcp.pop %v5083
      %v5145 = vmul.f32 1.0, %v5144
      %v5146 = vrcp.pop %v5084
      %v5147 = vmul.f32 1.0, %v5146
      %v5148 = vrcp.pop %v5085
      %v5149 = vmul.f32 1.0, %v5148
      %v5150 = vmul.f32 %v4926, %v5087
      %v5151 = vmul.f32 %v4927, %v5089
      %v5152 = vmul.f32 %v4928, %v5091
      %v5153 = vmul.f32 %v4929, %v5093
      %v5154 = vmul.f32 %v4930, %v5095
      %v5155 = vmul.f32 %v4931, %v5097
      %v5156 = vmul.f32 %v4932, %v5099
      %v5157 = vmul.f32 %v4933, %v5101
      %v5158 = vmul.f32 %v4934, %v5103
      %v5159 = vmul.f32 %v4935, %v5105
      %v5160 = vmul.f32 %v4936, %v5107
      %v5161 = vmul.f32 %v4937, %v5109
      %v5162 = vmul.f32 %v4938, %v5111
      %v5163 = vmul.f32 %v4939, %v5113
      %v5164 = vmul.f32 %v4940, %v5115
      %v5165 = vmul.f32 %v4941, %v5117
      %v5166 = vmul.f32 %v4942, %v5119
      %v5167 = vmul.f32 %v4943, %v5121
      %v5168 = vmul.f32 %v4944, %v5123
      %v5169 = vmul.f32 %v4945, %v5125
      %v5170 = vmul.f32 %v4946, %v5127
      %v5171 = vmul.f32 %v4947, %v5129
      %v5172 = vmul.f32 %v4948, %v5131
      %v5173 = vmul.f32 %v4949, %v5133
      %v5174 = vmul.f32 %v4950, %v5135
      %v5175 = vmul.f32 %v4951, %v5137
      %v5176 = vmul.f32 %v4952, %v5139
      %v5177 = vmul.f32 %v4953, %v5141
      %v5178 = vmul.f32 %v4954, %v5143
      %v5179 = vmul.f32 %v4955, %v5145
      %v5180 = vmul.f32 %v4956, %v5147
      %v5181 = vmul.f32 %v4957, %v5149
      %5182 = vst.msk [vmem:[%s305] sm:$0xff] %vm346, %v5150
      %5183 = vst.msk [vmem:[%s305 + $0x8] sm:$0xff] %vm346, %v5151
      %5184 = vst.msk [vmem:[%s305 + $0x10] sm:$0xff] %vm346, %v5152
      %5185 = vst.msk [vmem:[%s305 + $0x18] sm:$0xff] %vm346, %v5153
      %5186 = vst.msk [vmem:[%s305 + $0x20] sm:$0xff] %vm346, %v5154
      %5187 = vst.msk [vmem:[%s305 + $0x28] sm:$0xff] %vm346, %v5155
      %5188 = vst.msk [vmem:[%s305 + $0x30] sm:$0xff] %vm346, %v5156
      %5189 = vst.msk [vmem:[%s305 + $0x38] sm:$0xff] %vm346, %v5157
      %5190 = vst.msk [vmem:[%s305 + $0x40] sm:$0xff] %vm346, %v5158
      %5191 = vst.msk [vmem:[%s305 + $0x48] sm:$0xff] %vm346, %v5159
      %5192 = vst.msk [vmem:[%s305 + $0x50] sm:$0xff] %vm346, %v5160
      %5193 = vst.msk [vmem:[%s305 + $0x58] sm:$0xff] %vm346, %v5161
      %5194 = vst.msk [vmem:[%s305 + $0x60] sm:$0xff] %vm346, %v5162
      %5195 = vst.msk [vmem:[%s305 + $0x68] sm:$0xff] %vm346, %v5163
      %5196 = vst.msk [vmem:[%s305 + $0x70] sm:$0xff] %vm346, %v5164
      %5197 = vst.msk [vmem:[%s305 + $0x78] sm:$0xff] %vm346, %v5165
      %5198 = vst.msk [vmem:[%s305 + $0x80] sm:$0xff] %vm346, %v5166
      %5199 = vst.msk [vmem:[%s305 + $0x88] sm:$0xff] %vm346, %v5167
      %5200 = vst.msk [vmem:[%s305 + $0x90] sm:$0xff] %vm346, %v5168
      %5201 = vst.msk [vmem:[%s305 + $0x98] sm:$0xff] %vm346, %v5169
      %5202 = vst.msk [vmem:[%s305 + $0xa0] sm:$0xff] %vm346, %v5170
      %5203 = vst.msk [vmem:[%s305 + $0xa8] sm:$0xff] %vm346, %v5171
      %5204 = vst.msk [vmem:[%s305 + $0xb0] sm:$0xff] %vm346, %v5172
      %5205 = vst.msk [vmem:[%s305 + $0xb8] sm:$0xff] %vm346, %v5173
      %5206 = vst.msk [vmem:[%s305 + $0xc0] sm:$0xff] %vm346, %v5174
      %5207 = vst.msk [vmem:[%s305 + $0xc8] sm:$0xff] %vm346, %v5175
      %5208 = vst.msk [vmem:[%s305 + $0xd0] sm:$0xff] %vm346, %v5176
      %5209 = vst.msk [vmem:[%s305 + $0xd8] sm:$0xff] %vm346, %v5177
      %5210 = vst.msk [vmem:[%s305 + $0xe0] sm:$0xff] %vm346, %v5178
      %5211 = vst.msk [vmem:[%s305 + $0xe8] sm:$0xff] %vm346, %v5179
      %5212 = vst.msk [vmem:[%s305 + $0xf0] sm:$0xff] %vm346, %v5180
      %5213 = vst.msk [vmem:[%s305 + $0xf8] sm:$0xff] %vm346, %v5181
      %p5214 = scmp.lt.s32.totalorder %s19, 1
      %s5215 = scalar_select %p5214, %s19, 1
      %s5216 = smul.addr %s5215, 32
      %s5217 = smul.addr %s5216, 8
      %s5218 = scalar_lea.vmem %s8, %s5217
      // Predicated region
      $region53: #{tpu_custom_call.1} parent=51 // pred_check
        %p5219 = pneg %p210
      $region54: #{tpu_custom_call.1} parent=51 // pred_check_branch
        %5221 = sbr.rel (%p5219) target = $region56
      $region55: #{tpu_custom_call.1} parent=51 // pred_region
        _
      $region56: #{tpu_custom_call.1} parent=51 // pred_fallthru
        _
    $region52: #{tpu_custom_call.1} parent=5 // pred_fallthru
      _
    %p5222 = scmp.le.s32.totalorder 2, %s14
    // Predicated region
    $region57: #{tpu_custom_call.1} parent=5 // pred_check
      %p5223 = pneg %p5222
    $region58: #{tpu_custom_call.1} parent=5 // pred_check_branch
      %5225 = sbr.rel (%p5223) target = $region60
    $region59: #{tpu_custom_call.1} parent=5 // pred_region
      %s5226 = ssub.s32 %s14, 2
      // Predicated region
      $region61: #{tpu_custom_call.1} parent=59 // pred_check
        %p5227 = pneg %p216
      $region62: #{tpu_custom_call.1} parent=59 // pred_check_branch
        %5229 = sbr.rel (%p5227) target = $region64
      $region63: #{tpu_custom_call.1} parent=59 // pred_region
        %p5230 = scmp.lt.s32.totalorder %s20, 1
        %s5231 = scalar_select %p5230, %s20, 1
        %s5232 = smul.addr %s5231, 32
        %s5233 = smul.addr %s5232, 8
        %s5234 = scalar_lea.vmem %s8, %s5233
      $region64: #{tpu_custom_call.1} parent=59 // pred_fallthru
        _
    $region60: #{tpu_custom_call.1} parent=5 // pred_fallthru
      _
  $region6: #{tpu_custom_call.1} parent=0 // loop_footer
    %s18 = sadd.s32 1, %s14
  $region7: #{tpu_custom_call.1} parent=0 // loop_footer_branch
    %13 = sbr.rel target = $region3
  $region8: #{tpu_custom_call.1} parent=0 // loop_exit
    _

</llo_original>
